<compile_context>
chip_gen: v5e
topology: v5e:2x2
jax: 0.10.0
libtpu: 0.0.40
codegen_flags: <defaults>
</compile_context>

<pallas_src>
import jax
import jax.numpy as jnp
from jax.experimental import pallas as pl
from jax.experimental.pallas import tpu as pltpu

LANE = 128
TILE_B = 256  # batch tile: multiple of 16 (bf16 sublane packing), mem-bound sweet spot


def _round_up(n, m):
    return ((n + m - 1) // m) * m


def _pad2d(a, rows, cols):
    return jnp.pad(a, ((0, rows - a.shape[0]), (0, cols - a.shape[1])))


def autoencoder_kernel(x_ref,
                       w1_ref, b1_ref, w2_ref, b2_ref, w3_ref, b3_ref,
                       w4_ref, b4_ref, w5_ref, b5_ref, w6_ref, b6_ref,
                       enc_ref, dec_ref):
    x = x_ref[...]  # bf16 [TILE_B, in_pad]

    # ---- encoder: Linear -> ReLU -> Linear -> ReLU -> Linear
    h = jnp.dot(x, w1_ref[...], preferred_element_type=jnp.float32) + b1_ref[...]
    h = jnp.maximum(h, 0.0)
    h = jnp.dot(h.astype(jnp.bfloat16), w2_ref[...],
                preferred_element_type=jnp.float32) + b2_ref[...]
    h = jnp.maximum(h, 0.0)
    z = jnp.dot(h.astype(jnp.bfloat16), w3_ref[...],
                preferred_element_type=jnp.float32) + b3_ref[...]
    # Lane-dense (128-wide padded) encoder output; sliced to compress_total outside.
    enc_ref[...] = z.astype(enc_ref.dtype)

    # ---- decoder: Linear -> ReLU -> Linear -> ReLU -> Linear -> Tanh
    d = jnp.dot(z.astype(jnp.bfloat16), w4_ref[...],
                preferred_element_type=jnp.float32) + b4_ref[...]
    d = jnp.maximum(d, 0.0)
    d = jnp.dot(d.astype(jnp.bfloat16), w5_ref[...],
                preferred_element_type=jnp.float32) + b5_ref[...]
    d = jnp.maximum(d, 0.0)
    d = jnp.dot(d.astype(jnp.bfloat16), w6_ref[...],
                preferred_element_type=jnp.float32) + b6_ref[...]
    # Single full-tile, unmasked lane-dense store of the dominant writeback.
    dec_ref[...] = jnp.tanh(d).astype(dec_ref.dtype)


def autoencoder_forward(x, flat_params, compress_total):
    """x: f32 [B, input_size]; flat_params: [W1,b1,...,W6,b6] in f32.

    Returns (enc [B, compress_total], dec [B, input_size]) in f32.
    """
    B, input_size = x.shape
    in_pad = _round_up(input_size, LANE)
    comp_pad = _round_up(compress_total, LANE)
    hid_pad = LANE  # 64 -> 128

    w1, b1, w2, b2, w3, b3, w4, b4, w5, b5, w6, b6 = flat_params

    # Zero-pad all feature dims to lane-dense 128 multiples; weights -> bf16.
    def wcast(w, r, c):
        return _pad2d(w, r, c).astype(jnp.bfloat16)

    def bcast(b, c):
        return _pad2d(b, 1, c).astype(jnp.float32)

    padded_params = [
        wcast(w1, in_pad, 128),      bcast(b1, 128),
        wcast(w2, 128, hid_pad),     bcast(b2, hid_pad),
        wcast(w3, hid_pad, comp_pad), bcast(b3, comp_pad),
        wcast(w4, comp_pad, hid_pad), bcast(b4, hid_pad),
        wcast(w5, hid_pad, 128),     bcast(b5, 128),
        wcast(w6, 128, in_pad),      bcast(b6, in_pad),
    ]

    # Pad batch to a multiple of TILE_B and the lane axis to in_pad; cast to bf16.
    B_pad = _round_up(max(B, TILE_B), TILE_B)
    x_p = jnp.pad(x, ((0, B_pad - B), (0, in_pad - input_size))).astype(jnp.bfloat16)

    grid = (B_pad // TILE_B,)

    # Streamed tensors: batch-tiled index_map. Params: constant index_map
    # (resident in VMEM, DMA'd once for the whole grid).
    x_spec = pl.BlockSpec((TILE_B, in_pad), lambda i: (i, 0))
    param_specs = [pl.BlockSpec(p.shape, lambda i: (0, 0)) for p in padded_params]

    out_shape = (jax.ShapeDtypeStruct((B_pad, comp_pad), jnp.float32),
                 jax.ShapeDtypeStruct((B_pad, in_pad), jnp.float32))
    out_specs = (pl.BlockSpec((TILE_B, comp_pad), lambda i: (i, 0)),
                 pl.BlockSpec((TILE_B, in_pad), lambda i: (i, 0)))

    fn = pl.pallas_call(
        autoencoder_kernel,
        out_shape=out_shape,
        grid_spec=pltpu.PrefetchScalarGridSpec(
            num_scalar_prefetch=0,
            grid=grid,
            in_specs=[x_spec] + param_specs,
            out_specs=out_specs,
        ),
        compiler_params=pltpu.CompilerParams(
            dimension_semantics=("parallel",),  # shard batch tiles across TCs (v7x)
            vmem_limit_bytes=64 * 1024 * 1024,
        ),
    )
    enc_p, dec_p = fn(x_p, *padded_params)
    return enc_p[:B, :compress_total], dec_p[:B, :input_size]


def init_params(key, input_size, compress_total):
    """Deterministic param init. Each Linear layer -> (W[in,out], b[1,out]), f32."""
    dims = [(input_size, 128), (128, 64), (64, compress_total),      # encoder
            (compress_total, 64), (64, 128), (128, input_size)]      # decoder
    flat = []
    for (fan_in, fan_out) in dims:
        key, kw, kb = jax.random.split(key, 3)
        bound = 1.0 / jnp.sqrt(fan_in)
        w = jax.random.uniform(kw, (fan_in, fan_out), jnp.float32, -bound, bound)
        b = jax.random.uniform(kb, (1, fan_out), jnp.float32, -bound, bound)
        flat += [w, b]
    return flat


def reference_forward(x, flat_params):
    """Pure-JAX reference matching the kernel's dtype chain (bf16 matmuls,
    f32 accumulation + activations)."""
    def mm(a, w):
        return jnp.dot(a.astype(jnp.bfloat16), w.astype(jnp.bfloat16),
                       preferred_element_type=jnp.float32)

    w1, b1, w2, b2, w3, b3, w4, b4, w5, b5, w6, b6 = flat_params
    h = jnp.maximum(mm(x, w1) + b1, 0.0)
    h = jnp.maximum(mm(h, w2) + b2, 0.0)
    z = mm(h, w3) + b3
    d = jnp.maximum(mm(z, w4) + b4, 0.0)
    d = jnp.maximum(mm(d, w5) + b5, 0.0)
    d = jnp.tanh(mm(d, w6) + b6)
    return z, d


if __name__ == "__main__":
    INPUT_SIZE = 784       # flattened MNIST
    COMPRESS_TOTAL = 32
    BATCH = 512            # 2 grid steps of TILE_B=256 -> exercises the pipeline

    key = jax.random.PRNGKey(0)
    key, kx = jax.random.split(key)
    x = jax.random.normal(kx, (BATCH, INPUT_SIZE), jnp.float32)

    flat_params = init_params(key, INPUT_SIZE, COMPRESS_TOTAL)

    enc, dec = autoencoder_forward(x, flat_params, COMPRESS_TOTAL)
    jax.block_until_ready((enc, dec))

    enc_ref, dec_ref = reference_forward(x, flat_params)
    assert enc.shape == (BATCH, COMPRESS_TOTAL)
    assert dec.shape == (BATCH, INPUT_SIZE)
    # bf16 matmuls -> relaxed tolerance vs. the dtype-matched reference.
    assert jnp.allclose(enc, enc_ref, atol=2e-2, rtol=2e-2), \
        float(jnp.max(jnp.abs(enc - enc_ref)))
    assert jnp.allclose(dec, dec_ref, atol=2e-2, rtol=2e-2), \
        float(jnp.max(jnp.abs(dec - dec_ref)))

    print("KERNEL_OK")
</pallas_src>

<mosaic_0001>
module attributes {stable_mosaic.version = 11 : i64} {
  func.func @autoencoder_kernel(%arg0: i32, %arg1: memref<256x896xbf16, #tpu.memory_space<vmem>>, %arg2: memref<896x128xbf16, #tpu.memory_space<vmem>>, %arg3: memref<1x128xf32, #tpu.memory_space<vmem>>, %arg4: memref<128x128xbf16, #tpu.memory_space<vmem>>, %arg5: memref<1x128xf32, #tpu.memory_space<vmem>>, %arg6: memref<128x128xbf16, #tpu.memory_space<vmem>>, %arg7: memref<1x128xf32, #tpu.memory_space<vmem>>, %arg8: memref<128x128xbf16, #tpu.memory_space<vmem>>, %arg9: memref<1x128xf32, #tpu.memory_space<vmem>>, %arg10: memref<128x128xbf16, #tpu.memory_space<vmem>>, %arg11: memref<1x128xf32, #tpu.memory_space<vmem>>, %arg12: memref<128x896xbf16, #tpu.memory_space<vmem>>, %arg13: memref<1x896xf32, #tpu.memory_space<vmem>>, %arg14: memref<256x128xf32, #tpu.memory_space<vmem>>, %arg15: memref<256x896xf32, #tpu.memory_space<vmem>>) attributes {dimension_semantics = [#tpu.dimension_semantics<parallel>], iteration_bounds = array<i64: 2>, scalar_prefetch = 0 : i64, scratch_operands = 0 : i64, tpu.core_type = #tpu.core_type<tc>, window_params = [{transform_indices = @transform_0, window_bounds = array<i64: 256, 896>}, {pipeline_mode = #tpu.pipeline_mode<synchronous>, transform_indices = @transform_1, window_bounds = array<i64: 896, 128>}, {pipeline_mode = #tpu.pipeline_mode<synchronous>, transform_indices = @transform_2, window_bounds = array<i64: 1, 128>}, {pipeline_mode = #tpu.pipeline_mode<synchronous>, transform_indices = @transform_3, window_bounds = array<i64: 128, 128>}, {pipeline_mode = #tpu.pipeline_mode<synchronous>, transform_indices = @transform_4, window_bounds = array<i64: 1, 128>}, {pipeline_mode = #tpu.pipeline_mode<synchronous>, transform_indices = @transform_5, window_bounds = array<i64: 128, 128>}, {pipeline_mode = #tpu.pipeline_mode<synchronous>, transform_indices = @transform_6, window_bounds = array<i64: 1, 128>}, {pipeline_mode = #tpu.pipeline_mode<synchronous>, transform_indices = @transform_7, window_bounds = array<i64: 128, 128>}, {pipeline_mode = #tpu.pipeline_mode<synchronous>, transform_indices = @transform_8, window_bounds = array<i64: 1, 128>}, {pipeline_mode = #tpu.pipeline_mode<synchronous>, transform_indices = @transform_9, window_bounds = array<i64: 128, 128>}, {pipeline_mode = #tpu.pipeline_mode<synchronous>, transform_indices = @transform_10, window_bounds = array<i64: 1, 128>}, {pipeline_mode = #tpu.pipeline_mode<synchronous>, transform_indices = @transform_11, window_bounds = array<i64: 128, 896>}, {pipeline_mode = #tpu.pipeline_mode<synchronous>, transform_indices = @transform_12, window_bounds = array<i64: 1, 896>}, {transform_indices = @transform_13, window_bounds = array<i64: 256, 128>}, {transform_indices = @transform_14, window_bounds = array<i64: 256, 896>}]} {
    %c0 = arith.constant 0 : index
    %c0_0 = arith.constant 0 : index
    %0 = vector.load %arg1[%c0, %c0_0] : memref<256x896xbf16, #tpu.memory_space<vmem>>, vector<256x896xbf16>
    %c0_1 = arith.constant 0 : index
    %c0_2 = arith.constant 0 : index
    %1 = vector.load %arg2[%c0_1, %c0_2] : memref<896x128xbf16, #tpu.memory_space<vmem>>, vector<896x128xbf16>
    %cst = arith.constant dense<0.000000e+00> : vector<256x128xf32>
    %2 = tpu.matmul %0, %1, %cst {dimension_numbers = #tpu.dot_dimension_numbers<[1], [0], [0], [1], [0, 0, 1, 1], [], []>} : vector<256x896xbf16>, vector<896x128xbf16>, vector<256x128xf32> -> vector<256x128xf32>
    %c0_3 = arith.constant 0 : index
    %c0_4 = arith.constant 0 : index
    %3 = vector.load %arg3[%c0_3, %c0_4] : memref<1x128xf32, #tpu.memory_space<vmem>>, vector<1x128xf32>
    %4 = vector.broadcast %3 : vector<1x128xf32> to vector<256x128xf32>
    %5 = arith.addf %2, %4 : vector<256x128xf32>
    %cst_5 = arith.constant 0.000000e+00 : f32
    %6 = vector.broadcast %cst_5 : f32 to vector<256x128xf32>
    %7 = arith.maximumf %5, %6 : vector<256x128xf32>
    %8 = arith.truncf %7 : vector<256x128xf32> to vector<256x128xbf16>
    %c0_6 = arith.constant 0 : index
    %c0_7 = arith.constant 0 : index
    %9 = vector.load %arg4[%c0_6, %c0_7] : memref<128x128xbf16, #tpu.memory_space<vmem>>, vector<128x128xbf16>
    %cst_8 = arith.constant dense<0.000000e+00> : vector<256x128xf32>
    %10 = tpu.matmul %8, %9, %cst_8 {dimension_numbers = #tpu.dot_dimension_numbers<[1], [0], [0], [1], [0, 0, 1, 1], [], []>} : vector<256x128xbf16>, vector<128x128xbf16>, vector<256x128xf32> -> vector<256x128xf32>
    %c0_9 = arith.constant 0 : index
    %c0_10 = arith.constant 0 : index
    %11 = vector.load %arg5[%c0_9, %c0_10] : memref<1x128xf32, #tpu.memory_space<vmem>>, vector<1x128xf32>
    %12 = vector.broadcast %11 : vector<1x128xf32> to vector<256x128xf32>
    %13 = arith.addf %10, %12 : vector<256x128xf32>
    %cst_11 = arith.constant 0.000000e+00 : f32
    %14 = vector.broadcast %cst_11 : f32 to vector<256x128xf32>
    %15 = arith.maximumf %13, %14 : vector<256x128xf32>
    %16 = arith.truncf %15 : vector<256x128xf32> to vector<256x128xbf16>
    %c0_12 = arith.constant 0 : index
    %c0_13 = arith.constant 0 : index
    %17 = vector.load %arg6[%c0_12, %c0_13] : memref<128x128xbf16, #tpu.memory_space<vmem>>, vector<128x128xbf16>
    %cst_14 = arith.constant dense<0.000000e+00> : vector<256x128xf32>
    %18 = tpu.matmul %16, %17, %cst_14 {dimension_numbers = #tpu.dot_dimension_numbers<[1], [0], [0], [1], [0, 0, 1, 1], [], []>} : vector<256x128xbf16>, vector<128x128xbf16>, vector<256x128xf32> -> vector<256x128xf32>
    %c0_15 = arith.constant 0 : index
    %c0_16 = arith.constant 0 : index
    %19 = vector.load %arg7[%c0_15, %c0_16] : memref<1x128xf32, #tpu.memory_space<vmem>>, vector<1x128xf32>
    %20 = vector.broadcast %19 : vector<1x128xf32> to vector<256x128xf32>
    %21 = arith.addf %18, %20 : vector<256x128xf32>
    %c0_17 = arith.constant 0 : index
    %c0_18 = arith.constant 0 : index
    %22 = vector.load %arg14[%c0_17, %c0_18] : memref<256x128xf32, #tpu.memory_space<vmem>>, vector<256x128xf32>
    tpu.vector_store %arg14[%c0_17, %c0_18], %21 {strides = array<i32>} : memref<256x128xf32, #tpu.memory_space<vmem>>, vector<256x128xf32>,
    %23 = arith.truncf %21 : vector<256x128xf32> to vector<256x128xbf16>
    %c0_19 = arith.constant 0 : index
    %c0_20 = arith.constant 0 : index
    %24 = vector.load %arg8[%c0_19, %c0_20] : memref<128x128xbf16, #tpu.memory_space<vmem>>, vector<128x128xbf16>
    %cst_21 = arith.constant dense<0.000000e+00> : vector<256x128xf32>
    %25 = tpu.matmul %23, %24, %cst_21 {dimension_numbers = #tpu.dot_dimension_numbers<[1], [0], [0], [1], [0, 0, 1, 1], [], []>} : vector<256x128xbf16>, vector<128x128xbf16>, vector<256x128xf32> -> vector<256x128xf32>
    %c0_22 = arith.constant 0 : index
    %c0_23 = arith.constant 0 : index
    %26 = vector.load %arg9[%c0_22, %c0_23] : memref<1x128xf32, #tpu.memory_space<vmem>>, vector<1x128xf32>
    %27 = vector.broadcast %26 : vector<1x128xf32> to vector<256x128xf32>
    %28 = arith.addf %25, %27 : vector<256x128xf32>
    %cst_24 = arith.constant 0.000000e+00 : f32
    %29 = vector.broadcast %cst_24 : f32 to vector<256x128xf32>
    %30 = arith.maximumf %28, %29 : vector<256x128xf32>
    %31 = arith.truncf %30 : vector<256x128xf32> to vector<256x128xbf16>
    %c0_25 = arith.constant 0 : index
    %c0_26 = arith.constant 0 : index
    %32 = vector.load %arg10[%c0_25, %c0_26] : memref<128x128xbf16, #tpu.memory_space<vmem>>, vector<128x128xbf16>
    %cst_27 = arith.constant dense<0.000000e+00> : vector<256x128xf32>
    %33 = tpu.matmul %31, %32, %cst_27 {dimension_numbers = #tpu.dot_dimension_numbers<[1], [0], [0], [1], [0, 0, 1, 1], [], []>} : vector<256x128xbf16>, vector<128x128xbf16>, vector<256x128xf32> -> vector<256x128xf32>
    %c0_28 = arith.constant 0 : index
    %c0_29 = arith.constant 0 : index
    %34 = vector.load %arg11[%c0_28, %c0_29] : memref<1x128xf32, #tpu.memory_space<vmem>>, vector<1x128xf32>
    %35 = vector.broadcast %34 : vector<1x128xf32> to vector<256x128xf32>
    %36 = arith.addf %33, %35 : vector<256x128xf32>
    %cst_30 = arith.constant 0.000000e+00 : f32
    %37 = vector.broadcast %cst_30 : f32 to vector<256x128xf32>
    %38 = arith.maximumf %36, %37 : vector<256x128xf32>
    %39 = arith.truncf %38 : vector<256x128xf32> to vector<256x128xbf16>
    %c0_31 = arith.constant 0 : index
    %c0_32 = arith.constant 0 : index
    %40 = vector.load %arg12[%c0_31, %c0_32] : memref<128x896xbf16, #tpu.memory_space<vmem>>, vector<128x896xbf16>
    %cst_33 = arith.constant dense<0.000000e+00> : vector<256x896xf32>
    %41 = tpu.matmul %39, %40, %cst_33 {dimension_numbers = #tpu.dot_dimension_numbers<[1], [0], [0], [1], [0, 0, 1, 1], [], []>} : vector<256x128xbf16>, vector<128x896xbf16>, vector<256x896xf32> -> vector<256x896xf32>
    %c0_34 = arith.constant 0 : index
    %c0_35 = arith.constant 0 : index
    %42 = vector.load %arg13[%c0_34, %c0_35] : memref<1x896xf32, #tpu.memory_space<vmem>>, vector<1x896xf32>
    %43 = vector.broadcast %42 : vector<1x896xf32> to vector<256x896xf32>
    %44 = arith.addf %41, %43 : vector<256x896xf32>
    %45 = math.tanh %44 : vector<256x896xf32>
    %c0_36 = arith.constant 0 : index
    %c0_37 = arith.constant 0 : index
    %46 = vector.load %arg15[%c0_36, %c0_37] : memref<256x896xf32, #tpu.memory_space<vmem>>, vector<256x896xf32>
    tpu.vector_store %arg15[%c0_36, %c0_37], %45 {strides = array<i32>} : memref<256x896xf32, #tpu.memory_space<vmem>>, vector<256x896xf32>,
    return
  }
  func.func @transform_0(%arg0: i32) -> (i32, i32) {
    %c0_i32 = arith.constant 0 : i32
    %c0_i32_0 = arith.constant 0 : i32
    return %arg0, %c0_i32 : i32, i32
  }
  func.func @transform_1(%arg0: i32) -> (i32, i32) {
    %c0_i32 = arith.constant 0 : i32
    %c0_i32_0 = arith.constant 0 : i32
    %c0_i32_1 = arith.constant 0 : i32
    return %c0_i32, %c0_i32_0 : i32, i32
  }
  func.func @transform_2(%arg0: i32) -> (i32, i32) {
    %c0_i32 = arith.constant 0 : i32
    %c0_i32_0 = arith.constant 0 : i32
    %c0_i32_1 = arith.constant 0 : i32
    return %c0_i32, %c0_i32_0 : i32, i32
  }
  func.func @transform_3(%arg0: i32) -> (i32, i32) {
    %c0_i32 = arith.constant 0 : i32
    %c0_i32_0 = arith.constant 0 : i32
    %c0_i32_1 = arith.constant 0 : i32
    return %c0_i32, %c0_i32_0 : i32, i32
  }
  func.func @transform_4(%arg0: i32) -> (i32, i32) {
    %c0_i32 = arith.constant 0 : i32
    %c0_i32_0 = arith.constant 0 : i32
    %c0_i32_1 = arith.constant 0 : i32
    return %c0_i32, %c0_i32_0 : i32, i32
  }
  func.func @transform_5(%arg0: i32) -> (i32, i32) {
    %c0_i32 = arith.constant 0 : i32
    %c0_i32_0 = arith.constant 0 : i32
    %c0_i32_1 = arith.constant 0 : i32
    return %c0_i32, %c0_i32_0 : i32, i32
  }
  func.func @transform_6(%arg0: i32) -> (i32, i32) {
    %c0_i32 = arith.constant 0 : i32
    %c0_i32_0 = arith.constant 0 : i32
    %c0_i32_1 = arith.constant 0 : i32
    return %c0_i32, %c0_i32_0 : i32, i32
  }
  func.func @transform_7(%arg0: i32) -> (i32, i32) {
    %c0_i32 = arith.constant 0 : i32
    %c0_i32_0 = arith.constant 0 : i32
    %c0_i32_1 = arith.constant 0 : i32
    return %c0_i32, %c0_i32_0 : i32, i32
  }
  func.func @transform_8(%arg0: i32) -> (i32, i32) {
    %c0_i32 = arith.constant 0 : i32
    %c0_i32_0 = arith.constant 0 : i32
    %c0_i32_1 = arith.constant 0 : i32
    return %c0_i32, %c0_i32_0 : i32, i32
  }
  func.func @transform_9(%arg0: i32) -> (i32, i32) {
    %c0_i32 = arith.constant 0 : i32
    %c0_i32_0 = arith.constant 0 : i32
    %c0_i32_1 = arith.constant 0 : i32
    return %c0_i32, %c0_i32_0 : i32, i32
  }
  func.func @transform_10(%arg0: i32) -> (i32, i32) {
    %c0_i32 = arith.constant 0 : i32
    %c0_i32_0 = arith.constant 0 : i32
    %c0_i32_1 = arith.constant 0 : i32
    return %c0_i32, %c0_i32_0 : i32, i32
  }
  func.func @transform_11(%arg0: i32) -> (i32, i32) {
    %c0_i32 = arith.constant 0 : i32
    %c0_i32_0 = arith.constant 0 : i32
    %c0_i32_1 = arith.constant 0 : i32
    return %c0_i32, %c0_i32_0 : i32, i32
  }
  func.func @transform_12(%arg0: i32) -> (i32, i32) {
    %c0_i32 = arith.constant 0 : i32
    %c0_i32_0 = arith.constant 0 : i32
    %c0_i32_1 = arith.constant 0 : i32
    return %c0_i32, %c0_i32_0 : i32, i32
  }
  func.func @transform_13(%arg0: i32) -> (i32, i32) {
    %c0_i32 = arith.constant 0 : i32
    %c0_i32_0 = arith.constant 0 : i32
    return %arg0, %c0_i32 : i32, i32
  }
  func.func @transform_14(%arg0: i32) -> (i32, i32) {
    %c0_i32 = arith.constant 0 : i32
    %c0_i32_0 = arith.constant 0 : i32
    return %arg0, %c0_i32 : i32, i32
  }
}

</mosaic_0001>

<llo_original>
// kernel: tpu_custom_call.1
$region0: #{tpu_custom_call.1}
  #allocation0 [shape = 'u32[]', space=smem, size = 0x4, offset = 0x4, fixed_abs, tag = 'smem constant byte address 0x4 - core index']
  #allocation1 [shape = 'u32[72,128]{1,0:T(1,128)}', space=vmem, size = 0x9000, scoped, tag = 'internal scratch']
  %s0 = inlined_call_operand.hbm [shape: bf16[512,896], index: 0, kind: input, shape index: {}]
  %s1 = inlined_call_operand.hbm [shape: bf16[896,128], index: 1, kind: input, shape index: {}]
  %s2 = inlined_call_operand.hbm [shape: f32[1,128], index: 2, kind: input, shape index: {}]
  %s3 = inlined_call_operand.hbm [shape: bf16[128,128], index: 3, kind: input, shape index: {}]
  %s4 = inlined_call_operand.hbm [shape: f32[1,128], index: 4, kind: input, shape index: {}]
  %s5 = inlined_call_operand.hbm [shape: bf16[128,128], index: 5, kind: input, shape index: {}]
  %s6 = inlined_call_operand.hbm [shape: f32[1,128], index: 6, kind: input, shape index: {}]
  %s7 = inlined_call_operand.hbm [shape: bf16[128,128], index: 7, kind: input, shape index: {}]
  %s8 = inlined_call_operand.hbm [shape: f32[1,128], index: 8, kind: input, shape index: {}]
  %s9 = inlined_call_operand.hbm [shape: bf16[128,128], index: 9, kind: input, shape index: {}]
  %s10 = inlined_call_operand.hbm [shape: f32[1,128], index: 10, kind: input, shape index: {}]
  %s11 = inlined_call_operand.hbm [shape: bf16[128,896], index: 11, kind: input, shape index: {}]
  %s12 = inlined_call_operand.hbm [shape: f32[1,896], index: 12, kind: input, shape index: {}]
  %s13 = inlined_call_operand.hbm [shape: f32[512,128], index: 13, kind: output, shape index: {0}]
  %s14 = inlined_call_operand.hbm [shape: f32[512,896], index: 14, kind: output, shape index: {1}]
  %15 = xla_tuple %s13, %s14
  %s16 = sld [smem:[#allocation0]]
  $region145: #{tpu_custom_call.1} parent=0
    _
  %s18 = ssub.s32 1, %s16
  %s19 = scalar_select 0, %s18, %s16
  $region1: #{tpu_custom_call.1} parent=0
    #allocation2 [shape = 'u8[917504]{0}', space=vmem, size = 0xe0000, scoped, tag = 'input window, operand 0']
    #allocation3 [shape = 's32[2]{0}', space=sflag, size = 0x8, scoped, tag = 'scoped memory for tpu_custom_call.1']
    #allocation4 [shape = 's32[2]{0}', space=sflag, size = 0x8, scoped, tag = 'scoped memory for tpu_custom_call.1']
    #allocation5 [shape = 'u8[229376]{0}', space=vmem, size = 0x38000, scoped, tag = 'input window, operand 1, single buffered']
    #allocation6 [shape = 's32[1]{0}', space=sflag, size = 0x4, scoped, tag = 'scoped memory for tpu_custom_call.1']
    #allocation7 [shape = 'u8[512]{0}', space=vmem, size = 0x400, scoped, tag = 'input window, operand 2, single buffered']
    #allocation8 [shape = 'u8[32768]{0}', space=vmem, size = 0x8000, scoped, tag = 'input window, operand 3, single buffered']
    #allocation9 [shape = 's32[1]{0}', space=sflag, size = 0x4, scoped, tag = 'scoped memory for tpu_custom_call.1']
    #allocation10 [shape = 'u8[512]{0}', space=vmem, size = 0x400, scoped, tag = 'input window, operand 4, single buffered']
    #allocation11 [shape = 'u8[32768]{0}', space=vmem, size = 0x8000, scoped, tag = 'input window, operand 5, single buffered']
    #allocation12 [shape = 's32[1]{0}', space=sflag, size = 0x4, scoped, tag = 'scoped memory for tpu_custom_call.1']
    #allocation13 [shape = 'u8[512]{0}', space=vmem, size = 0x400, scoped, tag = 'input window, operand 6, single buffered']
    #allocation14 [shape = 'u8[32768]{0}', space=vmem, size = 0x8000, scoped, tag = 'input window, operand 7, single buffered']
    #allocation15 [shape = 's32[1]{0}', space=sflag, size = 0x4, scoped, tag = 'scoped memory for tpu_custom_call.1']
    #allocation16 [shape = 'u8[512]{0}', space=vmem, size = 0x400, scoped, tag = 'input window, operand 8, single buffered']
    #allocation17 [shape = 'u8[32768]{0}', space=vmem, size = 0x8000, scoped, tag = 'input window, operand 9, single buffered']
    #allocation18 [shape = 's32[1]{0}', space=sflag, size = 0x4, scoped, tag = 'scoped memory for tpu_custom_call.1']
    #allocation19 [shape = 'u8[512]{0}', space=vmem, size = 0x400, scoped, tag = 'input window, operand 10, single buffered']
    #allocation20 [shape = 'u8[229376]{0}', space=vmem, size = 0x38000, scoped, tag = 'input window, operand 11, single buffered']
    #allocation21 [shape = 's32[1]{0}', space=sflag, size = 0x4, scoped, tag = 'scoped memory for tpu_custom_call.1']
    #allocation22 [shape = 'u8[3584]{0}', space=vmem, size = 0x1000, scoped, tag = 'input window, operand 12, single buffered']
    #allocation23 [shape = 'u8[262144]{0}', space=vmem, size = 0x40000, scoped, tag = 'output window, operand 0']
    #allocation24 [shape = 'u8[1835008]{0}', space=vmem, size = 0x1c0000, scoped, tag = 'output window, operand 1']
    #allocation25 [shape = 's32[2]{0}', space=sflag, size = 0x8, scoped, tag = 'scoped memory for tpu_custom_call.1']
    %20 = vsyncpa [#allocation3], 0
    %s21 = scalar_lea.sflag [#allocation3], 1
    %22 = vsyncpa %s21, 0
    %23 = vsyncpa [#allocation6], 0
    %24 = vsyncpa [#allocation9], 0
    %25 = vsyncpa [#allocation12], 0
    %26 = vsyncpa [#allocation15], 0
    %27 = vsyncpa [#allocation18], 0
    %28 = vsyncpa [#allocation21], 0
    %29 = vsyncpa [#allocation4], 0
    %s30 = scalar_lea.sflag [#allocation4], 1
    %31 = vsyncpa %s30, 0
    %32 = vsyncpa [#allocation25], 0
    %s33 = scalar_lea.sflag [#allocation25], 1
    %34 = vsyncpa %s33, 0
    loop: start=0, step=1, limit=4
    $region2: #{tpu_custom_call.1} parent=1 // loop_pre_header
      _
    $region3: #{tpu_custom_call.1} parent=1 // loop_header
      %s36 = sphi 0, %s40
      %p37 = scmp.ge.s32.totalorder %s36, 4
      %s46 = sphi 0, %s48
      %s49 = sphi 0, %s46
      %s50 = sphi 0, %s49
      %s66 = sphi 0, %s50
      %s70 = sphi 0, %s70
      %s72 = sphi 0, %s70
      %s73 = sphi 0, %s72
      %s87 = sphi 0, %s73
      %s91 = sphi 0, %s91
      %s93 = sphi 0, %s91
      %s94 = sphi 0, %s93
      %s108 = sphi 0, %s94
      %s112 = sphi 0, %s112
      %s114 = sphi 0, %s112
      %s115 = sphi 0, %s114
      %s129 = sphi 0, %s115
      %s133 = sphi 0, %s133
      %s135 = sphi 0, %s133
      %s136 = sphi 0, %s135
      %s150 = sphi 0, %s136
      %s154 = sphi 0, %s154
      %s156 = sphi 0, %s154
      %s157 = sphi 0, %s156
      %s171 = sphi 0, %s157
      %s175 = sphi 0, %s175
      %s177 = sphi 0, %s175
      %s178 = sphi 0, %s177
      %s192 = sphi 0, %s178
      %s196 = sphi 0, %s196
      %s198 = sphi 0, %s196
      %s199 = sphi 0, %s198
      %s213 = sphi 0, %s199
      %s217 = sphi 0, %s217
      %s219 = sphi 0, %s217
      %s220 = sphi 0, %s219
      %s234 = sphi 0, %s220
      %s238 = sphi 0, %s238
      %s240 = sphi 0, %s238
      %s241 = sphi 0, %s240
      %s255 = sphi 0, %s241
      %s259 = sphi 0, %s259
      %s261 = sphi 0, %s259
      %s262 = sphi 0, %s261
      %s276 = sphi 0, %s262
      %s280 = sphi 0, %s280
      %s282 = sphi 0, %s280
      %s283 = sphi 0, %s282
      %s297 = sphi 0, %s283
      %s301 = sphi 0, %s301
      %s303 = sphi 0, %s301
      %s304 = sphi 0, %s303
      %s318 = sphi 0, %s304
      %s324 = sphi 0, %s326
      %s327 = sphi 0, %s324
      %s328 = sphi 0, %s327
      %s344 = sphi 0, %s328
      %s350 = sphi 0, %s352
      %s353 = sphi 0, %s350
      %s354 = sphi 0, %s353
      %s370 = sphi 0, %s354
    $region4: #{tpu_custom_call.1} parent=1 // loop_header_branch
      %39 = sbr.rel (%p37) target = $region8
    $region5: #{tpu_custom_call.1} parent=1 // loop_body
      %s41 = ssub.s32 %s36, 1
      %s42 = ssub.s32 %s36, 2
      %s43 = sadd.s32 %s36, 1
      %s44 = ssub.s32 %s36, %s43
      %p45 = scmp.eq.s32.totalorder %s44, 0
      %s47 = sadd.s32 %s46, 1
      %s48 = scalar_select %p45, %s46, %s47
      %p51 = pneg %p45
      %p52 = scmp.eq.s32.totalorder %s36, 1
      %p53 = por %p51, %p52
      %p54 = scmp.ne.s32.totalorder %s46, %s49
      %p55 = scmp.eq.s32.totalorder %s36, 0
      %p56 = por %p54, %p55
      %p57 = scmp.ne.s32.totalorder %s46, %s49
      %p58 = scmp.eq.s32.totalorder %s41, 1
      %p59 = por %p57, %p58
      %p60 = scmp.ne.s32.totalorder %s49, %s50
      %p61 = scmp.eq.s32.totalorder %s41, 0
      %p62 = por %p60, %p61
      %p63 = scmp.ne.s32.totalorder %s49, %s50
      %p64 = scmp.eq.s32.totalorder %s42, 1
      %p65 = por %p63, %p64
      %p67 = scmp.ne.s32.totalorder %s50, %s66
      %p68 = scmp.eq.s32.totalorder %s42, 0
      %p69 = por %p67, %p68
      %s71 = sadd.s32 %s70, 1
      %p74 = scmp.eq.s32.totalorder %s36, 1
      %p75 = scmp.ne.s32.totalorder %s70, %s72
      %p76 = scmp.eq.s32.totalorder %s36, 0
      %p77 = por %p75, %p76
      %p78 = scmp.ne.s32.totalorder %s70, %s72
      %p79 = scmp.eq.s32.totalorder %s41, 1
      %p80 = por %p78, %p79
      %p81 = scmp.ne.s32.totalorder %s72, %s73
      %p82 = scmp.eq.s32.totalorder %s41, 0
      %p83 = por %p81, %p82
      %p84 = scmp.ne.s32.totalorder %s72, %s73
      %p85 = scmp.eq.s32.totalorder %s42, 1
      %p86 = por %p84, %p85
      %p88 = scmp.ne.s32.totalorder %s73, %s87
      %p89 = scmp.eq.s32.totalorder %s42, 0
      %p90 = por %p88, %p89
      %s92 = sadd.s32 %s91, 1
      %p95 = scmp.eq.s32.totalorder %s36, 1
      %p96 = scmp.ne.s32.totalorder %s91, %s93
      %p97 = scmp.eq.s32.totalorder %s36, 0
      %p98 = por %p96, %p97
      %p99 = scmp.ne.s32.totalorder %s91, %s93
      %p100 = scmp.eq.s32.totalorder %s41, 1
      %p101 = por %p99, %p100
      %p102 = scmp.ne.s32.totalorder %s93, %s94
      %p103 = scmp.eq.s32.totalorder %s41, 0
      %p104 = por %p102, %p103
      %p105 = scmp.ne.s32.totalorder %s93, %s94
      %p106 = scmp.eq.s32.totalorder %s42, 1
      %p107 = por %p105, %p106
      %p109 = scmp.ne.s32.totalorder %s94, %s108
      %p110 = scmp.eq.s32.totalorder %s42, 0
      %p111 = por %p109, %p110
      %s113 = sadd.s32 %s112, 1
      %p116 = scmp.eq.s32.totalorder %s36, 1
      %p117 = scmp.ne.s32.totalorder %s112, %s114
      %p118 = scmp.eq.s32.totalorder %s36, 0
      %p119 = por %p117, %p118
      %p120 = scmp.ne.s32.totalorder %s112, %s114
      %p121 = scmp.eq.s32.totalorder %s41, 1
      %p122 = por %p120, %p121
      %p123 = scmp.ne.s32.totalorder %s114, %s115
      %p124 = scmp.eq.s32.totalorder %s41, 0
      %p125 = por %p123, %p124
      %p126 = scmp.ne.s32.totalorder %s114, %s115
      %p127 = scmp.eq.s32.totalorder %s42, 1
      %p128 = por %p126, %p127
      %p130 = scmp.ne.s32.totalorder %s115, %s129
      %p131 = scmp.eq.s32.totalorder %s42, 0
      %p132 = por %p130, %p131
      %s134 = sadd.s32 %s133, 1
      %p137 = scmp.eq.s32.totalorder %s36, 1
      %p138 = scmp.ne.s32.totalorder %s133, %s135
      %p139 = scmp.eq.s32.totalorder %s36, 0
      %p140 = por %p138, %p139
      %p141 = scmp.ne.s32.totalorder %s133, %s135
      %p142 = scmp.eq.s32.totalorder %s41, 1
      %p143 = por %p141, %p142
      %p144 = scmp.ne.s32.totalorder %s135, %s136
      %p145 = scmp.eq.s32.totalorder %s41, 0
      %p146 = por %p144, %p145
      %p147 = scmp.ne.s32.totalorder %s135, %s136
      %p148 = scmp.eq.s32.totalorder %s42, 1
      %p149 = por %p147, %p148
      %p151 = scmp.ne.s32.totalorder %s136, %s150
      %p152 = scmp.eq.s32.totalorder %s42, 0
      %p153 = por %p151, %p152
      %s155 = sadd.s32 %s154, 1
      %p158 = scmp.eq.s32.totalorder %s36, 1
      %p159 = scmp.ne.s32.totalorder %s154, %s156
      %p160 = scmp.eq.s32.totalorder %s36, 0
      %p161 = por %p159, %p160
      %p162 = scmp.ne.s32.totalorder %s154, %s156
      %p163 = scmp.eq.s32.totalorder %s41, 1
      %p164 = por %p162, %p163
      %p165 = scmp.ne.s32.totalorder %s156, %s157
      %p166 = scmp.eq.s32.totalorder %s41, 0
      %p167 = por %p165, %p166
      %p168 = scmp.ne.s32.totalorder %s156, %s157
      %p169 = scmp.eq.s32.totalorder %s42, 1
      %p170 = por %p168, %p169
      %p172 = scmp.ne.s32.totalorder %s157, %s171
      %p173 = scmp.eq.s32.totalorder %s42, 0
      %p174 = por %p172, %p173
      %s176 = sadd.s32 %s175, 1
      %p179 = scmp.eq.s32.totalorder %s36, 1
      %p180 = scmp.ne.s32.totalorder %s175, %s177
      %p181 = scmp.eq.s32.totalorder %s36, 0
      %p182 = por %p180, %p181
      %p183 = scmp.ne.s32.totalorder %s175, %s177
      %p184 = scmp.eq.s32.totalorder %s41, 1
      %p185 = por %p183, %p184
      %p186 = scmp.ne.s32.totalorder %s177, %s178
      %p187 = scmp.eq.s32.totalorder %s41, 0
      %p188 = por %p186, %p187
      %p189 = scmp.ne.s32.totalorder %s177, %s178
      %p190 = scmp.eq.s32.totalorder %s42, 1
      %p191 = por %p189, %p190
      %p193 = scmp.ne.s32.totalorder %s178, %s192
      %p194 = scmp.eq.s32.totalorder %s42, 0
      %p195 = por %p193, %p194
      %s197 = sadd.s32 %s196, 1
      %p200 = scmp.eq.s32.totalorder %s36, 1
      %p201 = scmp.ne.s32.totalorder %s196, %s198
      %p202 = scmp.eq.s32.totalorder %s36, 0
      %p203 = por %p201, %p202
      %p204 = scmp.ne.s32.totalorder %s196, %s198
      %p205 = scmp.eq.s32.totalorder %s41, 1
      %p206 = por %p204, %p205
      %p207 = scmp.ne.s32.totalorder %s198, %s199
      %p208 = scmp.eq.s32.totalorder %s41, 0
      %p209 = por %p207, %p208
      %p210 = scmp.ne.s32.totalorder %s198, %s199
      %p211 = scmp.eq.s32.totalorder %s42, 1
      %p212 = por %p210, %p211
      %p214 = scmp.ne.s32.totalorder %s199, %s213
      %p215 = scmp.eq.s32.totalorder %s42, 0
      %p216 = por %p214, %p215
      %s218 = sadd.s32 %s217, 1
      %p221 = scmp.eq.s32.totalorder %s36, 1
      %p222 = scmp.ne.s32.totalorder %s217, %s219
      %p223 = scmp.eq.s32.totalorder %s36, 0
      %p224 = por %p222, %p223
      %p225 = scmp.ne.s32.totalorder %s217, %s219
      %p226 = scmp.eq.s32.totalorder %s41, 1
      %p227 = por %p225, %p226
      %p228 = scmp.ne.s32.totalorder %s219, %s220
      %p229 = scmp.eq.s32.totalorder %s41, 0
      %p230 = por %p228, %p229
      %p231 = scmp.ne.s32.totalorder %s219, %s220
      %p232 = scmp.eq.s32.totalorder %s42, 1
      %p233 = por %p231, %p232
      %p235 = scmp.ne.s32.totalorder %s220, %s234
      %p236 = scmp.eq.s32.totalorder %s42, 0
      %p237 = por %p235, %p236
      %s239 = sadd.s32 %s238, 1
      %p242 = scmp.eq.s32.totalorder %s36, 1
      %p243 = scmp.ne.s32.totalorder %s238, %s240
      %p244 = scmp.eq.s32.totalorder %s36, 0
      %p245 = por %p243, %p244
      %p246 = scmp.ne.s32.totalorder %s238, %s240
      %p247 = scmp.eq.s32.totalorder %s41, 1
      %p248 = por %p246, %p247
      %p249 = scmp.ne.s32.totalorder %s240, %s241
      %p250 = scmp.eq.s32.totalorder %s41, 0
      %p251 = por %p249, %p250
      %p252 = scmp.ne.s32.totalorder %s240, %s241
      %p253 = scmp.eq.s32.totalorder %s42, 1
      %p254 = por %p252, %p253
      %p256 = scmp.ne.s32.totalorder %s241, %s255
      %p257 = scmp.eq.s32.totalorder %s42, 0
      %p258 = por %p256, %p257
      %s260 = sadd.s32 %s259, 1
      %p263 = scmp.eq.s32.totalorder %s36, 1
      %p264 = scmp.ne.s32.totalorder %s259, %s261
      %p265 = scmp.eq.s32.totalorder %s36, 0
      %p266 = por %p264, %p265
      %p267 = scmp.ne.s32.totalorder %s259, %s261
      %p268 = scmp.eq.s32.totalorder %s41, 1
      %p269 = por %p267, %p268
      %p270 = scmp.ne.s32.totalorder %s261, %s262
      %p271 = scmp.eq.s32.totalorder %s41, 0
      %p272 = por %p270, %p271
      %p273 = scmp.ne.s32.totalorder %s261, %s262
      %p274 = scmp.eq.s32.totalorder %s42, 1
      %p275 = por %p273, %p274
      %p277 = scmp.ne.s32.totalorder %s262, %s276
      %p278 = scmp.eq.s32.totalorder %s42, 0
      %p279 = por %p277, %p278
      %s281 = sadd.s32 %s280, 1
      %p284 = scmp.eq.s32.totalorder %s36, 1
      %p285 = scmp.ne.s32.totalorder %s280, %s282
      %p286 = scmp.eq.s32.totalorder %s36, 0
      %p287 = por %p285, %p286
      %p288 = scmp.ne.s32.totalorder %s280, %s282
      %p289 = scmp.eq.s32.totalorder %s41, 1
      %p290 = por %p288, %p289
      %p291 = scmp.ne.s32.totalorder %s282, %s283
      %p292 = scmp.eq.s32.totalorder %s41, 0
      %p293 = por %p291, %p292
      %p294 = scmp.ne.s32.totalorder %s282, %s283
      %p295 = scmp.eq.s32.totalorder %s42, 1
      %p296 = por %p294, %p295
      %p298 = scmp.ne.s32.totalorder %s283, %s297
      %p299 = scmp.eq.s32.totalorder %s42, 0
      %p300 = por %p298, %p299
      %s302 = sadd.s32 %s301, 1
      %p305 = scmp.eq.s32.totalorder %s36, 1
      %p306 = scmp.ne.s32.totalorder %s301, %s303
      %p307 = scmp.eq.s32.totalorder %s36, 0
      %p308 = por %p306, %p307
      %p309 = scmp.ne.s32.totalorder %s301, %s303
      %p310 = scmp.eq.s32.totalorder %s41, 1
      %p311 = por %p309, %p310
      %p312 = scmp.ne.s32.totalorder %s303, %s304
      %p313 = scmp.eq.s32.totalorder %s41, 0
      %p314 = por %p312, %p313
      %p315 = scmp.ne.s32.totalorder %s303, %s304
      %p316 = scmp.eq.s32.totalorder %s42, 1
      %p317 = por %p315, %p316
      %p319 = scmp.ne.s32.totalorder %s304, %s318
      %p320 = scmp.eq.s32.totalorder %s42, 0
      %p321 = por %p319, %p320
      %s322 = ssub.s32 %s36, %s43
      %p323 = scmp.eq.s32.totalorder %s322, 0
      %s325 = sadd.s32 %s324, 1
      %s326 = scalar_select %p323, %s324, %s325
      %p329 = pneg %p323
      %p330 = scmp.eq.s32.totalorder %s36, 1
      %p331 = por %p329, %p330
      %p332 = scmp.ne.s32.totalorder %s324, %s327
      %p333 = scmp.eq.s32.totalorder %s36, 0
      %p334 = por %p332, %p333
      %p335 = scmp.ne.s32.totalorder %s324, %s327
      %p336 = scmp.eq.s32.totalorder %s41, 1
      %p337 = por %p335, %p336
      %p338 = scmp.ne.s32.totalorder %s327, %s328
      %p339 = scmp.eq.s32.totalorder %s41, 0
      %p340 = por %p338, %p339
      %p341 = scmp.ne.s32.totalorder %s327, %s328
      %p342 = scmp.eq.s32.totalorder %s42, 1
      %p343 = por %p341, %p342
      %p345 = scmp.ne.s32.totalorder %s328, %s344
      %p346 = scmp.eq.s32.totalorder %s42, 0
      %p347 = por %p345, %p346
      %s348 = ssub.s32 %s36, %s43
      %p349 = scmp.eq.s32.totalorder %s348, 0
      %s351 = sadd.s32 %s350, 1
      %s352 = scalar_select %p349, %s350, %s351
      %p355 = pneg %p349
      %p356 = scmp.eq.s32.totalorder %s36, 1
      %p357 = por %p355, %p356
      %p358 = scmp.ne.s32.totalorder %s350, %s353
      %p359 = scmp.eq.s32.totalorder %s36, 0
      %p360 = por %p358, %p359
      %p361 = scmp.ne.s32.totalorder %s350, %s353
      %p362 = scmp.eq.s32.totalorder %s41, 1
      %p363 = por %p361, %p362
      %p364 = scmp.ne.s32.totalorder %s353, %s354
      %p365 = scmp.eq.s32.totalorder %s41, 0
      %p366 = por %p364, %p365
      %p367 = scmp.ne.s32.totalorder %s353, %s354
      %p368 = scmp.eq.s32.totalorder %s42, 1
      %p369 = por %p367, %p368
      %p371 = scmp.ne.s32.totalorder %s354, %s370
      %p372 = scmp.eq.s32.totalorder %s42, 0
      %p373 = por %p371, %p372
      %p374 = scmp.le.s32.totalorder 1, %s36
      %p375 = scmp.lt.s32.totalorder %s36, 3
      %p376 = pnand %p374, %p375
      %p377 = pneg %p376
      // Predicated region
      $region9: #{tpu_custom_call.1} parent=5 // pred_check
        _
      $region10: #{tpu_custom_call.1} parent=5 // pred_check_branch
        %379 = sbr.rel (%p376) target = $region12
      $region11: #{tpu_custom_call.1} parent=5 // pred_region
        %s380 = ssub.s32 %s36, 1
        // Predicated region
        $region13: #{tpu_custom_call.1} parent=11 // pred_check
          %p381 = pneg %p83
        $region14: #{tpu_custom_call.1} parent=11 // pred_check_branch
          %383 = sbr.rel (%p381) target = $region16
        $region15: #{tpu_custom_call.1} parent=11 // pred_region
          %385 = vsyncadd [#allocation6], 0
          %s386 = sshll.u32 %s1, 4
          %s387 = int_to_ptr.hbm [resolvable:$true] %s386
          %s388 = sshll.u32 [#allocation5], 4
          %s389 = int_to_ptr.vmem [resolvable:$true] %s388
          %394 = dma.hbm_to_vmem [thread:$0]  %s387, 7168, %s389, [#allocation6], 64, 64, 4
        $region16: #{tpu_custom_call.1} parent=11 // pred_fallthru
          _
        // Predicated region
        $region17: #{tpu_custom_call.1} parent=11 // pred_check
          %p395 = pneg %p104
        $region18: #{tpu_custom_call.1} parent=11 // pred_check_branch
          %397 = sbr.rel (%p395) target = $region20
        $region19: #{tpu_custom_call.1} parent=11 // pred_region
          %399 = vsyncadd [#allocation6], 0
          %s401 = sshll.u32 %s2, 4
          %s402 = int_to_ptr.hbm [resolvable:$true] %s401
          %s403 = sshll.u32 [#allocation7], 4
          %s404 = int_to_ptr.vmem [resolvable:$true] %s403
          %406 = dma.hbm_to_vmem [thread:$0]  %s402, 16, %s404, [#allocation6]
        $region20: #{tpu_custom_call.1} parent=11 // pred_fallthru
          _
        // Predicated region
        $region21: #{tpu_custom_call.1} parent=11 // pred_check
          %p407 = pneg %p125
        $region22: #{tpu_custom_call.1} parent=11 // pred_check_branch
          %409 = sbr.rel (%p407) target = $region24
        $region23: #{tpu_custom_call.1} parent=11 // pred_region
          %411 = vsyncadd [#allocation9], 0
          %s412 = sshll.u32 %s3, 4
          %s413 = int_to_ptr.hbm [resolvable:$true] %s412
          %s414 = sshll.u32 [#allocation8], 4
          %s415 = int_to_ptr.vmem [resolvable:$true] %s414
          %420 = dma.hbm_to_vmem [thread:$0]  %s413, 1024, %s415, [#allocation9], 64, 64, 4
        $region24: #{tpu_custom_call.1} parent=11 // pred_fallthru
          _
        // Predicated region
        $region25: #{tpu_custom_call.1} parent=11 // pred_check
          %p421 = pneg %p146
        $region26: #{tpu_custom_call.1} parent=11 // pred_check_branch
          %423 = sbr.rel (%p421) target = $region28
        $region27: #{tpu_custom_call.1} parent=11 // pred_region
          %425 = vsyncadd [#allocation9], 0
          %s427 = sshll.u32 %s4, 4
          %s428 = int_to_ptr.hbm [resolvable:$true] %s427
          %s429 = sshll.u32 [#allocation10], 4
          %s430 = int_to_ptr.vmem [resolvable:$true] %s429
          %432 = dma.hbm_to_vmem [thread:$0]  %s428, 16, %s430, [#allocation9]
        $region28: #{tpu_custom_call.1} parent=11 // pred_fallthru
          _
        // Predicated region
        $region29: #{tpu_custom_call.1} parent=11 // pred_check
          %p433 = pneg %p167
        $region30: #{tpu_custom_call.1} parent=11 // pred_check_branch
          %435 = sbr.rel (%p433) target = $region32
        $region31: #{tpu_custom_call.1} parent=11 // pred_region
          %437 = vsyncadd [#allocation12], 0
          %s438 = sshll.u32 %s5, 4
          %s439 = int_to_ptr.hbm [resolvable:$true] %s438
          %s440 = sshll.u32 [#allocation11], 4
          %s441 = int_to_ptr.vmem [resolvable:$true] %s440
          %446 = dma.hbm_to_vmem [thread:$0]  %s439, 1024, %s441, [#allocation12], 64, 64, 4
        $region32: #{tpu_custom_call.1} parent=11 // pred_fallthru
          _
        // Predicated region
        $region33: #{tpu_custom_call.1} parent=11 // pred_check
          %p447 = pneg %p188
        $region34: #{tpu_custom_call.1} parent=11 // pred_check_branch
          %449 = sbr.rel (%p447) target = $region36
        $region35: #{tpu_custom_call.1} parent=11 // pred_region
          %451 = vsyncadd [#allocation12], 0
          %s453 = sshll.u32 %s6, 4
          %s454 = int_to_ptr.hbm [resolvable:$true] %s453
          %s455 = sshll.u32 [#allocation13], 4
          %s456 = int_to_ptr.vmem [resolvable:$true] %s455
          %458 = dma.hbm_to_vmem [thread:$0]  %s454, 16, %s456, [#allocation12]
        $region36: #{tpu_custom_call.1} parent=11 // pred_fallthru
          _
        // Predicated region
        $region37: #{tpu_custom_call.1} parent=11 // pred_check
          %p459 = pneg %p209
        $region38: #{tpu_custom_call.1} parent=11 // pred_check_branch
          %461 = sbr.rel (%p459) target = $region40
        $region39: #{tpu_custom_call.1} parent=11 // pred_region
          %463 = vsyncadd [#allocation15], 0
          %s464 = sshll.u32 %s7, 4
          %s465 = int_to_ptr.hbm [resolvable:$true] %s464
          %s466 = sshll.u32 [#allocation14], 4
          %s467 = int_to_ptr.vmem [resolvable:$true] %s466
          %472 = dma.hbm_to_vmem [thread:$0]  %s465, 1024, %s467, [#allocation15], 64, 64, 4
        $region40: #{tpu_custom_call.1} parent=11 // pred_fallthru
          _
        // Predicated region
        $region41: #{tpu_custom_call.1} parent=11 // pred_check
          %p473 = pneg %p230
        $region42: #{tpu_custom_call.1} parent=11 // pred_check_branch
          %475 = sbr.rel (%p473) target = $region44
        $region43: #{tpu_custom_call.1} parent=11 // pred_region
          %477 = vsyncadd [#allocation15], 0
          %s479 = sshll.u32 %s8, 4
          %s480 = int_to_ptr.hbm [resolvable:$true] %s479
          %s481 = sshll.u32 [#allocation16], 4
          %s482 = int_to_ptr.vmem [resolvable:$true] %s481
          %484 = dma.hbm_to_vmem [thread:$0]  %s480, 16, %s482, [#allocation15]
        $region44: #{tpu_custom_call.1} parent=11 // pred_fallthru
          _
        // Predicated region
        $region45: #{tpu_custom_call.1} parent=11 // pred_check
          %p485 = pneg %p251
        $region46: #{tpu_custom_call.1} parent=11 // pred_check_branch
          %487 = sbr.rel (%p485) target = $region48
        $region47: #{tpu_custom_call.1} parent=11 // pred_region
          %489 = vsyncadd [#allocation18], 0
          %s490 = sshll.u32 %s9, 4
          %s491 = int_to_ptr.hbm [resolvable:$true] %s490
          %s492 = sshll.u32 [#allocation17], 4
          %s493 = int_to_ptr.vmem [resolvable:$true] %s492
          %498 = dma.hbm_to_vmem [thread:$0]  %s491, 1024, %s493, [#allocation18], 64, 64, 4
        $region48: #{tpu_custom_call.1} parent=11 // pred_fallthru
          _
        // Predicated region
        $region49: #{tpu_custom_call.1} parent=11 // pred_check
          %p499 = pneg %p272
        $region50: #{tpu_custom_call.1} parent=11 // pred_check_branch
          %501 = sbr.rel (%p499) target = $region52
        $region51: #{tpu_custom_call.1} parent=11 // pred_region
          %503 = vsyncadd [#allocation18], 0
          %s505 = sshll.u32 %s10, 4
          %s506 = int_to_ptr.hbm [resolvable:$true] %s505
          %s507 = sshll.u32 [#allocation19], 4
          %s508 = int_to_ptr.vmem [resolvable:$true] %s507
          %510 = dma.hbm_to_vmem [thread:$0]  %s506, 16, %s508, [#allocation18]
        $region52: #{tpu_custom_call.1} parent=11 // pred_fallthru
          _
        // Predicated region
        $region53: #{tpu_custom_call.1} parent=11 // pred_check
          %p511 = pneg %p293
        $region54: #{tpu_custom_call.1} parent=11 // pred_check_branch
          %513 = sbr.rel (%p511) target = $region56
        $region55: #{tpu_custom_call.1} parent=11 // pred_region
          %515 = vsyncadd [#allocation21], 0
          %s516 = sshll.u32 %s11, 4
          %s517 = int_to_ptr.hbm [resolvable:$true] %s516
          %s518 = sshll.u32 [#allocation20], 4
          %s519 = int_to_ptr.vmem [resolvable:$true] %s518
          %524 = dma.hbm_to_vmem [thread:$0]  %s517, 7168, %s519, [#allocation21], 448, 448, 28
        $region56: #{tpu_custom_call.1} parent=11 // pred_fallthru
          _
        // Predicated region
        $region57: #{tpu_custom_call.1} parent=11 // pred_check
          %p525 = pneg %p314
        $region58: #{tpu_custom_call.1} parent=11 // pred_check_branch
          %527 = sbr.rel (%p525) target = $region60
        $region59: #{tpu_custom_call.1} parent=11 // pred_region
          %529 = vsyncadd [#allocation21], 0
          %s531 = sshll.u32 %s12, 4
          %s532 = int_to_ptr.hbm [resolvable:$true] %s531
          %s533 = sshll.u32 [#allocation22], 4
          %s534 = int_to_ptr.vmem [resolvable:$true] %s533
          %536 = dma.hbm_to_vmem [thread:$0]  %s532, 112, %s534, [#allocation21]
        $region60: #{tpu_custom_call.1} parent=11 // pred_fallthru
          _
      $region12: #{tpu_custom_call.1} parent=5 // pred_fallthru
        _
      %p537 = scmp.lt.s32.totalorder %s36, 2
      // Predicated region
      $region61: #{tpu_custom_call.1} parent=5 // pred_check
        %p538 = pneg %p537
      $region62: #{tpu_custom_call.1} parent=5 // pred_check_branch
        %540 = sbr.rel (%p538) target = $region64
      $region63: #{tpu_custom_call.1} parent=5 // pred_region
        // Predicated region
        $region65: #{tpu_custom_call.1} parent=63 // pred_check
          %p541 = pneg %p56
        $region66: #{tpu_custom_call.1} parent=63 // pred_check_branch
          %543 = sbr.rel (%p541) target = $region68
        $region67: #{tpu_custom_call.1} parent=63 // pred_region
          %s544 = sand.u32 %s46, 1
          %s545 = scalar_lea.sflag [#allocation3], %s544
          %s546 = sand.u32 %s46, 1
          %s547 = smul.addr %s546, 896
          %s548 = scalar_lea.vmem [#allocation2], %s547
          %s549 = smul.u32 32, %s36
          %551 = vsyncadd %s545, 0
          %s552 = smul.addr %s549, 7
          %s553 = smul.addr %s552, 4
          %s554 = scalar_lea.hbm %s0, %s553
          %s555 = sshll.u32 %s554, 4
          %s556 = int_to_ptr.hbm [resolvable:$true] %s555
          %s557 = sshll.u32 %s548, 4
          %s558 = int_to_ptr.vmem [resolvable:$true] %s557
          %563 = dma.hbm_to_vmem [thread:$0]  %s556, 14336, %s558, %s545, 448, 448, 28
        $region68: #{tpu_custom_call.1} parent=63 // pred_fallthru
          _
      $region64: #{tpu_custom_call.1} parent=5 // pred_fallthru
        _
      %p564 = scmp.le.s32.totalorder 1, %s36
      %p565 = scmp.lt.s32.totalorder %s36, 3
      %p566 = pnand %p564, %p565
      %p567 = pneg %p566
      // Predicated region
      $region69: #{tpu_custom_call.1} parent=5 // pred_check
        _
      $region70: #{tpu_custom_call.1} parent=5 // pred_check_branch
        %569 = sbr.rel (%p566) target = $region72
      $region71: #{tpu_custom_call.1} parent=5 // pred_region
        %s570 = ssub.s32 %s36, 1
        %s571 = sand.u32 %s49, 1
        %s572 = scalar_lea.sflag [#allocation3], %s571
        %s573 = sand.u32 %s49, 1
        %s574 = smul.addr %s573, 896
        %s575 = scalar_lea.vmem [#allocation2], %s574
        // Predicated region
        $region73: #{tpu_custom_call.1} parent=71 // pred_check
          %p576 = pneg %p62
        $region74: #{tpu_custom_call.1} parent=71 // pred_check_branch
          %578 = sbr.rel (%p576) target = $region76
        $region75: #{tpu_custom_call.1} parent=71 // pred_region
          %580 = dma.done %s572, 14336
        $region76: #{tpu_custom_call.1} parent=71 // pred_fallthru
          _
        // Predicated region
        $region77: #{tpu_custom_call.1} parent=71 // pred_check
          %p581 = pneg %p83
        $region78: #{tpu_custom_call.1} parent=71 // pred_check_branch
          %583 = sbr.rel (%p581) target = $region80
        $region79: #{tpu_custom_call.1} parent=71 // pred_region
          %585 = dma.done [#allocation6], 7168
        $region80: #{tpu_custom_call.1} parent=71 // pred_fallthru
          _
        // Predicated region
        $region81: #{tpu_custom_call.1} parent=71 // pred_check
          %p586 = pneg %p104
        $region82: #{tpu_custom_call.1} parent=71 // pred_check_branch
          %588 = sbr.rel (%p586) target = $region84
        $region83: #{tpu_custom_call.1} parent=71 // pred_region
          %590 = dma.done [#allocation6], 16
        $region84: #{tpu_custom_call.1} parent=71 // pred_fallthru
          _
        // Predicated region
        $region85: #{tpu_custom_call.1} parent=71 // pred_check
          %p591 = pneg %p125
        $region86: #{tpu_custom_call.1} parent=71 // pred_check_branch
          %593 = sbr.rel (%p591) target = $region88
        $region87: #{tpu_custom_call.1} parent=71 // pred_region
          %595 = dma.done [#allocation9], 1024
        $region88: #{tpu_custom_call.1} parent=71 // pred_fallthru
          _
        // Predicated region
        $region89: #{tpu_custom_call.1} parent=71 // pred_check
          %p596 = pneg %p146
        $region90: #{tpu_custom_call.1} parent=71 // pred_check_branch
          %598 = sbr.rel (%p596) target = $region92
        $region91: #{tpu_custom_call.1} parent=71 // pred_region
          %600 = dma.done [#allocation9], 16
        $region92: #{tpu_custom_call.1} parent=71 // pred_fallthru
          _
        // Predicated region
        $region93: #{tpu_custom_call.1} parent=71 // pred_check
          %p601 = pneg %p167
        $region94: #{tpu_custom_call.1} parent=71 // pred_check_branch
          %603 = sbr.rel (%p601) target = $region96
        $region95: #{tpu_custom_call.1} parent=71 // pred_region
          %605 = dma.done [#allocation12], 1024
        $region96: #{tpu_custom_call.1} parent=71 // pred_fallthru
          _
        // Predicated region
        $region97: #{tpu_custom_call.1} parent=71 // pred_check
          %p606 = pneg %p188
        $region98: #{tpu_custom_call.1} parent=71 // pred_check_branch
          %608 = sbr.rel (%p606) target = $region100
        $region99: #{tpu_custom_call.1} parent=71 // pred_region
          %610 = dma.done [#allocation12], 16
        $region100: #{tpu_custom_call.1} parent=71 // pred_fallthru
          _
        // Predicated region
        $region101: #{tpu_custom_call.1} parent=71 // pred_check
          %p611 = pneg %p209
        $region102: #{tpu_custom_call.1} parent=71 // pred_check_branch
          %613 = sbr.rel (%p611) target = $region104
        $region103: #{tpu_custom_call.1} parent=71 // pred_region
          %615 = dma.done [#allocation15], 1024
        $region104: #{tpu_custom_call.1} parent=71 // pred_fallthru
          _
        // Predicated region
        $region105: #{tpu_custom_call.1} parent=71 // pred_check
          %p616 = pneg %p230
        $region106: #{tpu_custom_call.1} parent=71 // pred_check_branch
          %618 = sbr.rel (%p616) target = $region108
        $region107: #{tpu_custom_call.1} parent=71 // pred_region
          %620 = dma.done [#allocation15], 16
        $region108: #{tpu_custom_call.1} parent=71 // pred_fallthru
          _
        // Predicated region
        $region109: #{tpu_custom_call.1} parent=71 // pred_check
          %p621 = pneg %p251
        $region110: #{tpu_custom_call.1} parent=71 // pred_check_branch
          %623 = sbr.rel (%p621) target = $region112
        $region111: #{tpu_custom_call.1} parent=71 // pred_region
          %625 = dma.done [#allocation18], 1024
        $region112: #{tpu_custom_call.1} parent=71 // pred_fallthru
          _
        // Predicated region
        $region113: #{tpu_custom_call.1} parent=71 // pred_check
          %p626 = pneg %p272
        $region114: #{tpu_custom_call.1} parent=71 // pred_check_branch
          %628 = sbr.rel (%p626) target = $region116
        $region115: #{tpu_custom_call.1} parent=71 // pred_region
          %630 = dma.done [#allocation18], 16
        $region116: #{tpu_custom_call.1} parent=71 // pred_fallthru
          _
        // Predicated region
        $region117: #{tpu_custom_call.1} parent=71 // pred_check
          %p631 = pneg %p293
        $region118: #{tpu_custom_call.1} parent=71 // pred_check_branch
          %633 = sbr.rel (%p631) target = $region120
        $region119: #{tpu_custom_call.1} parent=71 // pred_region
          %635 = dma.done [#allocation21], 7168
        $region120: #{tpu_custom_call.1} parent=71 // pred_fallthru
          _
        // Predicated region
        $region121: #{tpu_custom_call.1} parent=71 // pred_check
          %p636 = pneg %p314
        $region122: #{tpu_custom_call.1} parent=71 // pred_check_branch
          %638 = sbr.rel (%p636) target = $region124
        $region123: #{tpu_custom_call.1} parent=71 // pred_region
          %640 = dma.done [#allocation21], 112
        $region124: #{tpu_custom_call.1} parent=71 // pred_fallthru
          _
        %s641 = sand.u32 %s49, 1
        %s642 = scalar_lea.sflag [#allocation3], %s641
        %s643 = sand.u32 %s49, 1
        %s644 = smul.addr %s643, 896
        %s645 = scalar_lea.vmem [#allocation2], %s644
        %p646 = pneg %p62
        %p647 = pneg %p59
        %p648 = pneg %p83
        %p649 = pneg %p80
        %p650 = pneg %p104
        %p651 = pneg %p101
        %p652 = pneg %p125
        %p653 = pneg %p122
        %p654 = pneg %p146
        %p655 = pneg %p143
        %p656 = pneg %p167
        %p657 = pneg %p164
        %p658 = pneg %p188
        %p659 = pneg %p185
        %p660 = pneg %p209
        %p661 = pneg %p206
        %p662 = pneg %p230
        %p663 = pneg %p227
        %p664 = pneg %p251
        %p665 = pneg %p248
        %p666 = pneg %p272
        %p667 = pneg %p269
        %p668 = pneg %p293
        %p669 = pneg %p290
        %p670 = pneg %p314
        %p671 = pneg %p311
        %p672 = pneg %p340
        %p673 = pneg %p337
        %s674 = sand.u32 %s327, 1
        %s675 = scalar_lea.sflag [#allocation4], %s674
        %s676 = sand.u32 %s327, 1
        %s677 = smul.addr %s676, 256
        %s678 = scalar_lea.vmem [#allocation23], %s677
        %p679 = pneg %p366
        %p680 = pneg %p363
        %s681 = sand.u32 %s353, 1
        %s682 = scalar_lea.sflag [#allocation25], %s681
        %s683 = sand.u32 %s353, 1
        %s684 = smul.addr %s683, 1792
        %s685 = scalar_lea.vmem [#allocation24], %s684
        %s686 = smul.u32 32, %s41
        %s687 = smul.u32 32, %s41
        %s688 = smul.u32 32, %s41
        %v689 = vld [vmem:[%s575] sm:$0xff]
        %v690 = vld [vmem:[%s575 + $0x8] sm:$0xff]
        %v691 = vld [vmem:[%s575 + $0x10] sm:$0xff]
        %v692 = vld [vmem:[%s575 + $0x18] sm:$0xf]
        %v693 = vld [vmem:[%s575 + $0x1c] sm:$0xff]
        %v694 = vld [vmem:[%s575 + $0x24] sm:$0xff]
        %v695 = vld [vmem:[%s575 + $0x2c] sm:$0xff]
        %v696 = vld [vmem:[%s575 + $0x34] sm:$0xf]
        %v697 = vld [vmem:[%s575 + $0x38] sm:$0xff]
        %v698 = vld [vmem:[%s575 + $0x40] sm:$0xff]
        %v699 = vld [vmem:[%s575 + $0x48] sm:$0xff]
        %v700 = vld [vmem:[%s575 + $0x50] sm:$0xf]
        %v701 = vld [vmem:[%s575 + $0x54] sm:$0xff]
        %v702 = vld [vmem:[%s575 + $0x5c] sm:$0xff]
        %v703 = vld [vmem:[%s575 + $0x64] sm:$0xff]
        %v704 = vld [vmem:[%s575 + $0x6c] sm:$0xf]
        %v705 = vld [vmem:[%s575 + $0x70] sm:$0xff]
        %v706 = vld [vmem:[%s575 + $0x78] sm:$0xff]
        %v707 = vld [vmem:[%s575 + $0x80] sm:$0xff]
        %v708 = vld [vmem:[%s575 + $0x88] sm:$0xf]
        %v709 = vld [vmem:[%s575 + $0x8c] sm:$0xff]
        %v710 = vld [vmem:[%s575 + $0x94] sm:$0xff]
        %v711 = vld [vmem:[%s575 + $0x9c] sm:$0xff]
        %v712 = vld [vmem:[%s575 + $0xa4] sm:$0xf]
        %v713 = vld [vmem:[%s575 + $0xa8] sm:$0xff]
        %v714 = vld [vmem:[%s575 + $0xb0] sm:$0xff]
        %v715 = vld [vmem:[%s575 + $0xb8] sm:$0xff]
        %v716 = vld [vmem:[%s575 + $0xc0] sm:$0xf]
        %v717 = vld [vmem:[%s575 + $0xc4] sm:$0xff]
        %v718 = vld [vmem:[%s575 + $0xcc] sm:$0xff]
        %v719 = vld [vmem:[%s575 + $0xd4] sm:$0xff]
        %v720 = vld [vmem:[%s575 + $0xdc] sm:$0xf]
        %v721 = vld [vmem:[%s575 + $0xe0] sm:$0xff]
        %v722 = vld [vmem:[%s575 + $0xe8] sm:$0xff]
        %v723 = vld [vmem:[%s575 + $0xf0] sm:$0xff]
        %v724 = vld [vmem:[%s575 + $0xf8] sm:$0xf]
        %v725 = vld [vmem:[%s575 + $0xfc] sm:$0xff]
        %v726 = vld [vmem:[%s575 + $0x104] sm:$0xff]
        %v727 = vld [vmem:[%s575 + $0x10c] sm:$0xff]
        %v728 = vld [vmem:[%s575 + $0x114] sm:$0xf]
        %v729 = vld [vmem:[%s575 + $0x118] sm:$0xff]
        %v730 = vld [vmem:[%s575 + $0x120] sm:$0xff]
        %v731 = vld [vmem:[%s575 + $0x128] sm:$0xff]
        %v732 = vld [vmem:[%s575 + $0x130] sm:$0xf]
        %v733 = vld [vmem:[%s575 + $0x134] sm:$0xff]
        %v734 = vld [vmem:[%s575 + $0x13c] sm:$0xff]
        %v735 = vld [vmem:[%s575 + $0x144] sm:$0xff]
        %v736 = vld [vmem:[%s575 + $0x14c] sm:$0xf]
        %v737 = vld [vmem:[%s575 + $0x150] sm:$0xff]
        %v738 = vld [vmem:[%s575 + $0x158] sm:$0xff]
        %v739 = vld [vmem:[%s575 + $0x160] sm:$0xff]
        %v740 = vld [vmem:[%s575 + $0x168] sm:$0xf]
        %v741 = vld [vmem:[%s575 + $0x16c] sm:$0xff]
        %v742 = vld [vmem:[%s575 + $0x174] sm:$0xff]
        %v743 = vld [vmem:[%s575 + $0x17c] sm:$0xff]
        %v744 = vld [vmem:[%s575 + $0x184] sm:$0xf]
        %v745 = vld [vmem:[%s575 + $0x188] sm:$0xff]
        %v746 = vld [vmem:[%s575 + $0x190] sm:$0xff]
        %v747 = vld [vmem:[%s575 + $0x198] sm:$0xff]
        %v748 = vld [vmem:[%s575 + $0x1a0] sm:$0xf]
        %v749 = vld [vmem:[%s575 + $0x1a4] sm:$0xff]
        %v750 = vld [vmem:[%s575 + $0x1ac] sm:$0xff]
        %v751 = vld [vmem:[%s575 + $0x1b4] sm:$0xff]
        %v752 = vld [vmem:[%s575 + $0x1bc] sm:$0xf]
        %v753 = vld [vmem:[%s575 + $0x1c0] sm:$0xff]
        %v754 = vld [vmem:[%s575 + $0x1c8] sm:$0xff]
        %v755 = vld [vmem:[%s575 + $0x1d0] sm:$0xff]
        %v756 = vld [vmem:[%s575 + $0x1d8] sm:$0xf]
        %v757 = vld [vmem:[%s575 + $0x1dc] sm:$0xff]
        %v758 = vld [vmem:[%s575 + $0x1e4] sm:$0xff]
        %v759 = vld [vmem:[%s575 + $0x1ec] sm:$0xff]
        %v760 = vld [vmem:[%s575 + $0x1f4] sm:$0xf]
        %v761 = vld [vmem:[%s575 + $0x1f8] sm:$0xff]
        %v762 = vld [vmem:[%s575 + $0x200] sm:$0xff]
        %v763 = vld [vmem:[%s575 + $0x208] sm:$0xff]
        %v764 = vld [vmem:[%s575 + $0x210] sm:$0xf]
        %v765 = vld [vmem:[%s575 + $0x214] sm:$0xff]
        %v766 = vld [vmem:[%s575 + $0x21c] sm:$0xff]
        %v767 = vld [vmem:[%s575 + $0x224] sm:$0xff]
        %v768 = vld [vmem:[%s575 + $0x22c] sm:$0xf]
        %v769 = vld [vmem:[%s575 + $0x230] sm:$0xff]
        %v770 = vld [vmem:[%s575 + $0x238] sm:$0xff]
        %v771 = vld [vmem:[%s575 + $0x240] sm:$0xff]
        %v772 = vld [vmem:[%s575 + $0x248] sm:$0xf]
        %v773 = vld [vmem:[%s575 + $0x24c] sm:$0xff]
        %v774 = vld [vmem:[%s575 + $0x254] sm:$0xff]
        %v775 = vld [vmem:[%s575 + $0x25c] sm:$0xff]
        %v776 = vld [vmem:[%s575 + $0x264] sm:$0xf]
        %v777 = vld [vmem:[%s575 + $0x268] sm:$0xff]
        %v778 = vld [vmem:[%s575 + $0x270] sm:$0xff]
        %v779 = vld [vmem:[%s575 + $0x278] sm:$0xff]
        %v780 = vld [vmem:[%s575 + $0x280] sm:$0xf]
        %v781 = vld [vmem:[%s575 + $0x284] sm:$0xff]
        %v782 = vld [vmem:[%s575 + $0x28c] sm:$0xff]
        %v783 = vld [vmem:[%s575 + $0x294] sm:$0xff]
        %v784 = vld [vmem:[%s575 + $0x29c] sm:$0xf]
        %v785 = vld [vmem:[%s575 + $0x2a0] sm:$0xff]
        %v786 = vld [vmem:[%s575 + $0x2a8] sm:$0xff]
        %v787 = vld [vmem:[%s575 + $0x2b0] sm:$0xff]
        %v788 = vld [vmem:[%s575 + $0x2b8] sm:$0xf]
        %v789 = vld [vmem:[%s575 + $0x2bc] sm:$0xff]
        %v790 = vld [vmem:[%s575 + $0x2c4] sm:$0xff]
        %v791 = vld [vmem:[%s575 + $0x2cc] sm:$0xff]
        %v792 = vld [vmem:[%s575 + $0x2d4] sm:$0xf]
        %v793 = vld [vmem:[%s575 + $0x2d8] sm:$0xff]
        %v794 = vld [vmem:[%s575 + $0x2e0] sm:$0xff]
        %v795 = vld [vmem:[%s575 + $0x2e8] sm:$0xff]
        %v796 = vld [vmem:[%s575 + $0x2f0] sm:$0xf]
        %v797 = vld [vmem:[%s575 + $0x2f4] sm:$0xff]
        %v798 = vld [vmem:[%s575 + $0x2fc] sm:$0xff]
        %v799 = vld [vmem:[%s575 + $0x304] sm:$0xff]
        %v800 = vld [vmem:[%s575 + $0x30c] sm:$0xf]
        %v801 = vld [vmem:[%s575 + $0x310] sm:$0xff]
        %v802 = vld [vmem:[%s575 + $0x318] sm:$0xff]
        %v803 = vld [vmem:[%s575 + $0x320] sm:$0xff]
        %v804 = vld [vmem:[%s575 + $0x328] sm:$0xf]
        %v805 = vld [vmem:[%s575 + $0x32c] sm:$0xff]
        %v806 = vld [vmem:[%s575 + $0x334] sm:$0xff]
        %v807 = vld [vmem:[%s575 + $0x33c] sm:$0xff]
        %v808 = vld [vmem:[%s575 + $0x344] sm:$0xf]
        %v809 = vld [vmem:[%s575 + $0x348] sm:$0xff]
        %v810 = vld [vmem:[%s575 + $0x350] sm:$0xff]
        %v811 = vld [vmem:[%s575 + $0x358] sm:$0xff]
        %v812 = vld [vmem:[%s575 + $0x360] sm:$0xf]
        %v813 = vld [vmem:[%s575 + $0x364] sm:$0xff]
        %v814 = vld [vmem:[%s575 + $0x36c] sm:$0xff]
        %v815 = vld [vmem:[%s575 + $0x374] sm:$0xff]
        %v816 = vld [vmem:[%s575 + $0x37c] sm:$0xf]
        %v817 = vld [vmem:[#allocation5] sm:$0xf]
        %v818 = vld [vmem:[#allocation5 + $0x4] sm:$0xf]
        %v819 = vld [vmem:[#allocation5 + $0x8] sm:$0xf]
        %v820 = vld [vmem:[#allocation5 + $0xc] sm:$0xf]
        %v821 = vld [vmem:[#allocation5 + $0x10] sm:$0xf]
        %v822 = vld [vmem:[#allocation5 + $0x14] sm:$0xf]
        %v823 = vld [vmem:[#allocation5 + $0x18] sm:$0xf]
        %v824 = vld [vmem:[#allocation5 + $0x1c] sm:$0xf]
        %v825 = vld [vmem:[#allocation5 + $0x20] sm:$0xf]
        %v826 = vld [vmem:[#allocation5 + $0x24] sm:$0xf]
        %v827 = vld [vmem:[#allocation5 + $0x28] sm:$0xf]
        %v828 = vld [vmem:[#allocation5 + $0x2c] sm:$0xf]
        %v829 = vld [vmem:[#allocation5 + $0x30] sm:$0xf]
        %v830 = vld [vmem:[#allocation5 + $0x34] sm:$0xf]
        %v831 = vld [vmem:[#allocation5 + $0x38] sm:$0xf]
        %v832 = vld [vmem:[#allocation5 + $0x3c] sm:$0xf]
        %v833 = vld [vmem:[#allocation5 + $0x40] sm:$0xf]
        %v834 = vld [vmem:[#allocation5 + $0x44] sm:$0xf]
        %v835 = vld [vmem:[#allocation5 + $0x48] sm:$0xf]
        %v836 = vld [vmem:[#allocation5 + $0x4c] sm:$0xf]
        %v837 = vld [vmem:[#allocation5 + $0x50] sm:$0xf]
        %v838 = vld [vmem:[#allocation5 + $0x54] sm:$0xf]
        %v839 = vld [vmem:[#allocation5 + $0x58] sm:$0xf]
        %v840 = vld [vmem:[#allocation5 + $0x5c] sm:$0xf]
        %v841 = vld [vmem:[#allocation5 + $0x60] sm:$0xf]
        %v842 = vld [vmem:[#allocation5 + $0x64] sm:$0xf]
        %v843 = vld [vmem:[#allocation5 + $0x68] sm:$0xf]
        %v844 = vld [vmem:[#allocation5 + $0x6c] sm:$0xf]
        %v845 = vld [vmem:[#allocation5 + $0x70] sm:$0xf]
        %v846 = vld [vmem:[#allocation5 + $0x74] sm:$0xf]
        %v847 = vld [vmem:[#allocation5 + $0x78] sm:$0xf]
        %v848 = vld [vmem:[#allocation5 + $0x7c] sm:$0xf]
        %v849 = vld [vmem:[#allocation5 + $0x80] sm:$0xf]
        %v850 = vld [vmem:[#allocation5 + $0x84] sm:$0xf]
        %v851 = vld [vmem:[#allocation5 + $0x88] sm:$0xf]
        %v852 = vld [vmem:[#allocation5 + $0x8c] sm:$0xf]
        %v853 = vld [vmem:[#allocation5 + $0x90] sm:$0xf]
        %v854 = vld [vmem:[#allocation5 + $0x94] sm:$0xf]
        %v855 = vld [vmem:[#allocation5 + $0x98] sm:$0xf]
        %v856 = vld [vmem:[#allocation5 + $0x9c] sm:$0xf]
        %v857 = vld [vmem:[#allocation5 + $0xa0] sm:$0xf]
        %v858 = vld [vmem:[#allocation5 + $0xa4] sm:$0xf]
        %v859 = vld [vmem:[#allocation5 + $0xa8] sm:$0xf]
        %v860 = vld [vmem:[#allocation5 + $0xac] sm:$0xf]
        %v861 = vld [vmem:[#allocation5 + $0xb0] sm:$0xf]
        %v862 = vld [vmem:[#allocation5 + $0xb4] sm:$0xf]
        %v863 = vld [vmem:[#allocation5 + $0xb8] sm:$0xf]
        %v864 = vld [vmem:[#allocation5 + $0xbc] sm:$0xf]
        %v865 = vld [vmem:[#allocation5 + $0xc0] sm:$0xf]
        %v866 = vld [vmem:[#allocation5 + $0xc4] sm:$0xf]
        %v867 = vld [vmem:[#allocation5 + $0xc8] sm:$0xf]
        %v868 = vld [vmem:[#allocation5 + $0xcc] sm:$0xf]
        %v869 = vld [vmem:[#allocation5 + $0xd0] sm:$0xf]
        %v870 = vld [vmem:[#allocation5 + $0xd4] sm:$0xf]
        %v871 = vld [vmem:[#allocation5 + $0xd8] sm:$0xf]
        %v872 = vld [vmem:[#allocation5 + $0xdc] sm:$0xf]
        %v873 = vld [vmem:[#allocation5 + $0xe0] sm:$0xf]
        %v874 = vld [vmem:[#allocation5 + $0xe4] sm:$0xf]
        %v875 = vld [vmem:[#allocation5 + $0xe8] sm:$0xf]
        %v876 = vld [vmem:[#allocation5 + $0xec] sm:$0xf]
        %v877 = vld [vmem:[#allocation5 + $0xf0] sm:$0xf]
        %v878 = vld [vmem:[#allocation5 + $0xf4] sm:$0xf]
        %v879 = vld [vmem:[#allocation5 + $0xf8] sm:$0xf]
        %v880 = vld [vmem:[#allocation5 + $0xfc] sm:$0xf]
        %v881 = vld [vmem:[#allocation5 + $0x100] sm:$0xf]
        %v882 = vld [vmem:[#allocation5 + $0x104] sm:$0xf]
        %v883 = vld [vmem:[#allocation5 + $0x108] sm:$0xf]
        %v884 = vld [vmem:[#allocation5 + $0x10c] sm:$0xf]
        %v885 = vld [vmem:[#allocation5 + $0x110] sm:$0xf]
        %v886 = vld [vmem:[#allocation5 + $0x114] sm:$0xf]
        %v887 = vld [vmem:[#allocation5 + $0x118] sm:$0xf]
        %v888 = vld [vmem:[#allocation5 + $0x11c] sm:$0xf]
        %v889 = vld [vmem:[#allocation5 + $0x120] sm:$0xf]
        %v890 = vld [vmem:[#allocation5 + $0x124] sm:$0xf]
        %v891 = vld [vmem:[#allocation5 + $0x128] sm:$0xf]
        %v892 = vld [vmem:[#allocation5 + $0x12c] sm:$0xf]
        %v893 = vld [vmem:[#allocation5 + $0x130] sm:$0xf]
        %v894 = vld [vmem:[#allocation5 + $0x134] sm:$0xf]
        %v895 = vld [vmem:[#allocation5 + $0x138] sm:$0xf]
        %v896 = vld [vmem:[#allocation5 + $0x13c] sm:$0xf]
        %v897 = vld [vmem:[#allocation5 + $0x140] sm:$0xf]
        %v898 = vld [vmem:[#allocation5 + $0x144] sm:$0xf]
        %v899 = vld [vmem:[#allocation5 + $0x148] sm:$0xf]
        %v900 = vld [vmem:[#allocation5 + $0x14c] sm:$0xf]
        %v901 = vld [vmem:[#allocation5 + $0x150] sm:$0xf]
        %v902 = vld [vmem:[#allocation5 + $0x154] sm:$0xf]
        %v903 = vld [vmem:[#allocation5 + $0x158] sm:$0xf]
        %v904 = vld [vmem:[#allocation5 + $0x15c] sm:$0xf]
        %v905 = vld [vmem:[#allocation5 + $0x160] sm:$0xf]
        %v906 = vld [vmem:[#allocation5 + $0x164] sm:$0xf]
        %v907 = vld [vmem:[#allocation5 + $0x168] sm:$0xf]
        %v908 = vld [vmem:[#allocation5 + $0x16c] sm:$0xf]
        %v909 = vld [vmem:[#allocation5 + $0x170] sm:$0xf]
        %v910 = vld [vmem:[#allocation5 + $0x174] sm:$0xf]
        %v911 = vld [vmem:[#allocation5 + $0x178] sm:$0xf]
        %v912 = vld [vmem:[#allocation5 + $0x17c] sm:$0xf]
        %v913 = vld [vmem:[#allocation5 + $0x180] sm:$0xf]
        %v914 = vld [vmem:[#allocation5 + $0x184] sm:$0xf]
        %v915 = vld [vmem:[#allocation5 + $0x188] sm:$0xf]
        %v916 = vld [vmem:[#allocation5 + $0x18c] sm:$0xf]
        %v917 = vld [vmem:[#allocation5 + $0x190] sm:$0xf]
        %v918 = vld [vmem:[#allocation5 + $0x194] sm:$0xf]
        %v919 = vld [vmem:[#allocation5 + $0x198] sm:$0xf]
        %v920 = vld [vmem:[#allocation5 + $0x19c] sm:$0xf]
        %v921 = vld [vmem:[#allocation5 + $0x1a0] sm:$0xf]
        %v922 = vld [vmem:[#allocation5 + $0x1a4] sm:$0xf]
        %v923 = vld [vmem:[#allocation5 + $0x1a8] sm:$0xf]
        %v924 = vld [vmem:[#allocation5 + $0x1ac] sm:$0xf]
        %v925 = vld [vmem:[#allocation5 + $0x1b0] sm:$0xf]
        %v926 = vld [vmem:[#allocation5 + $0x1b4] sm:$0xf]
        %v927 = vld [vmem:[#allocation5 + $0x1b8] sm:$0xf]
        %v928 = vld [vmem:[#allocation5 + $0x1bc] sm:$0xf]
        %v929 = vld [vmem:[#allocation7] sm:$0x1]
        %v931 = vperm.slane %v929, 0
        %v1061 = vunpack.c.l.b16 %v689
        %v1062 = vunpack.c.h.b16 %v689
        %v1063 = vunpack.c.l.b16 %v690
        %v1064 = vunpack.c.h.b16 %v690
        %v1065 = vunpack.c.l.b16 %v691
        %v1066 = vunpack.c.h.b16 %v691
        %v1067 = vunpack.c.l.b16 %v692
        %v1068 = vunpack.c.l.b16 %v693
        %v1069 = vunpack.c.h.b16 %v693
        %v1070 = vunpack.c.l.b16 %v694
        %v1071 = vunpack.c.h.b16 %v694
        %v1072 = vunpack.c.l.b16 %v695
        %v1073 = vunpack.c.h.b16 %v695
        %v1074 = vunpack.c.l.b16 %v696
        %v1075 = vunpack.c.l.b16 %v697
        %v1076 = vunpack.c.h.b16 %v697
        %v1077 = vunpack.c.l.b16 %v698
        %v1078 = vunpack.c.h.b16 %v698
        %v1079 = vunpack.c.l.b16 %v699
        %v1080 = vunpack.c.h.b16 %v699
        %v1081 = vunpack.c.l.b16 %v700
        %v1082 = vunpack.c.l.b16 %v701
        %v1083 = vunpack.c.h.b16 %v701
        %v1084 = vunpack.c.l.b16 %v702
        %v1085 = vunpack.c.h.b16 %v702
        %v1086 = vunpack.c.l.b16 %v703
        %v1087 = vunpack.c.h.b16 %v703
        %v1088 = vunpack.c.l.b16 %v704
        %v1089 = vunpack.c.l.b16 %v705
        %v1090 = vunpack.c.h.b16 %v705
        %v1091 = vunpack.c.l.b16 %v706
        %v1092 = vunpack.c.h.b16 %v706
        %v1093 = vunpack.c.l.b16 %v707
        %v1094 = vunpack.c.h.b16 %v707
        %v1095 = vunpack.c.l.b16 %v708
        %v1096 = vunpack.c.l.b16 %v709
        %v1097 = vunpack.c.h.b16 %v709
        %v1098 = vunpack.c.l.b16 %v710
        %v1099 = vunpack.c.h.b16 %v710
        %v1100 = vunpack.c.l.b16 %v711
        %v1101 = vunpack.c.h.b16 %v711
        %v1102 = vunpack.c.l.b16 %v712
        %v1103 = vunpack.c.l.b16 %v713
        %v1104 = vunpack.c.h.b16 %v713
        %v1105 = vunpack.c.l.b16 %v714
        %v1106 = vunpack.c.h.b16 %v714
        %v1107 = vunpack.c.l.b16 %v715
        %v1108 = vunpack.c.h.b16 %v715
        %v1109 = vunpack.c.l.b16 %v716
        %v1110 = vunpack.c.l.b16 %v717
        %v1111 = vunpack.c.h.b16 %v717
        %v1112 = vunpack.c.l.b16 %v718
        %v1113 = vunpack.c.h.b16 %v718
        %v1114 = vunpack.c.l.b16 %v719
        %v1115 = vunpack.c.h.b16 %v719
        %v1116 = vunpack.c.l.b16 %v720
        %v1117 = vunpack.c.l.b16 %v721
        %v1118 = vunpack.c.h.b16 %v721
        %v1119 = vunpack.c.l.b16 %v722
        %v1120 = vunpack.c.h.b16 %v722
        %v1121 = vunpack.c.l.b16 %v723
        %v1122 = vunpack.c.h.b16 %v723
        %v1123 = vunpack.c.l.b16 %v724
        %v1124 = vunpack.c.l.b16 %v725
        %v1125 = vunpack.c.h.b16 %v725
        %v1126 = vunpack.c.l.b16 %v726
        %v1127 = vunpack.c.h.b16 %v726
        %v1128 = vunpack.c.l.b16 %v727
        %v1129 = vunpack.c.h.b16 %v727
        %v1130 = vunpack.c.l.b16 %v728
        %v1131 = vunpack.c.l.b16 %v729
        %v1132 = vunpack.c.h.b16 %v729
        %v1133 = vunpack.c.l.b16 %v730
        %v1134 = vunpack.c.h.b16 %v730
        %v1135 = vunpack.c.l.b16 %v731
        %v1136 = vunpack.c.h.b16 %v731
        %v1137 = vunpack.c.l.b16 %v732
        %v1138 = vunpack.c.l.b16 %v733
        %v1139 = vunpack.c.h.b16 %v733
        %v1140 = vunpack.c.l.b16 %v734
        %v1141 = vunpack.c.h.b16 %v734
        %v1142 = vunpack.c.l.b16 %v735
        %v1143 = vunpack.c.h.b16 %v735
        %v1144 = vunpack.c.l.b16 %v736
        %v1145 = vunpack.c.l.b16 %v737
        %v1146 = vunpack.c.h.b16 %v737
        %v1147 = vunpack.c.l.b16 %v738
        %v1148 = vunpack.c.h.b16 %v738
        %v1149 = vunpack.c.l.b16 %v739
        %v1150 = vunpack.c.h.b16 %v739
        %v1151 = vunpack.c.l.b16 %v740
        %v1152 = vunpack.c.l.b16 %v741
        %v1153 = vunpack.c.h.b16 %v741
        %v1154 = vunpack.c.l.b16 %v742
        %v1155 = vunpack.c.h.b16 %v742
        %v1156 = vunpack.c.l.b16 %v743
        %v1157 = vunpack.c.h.b16 %v743
        %v1158 = vunpack.c.l.b16 %v744
        %v1159 = vunpack.c.l.b16 %v745
        %v1160 = vunpack.c.h.b16 %v745
        %v1161 = vunpack.c.l.b16 %v746
        %v1162 = vunpack.c.h.b16 %v746
        %v1163 = vunpack.c.l.b16 %v747
        %v1164 = vunpack.c.h.b16 %v747
        %v1165 = vunpack.c.l.b16 %v748
        %v1166 = vunpack.c.l.b16 %v749
        %v1167 = vunpack.c.h.b16 %v749
        %v1168 = vunpack.c.l.b16 %v750
        %v1169 = vunpack.c.h.b16 %v750
        %v1170 = vunpack.c.l.b16 %v751
        %v1171 = vunpack.c.h.b16 %v751
        %v1172 = vunpack.c.l.b16 %v752
        %v1173 = vunpack.c.l.b16 %v753
        %v1174 = vunpack.c.h.b16 %v753
        %v1175 = vunpack.c.l.b16 %v754
        %v1176 = vunpack.c.h.b16 %v754
        %v1177 = vunpack.c.l.b16 %v755
        %v1178 = vunpack.c.h.b16 %v755
        %v1179 = vunpack.c.l.b16 %v756
        %v1180 = vunpack.c.l.b16 %v757
        %v1181 = vunpack.c.h.b16 %v757
        %v1182 = vunpack.c.l.b16 %v758
        %v1183 = vunpack.c.h.b16 %v758
        %v1184 = vunpack.c.l.b16 %v759
        %v1185 = vunpack.c.h.b16 %v759
        %v1186 = vunpack.c.l.b16 %v760
        %v1187 = vunpack.c.l.b16 %v761
        %v1188 = vunpack.c.h.b16 %v761
        %v1189 = vunpack.c.l.b16 %v762
        %v1190 = vunpack.c.h.b16 %v762
        %v1191 = vunpack.c.l.b16 %v763
        %v1192 = vunpack.c.h.b16 %v763
        %v1193 = vunpack.c.l.b16 %v764
        %v1194 = vunpack.c.l.b16 %v765
        %v1195 = vunpack.c.h.b16 %v765
        %v1196 = vunpack.c.l.b16 %v766
        %v1197 = vunpack.c.h.b16 %v766
        %v1198 = vunpack.c.l.b16 %v767
        %v1199 = vunpack.c.h.b16 %v767
        %v1200 = vunpack.c.l.b16 %v768
        %v1201 = vunpack.c.l.b16 %v769
        %v1202 = vunpack.c.h.b16 %v769
        %v1203 = vunpack.c.l.b16 %v770
        %v1204 = vunpack.c.h.b16 %v770
        %v1205 = vunpack.c.l.b16 %v771
        %v1206 = vunpack.c.h.b16 %v771
        %v1207 = vunpack.c.l.b16 %v772
        %v1208 = vunpack.c.l.b16 %v773
        %v1209 = vunpack.c.h.b16 %v773
        %v1210 = vunpack.c.l.b16 %v774
        %v1211 = vunpack.c.h.b16 %v774
        %v1212 = vunpack.c.l.b16 %v775
        %v1213 = vunpack.c.h.b16 %v775
        %v1214 = vunpack.c.l.b16 %v776
        %v1215 = vunpack.c.l.b16 %v777
        %v1216 = vunpack.c.h.b16 %v777
        %v1217 = vunpack.c.l.b16 %v778
        %v1218 = vunpack.c.h.b16 %v778
        %v1219 = vunpack.c.l.b16 %v779
        %v1220 = vunpack.c.h.b16 %v779
        %v1221 = vunpack.c.l.b16 %v780
        %v1222 = vunpack.c.l.b16 %v781
        %v1223 = vunpack.c.h.b16 %v781
        %v1224 = vunpack.c.l.b16 %v782
        %v1225 = vunpack.c.h.b16 %v782
        %v1226 = vunpack.c.l.b16 %v783
        %v1227 = vunpack.c.h.b16 %v783
        %v1228 = vunpack.c.l.b16 %v784
        %v1229 = vunpack.c.l.b16 %v785
        %v1230 = vunpack.c.h.b16 %v785
        %v1231 = vunpack.c.l.b16 %v786
        %v1232 = vunpack.c.h.b16 %v786
        %v1233 = vunpack.c.l.b16 %v787
        %v1234 = vunpack.c.h.b16 %v787
        %v1235 = vunpack.c.l.b16 %v788
        %v1236 = vunpack.c.l.b16 %v789
        %v1237 = vunpack.c.h.b16 %v789
        %v1238 = vunpack.c.l.b16 %v790
        %v1239 = vunpack.c.h.b16 %v790
        %v1240 = vunpack.c.l.b16 %v791
        %v1241 = vunpack.c.h.b16 %v791
        %v1242 = vunpack.c.l.b16 %v792
        %v1243 = vunpack.c.l.b16 %v793
        %v1244 = vunpack.c.h.b16 %v793
        %v1245 = vunpack.c.l.b16 %v794
        %v1246 = vunpack.c.h.b16 %v794
        %v1247 = vunpack.c.l.b16 %v795
        %v1248 = vunpack.c.h.b16 %v795
        %v1249 = vunpack.c.l.b16 %v796
        %v1250 = vunpack.c.l.b16 %v797
        %v1251 = vunpack.c.h.b16 %v797
        %v1252 = vunpack.c.l.b16 %v798
        %v1253 = vunpack.c.h.b16 %v798
        %v1254 = vunpack.c.l.b16 %v799
        %v1255 = vunpack.c.h.b16 %v799
        %v1256 = vunpack.c.l.b16 %v800
        %v1257 = vunpack.c.l.b16 %v801
        %v1258 = vunpack.c.h.b16 %v801
        %v1259 = vunpack.c.l.b16 %v802
        %v1260 = vunpack.c.h.b16 %v802
        %v1261 = vunpack.c.l.b16 %v803
        %v1262 = vunpack.c.h.b16 %v803
        %v1263 = vunpack.c.l.b16 %v804
        %v1264 = vunpack.c.l.b16 %v805
        %v1265 = vunpack.c.h.b16 %v805
        %v1266 = vunpack.c.l.b16 %v806
        %v1267 = vunpack.c.h.b16 %v806
        %v1268 = vunpack.c.l.b16 %v807
        %v1269 = vunpack.c.h.b16 %v807
        %v1270 = vunpack.c.l.b16 %v808
        %v1271 = vunpack.c.l.b16 %v809
        %v1272 = vunpack.c.h.b16 %v809
        %v1273 = vunpack.c.l.b16 %v810
        %v1274 = vunpack.c.h.b16 %v810
        %v1275 = vunpack.c.l.b16 %v811
        %v1276 = vunpack.c.h.b16 %v811
        %v1277 = vunpack.c.l.b16 %v812
        %v1278 = vunpack.c.l.b16 %v813
        %v1279 = vunpack.c.h.b16 %v813
        %v1280 = vunpack.c.l.b16 %v814
        %v1281 = vunpack.c.h.b16 %v814
        %v1282 = vunpack.c.l.b16 %v815
        %v1283 = vunpack.c.h.b16 %v815
        %v1284 = vunpack.c.l.b16 %v816
        %v1285 = vpack.c.b16 %v1068, %v1061
        %v1286 = vpack.c.b16 %v1069, %v1062
        %v1287 = vpack.c.b16 %v1070, %v1063
        %v1288 = vpack.c.b16 %v1071, %v1064
        %v1289 = vpack.c.b16 %v1072, %v1065
        %v1290 = vpack.c.b16 %v1073, %v1066
        %v1291 = vpack.c.b16 %v1074, %v1067
        %v1292 = vpack.c.b16 %v1082, %v1075
        %v1293 = vpack.c.b16 %v1083, %v1076
        %v1294 = vpack.c.b16 %v1084, %v1077
        %v1295 = vpack.c.b16 %v1085, %v1078
        %v1296 = vpack.c.b16 %v1086, %v1079
        %v1297 = vpack.c.b16 %v1087, %v1080
        %v1298 = vpack.c.b16 %v1088, %v1081
        %v1299 = vpack.c.b16 %v1096, %v1089
        %v1300 = vpack.c.b16 %v1097, %v1090
        %v1301 = vpack.c.b16 %v1098, %v1091
        %v1302 = vpack.c.b16 %v1099, %v1092
        %v1303 = vpack.c.b16 %v1100, %v1093
        %v1304 = vpack.c.b16 %v1101, %v1094
        %v1305 = vpack.c.b16 %v1102, %v1095
        %v1306 = vpack.c.b16 %v1110, %v1103
        %v1307 = vpack.c.b16 %v1111, %v1104
        %v1308 = vpack.c.b16 %v1112, %v1105
        %v1309 = vpack.c.b16 %v1113, %v1106
        %v1310 = vpack.c.b16 %v1114, %v1107
        %v1311 = vpack.c.b16 %v1115, %v1108
        %v1312 = vpack.c.b16 %v1116, %v1109
        %v1313 = vpack.c.b16 %v1124, %v1117
        %v1314 = vpack.c.b16 %v1125, %v1118
        %v1315 = vpack.c.b16 %v1126, %v1119
        %v1316 = vpack.c.b16 %v1127, %v1120
        %v1317 = vpack.c.b16 %v1128, %v1121
        %v1318 = vpack.c.b16 %v1129, %v1122
        %v1319 = vpack.c.b16 %v1130, %v1123
        %v1320 = vpack.c.b16 %v1138, %v1131
        %v1321 = vpack.c.b16 %v1139, %v1132
        %v1322 = vpack.c.b16 %v1140, %v1133
        %v1323 = vpack.c.b16 %v1141, %v1134
        %v1324 = vpack.c.b16 %v1142, %v1135
        %v1325 = vpack.c.b16 %v1143, %v1136
        %v1326 = vpack.c.b16 %v1144, %v1137
        %v1327 = vpack.c.b16 %v1152, %v1145
        %v1328 = vpack.c.b16 %v1153, %v1146
        %v1329 = vpack.c.b16 %v1154, %v1147
        %v1330 = vpack.c.b16 %v1155, %v1148
        %v1331 = vpack.c.b16 %v1156, %v1149
        %v1332 = vpack.c.b16 %v1157, %v1150
        %v1333 = vpack.c.b16 %v1158, %v1151
        %v1334 = vpack.c.b16 %v1166, %v1159
        %v1335 = vpack.c.b16 %v1167, %v1160
        %v1336 = vpack.c.b16 %v1168, %v1161
        %v1337 = vpack.c.b16 %v1169, %v1162
        %v1338 = vpack.c.b16 %v1170, %v1163
        %v1339 = vpack.c.b16 %v1171, %v1164
        %v1340 = vpack.c.b16 %v1172, %v1165
        %v1341 = vpack.c.b16 %v1180, %v1173
        %v1342 = vpack.c.b16 %v1181, %v1174
        %v1343 = vpack.c.b16 %v1182, %v1175
        %v1344 = vpack.c.b16 %v1183, %v1176
        %v1345 = vpack.c.b16 %v1184, %v1177
        %v1346 = vpack.c.b16 %v1185, %v1178
        %v1347 = vpack.c.b16 %v1186, %v1179
        %v1348 = vpack.c.b16 %v1194, %v1187
        %v1349 = vpack.c.b16 %v1195, %v1188
        %v1350 = vpack.c.b16 %v1196, %v1189
        %v1351 = vpack.c.b16 %v1197, %v1190
        %v1352 = vpack.c.b16 %v1198, %v1191
        %v1353 = vpack.c.b16 %v1199, %v1192
        %v1354 = vpack.c.b16 %v1200, %v1193
        %v1355 = vpack.c.b16 %v1208, %v1201
        %v1356 = vpack.c.b16 %v1209, %v1202
        %v1357 = vpack.c.b16 %v1210, %v1203
        %v1358 = vpack.c.b16 %v1211, %v1204
        %v1359 = vpack.c.b16 %v1212, %v1205
        %v1360 = vpack.c.b16 %v1213, %v1206
        %v1361 = vpack.c.b16 %v1214, %v1207
        %v1362 = vpack.c.b16 %v1222, %v1215
        %v1363 = vpack.c.b16 %v1223, %v1216
        %v1364 = vpack.c.b16 %v1224, %v1217
        %v1365 = vpack.c.b16 %v1225, %v1218
        %v1366 = vpack.c.b16 %v1226, %v1219
        %v1367 = vpack.c.b16 %v1227, %v1220
        %v1368 = vpack.c.b16 %v1228, %v1221
        %v1369 = vpack.c.b16 %v1236, %v1229
        %v1370 = vpack.c.b16 %v1237, %v1230
        %v1371 = vpack.c.b16 %v1238, %v1231
        %v1372 = vpack.c.b16 %v1239, %v1232
        %v1373 = vpack.c.b16 %v1240, %v1233
        %v1374 = vpack.c.b16 %v1241, %v1234
        %v1375 = vpack.c.b16 %v1242, %v1235
        %v1376 = vpack.c.b16 %v1250, %v1243
        %v1377 = vpack.c.b16 %v1251, %v1244
        %v1378 = vpack.c.b16 %v1252, %v1245
        %v1379 = vpack.c.b16 %v1253, %v1246
        %v1380 = vpack.c.b16 %v1254, %v1247
        %v1381 = vpack.c.b16 %v1255, %v1248
        %v1382 = vpack.c.b16 %v1256, %v1249
        %v1383 = vpack.c.b16 %v1264, %v1257
        %v1384 = vpack.c.b16 %v1265, %v1258
        %v1385 = vpack.c.b16 %v1266, %v1259
        %v1386 = vpack.c.b16 %v1267, %v1260
        %v1387 = vpack.c.b16 %v1268, %v1261
        %v1388 = vpack.c.b16 %v1269, %v1262
        %v1389 = vpack.c.b16 %v1270, %v1263
        %v1390 = vpack.c.b16 %v1278, %v1271
        %v1391 = vpack.c.b16 %v1279, %v1272
        %v1392 = vpack.c.b16 %v1280, %v1273
        %v1393 = vpack.c.b16 %v1281, %v1274
        %v1394 = vpack.c.b16 %v1282, %v1275
        %v1395 = vpack.c.b16 %v1283, %v1276
        %v1396 = vpack.c.b16 %v1284, %v1277
        %v1621 = vunpack.c.l.b16 %v817
        %v1622 = vunpack.c.l.b16 %v818
        %v1623 = vunpack.c.l.b16 %v819
        %v1624 = vunpack.c.l.b16 %v820
        %v1625 = vunpack.c.l.b16 %v821
        %v1626 = vunpack.c.l.b16 %v822
        %v1627 = vunpack.c.l.b16 %v823
        %v1628 = vunpack.c.l.b16 %v824
        %v1629 = vunpack.c.l.b16 %v825
        %v1630 = vunpack.c.l.b16 %v826
        %v1631 = vunpack.c.l.b16 %v827
        %v1632 = vunpack.c.l.b16 %v828
        %v1633 = vunpack.c.l.b16 %v829
        %v1634 = vunpack.c.l.b16 %v830
        %v1635 = vunpack.c.l.b16 %v831
        %v1636 = vunpack.c.l.b16 %v832
        %v1637 = vunpack.c.l.b16 %v833
        %v1638 = vunpack.c.l.b16 %v834
        %v1639 = vunpack.c.l.b16 %v835
        %v1640 = vunpack.c.l.b16 %v836
        %v1641 = vunpack.c.l.b16 %v837
        %v1642 = vunpack.c.l.b16 %v838
        %v1643 = vunpack.c.l.b16 %v839
        %v1644 = vunpack.c.l.b16 %v840
        %v1645 = vunpack.c.l.b16 %v841
        %v1646 = vunpack.c.l.b16 %v842
        %v1647 = vunpack.c.l.b16 %v843
        %v1648 = vunpack.c.l.b16 %v844
        %v1649 = vunpack.c.l.b16 %v845
        %v1650 = vunpack.c.l.b16 %v846
        %v1651 = vunpack.c.l.b16 %v847
        %v1652 = vunpack.c.l.b16 %v848
        %v1653 = vunpack.c.l.b16 %v849
        %v1654 = vunpack.c.l.b16 %v850
        %v1655 = vunpack.c.l.b16 %v851
        %v1656 = vunpack.c.l.b16 %v852
        %v1657 = vunpack.c.l.b16 %v853
        %v1658 = vunpack.c.l.b16 %v854
        %v1659 = vunpack.c.l.b16 %v855
        %v1660 = vunpack.c.l.b16 %v856
        %v1661 = vunpack.c.l.b16 %v857
        %v1662 = vunpack.c.l.b16 %v858
        %v1663 = vunpack.c.l.b16 %v859
        %v1664 = vunpack.c.l.b16 %v860
        %v1665 = vunpack.c.l.b16 %v861
        %v1666 = vunpack.c.l.b16 %v862
        %v1667 = vunpack.c.l.b16 %v863
        %v1668 = vunpack.c.l.b16 %v864
        %v1669 = vunpack.c.l.b16 %v865
        %v1670 = vunpack.c.l.b16 %v866
        %v1671 = vunpack.c.l.b16 %v867
        %v1672 = vunpack.c.l.b16 %v868
        %v1673 = vunpack.c.l.b16 %v869
        %v1674 = vunpack.c.l.b16 %v870
        %v1675 = vunpack.c.l.b16 %v871
        %v1676 = vunpack.c.l.b16 %v872
        %v1677 = vunpack.c.l.b16 %v873
        %v1678 = vunpack.c.l.b16 %v874
        %v1679 = vunpack.c.l.b16 %v875
        %v1680 = vunpack.c.l.b16 %v876
        %v1681 = vunpack.c.l.b16 %v877
        %v1682 = vunpack.c.l.b16 %v878
        %v1683 = vunpack.c.l.b16 %v879
        %v1684 = vunpack.c.l.b16 %v880
        %v1685 = vunpack.c.l.b16 %v881
        %v1686 = vunpack.c.l.b16 %v882
        %v1687 = vunpack.c.l.b16 %v883
        %v1688 = vunpack.c.l.b16 %v884
        %v1689 = vunpack.c.l.b16 %v885
        %v1690 = vunpack.c.l.b16 %v886
        %v1691 = vunpack.c.l.b16 %v887
        %v1692 = vunpack.c.l.b16 %v888
        %v1693 = vunpack.c.l.b16 %v889
        %v1694 = vunpack.c.l.b16 %v890
        %v1695 = vunpack.c.l.b16 %v891
        %v1696 = vunpack.c.l.b16 %v892
        %v1697 = vunpack.c.l.b16 %v893
        %v1698 = vunpack.c.l.b16 %v894
        %v1699 = vunpack.c.l.b16 %v895
        %v1700 = vunpack.c.l.b16 %v896
        %v1701 = vunpack.c.l.b16 %v897
        %v1702 = vunpack.c.l.b16 %v898
        %v1703 = vunpack.c.l.b16 %v899
        %v1704 = vunpack.c.l.b16 %v900
        %v1705 = vunpack.c.l.b16 %v901
        %v1706 = vunpack.c.l.b16 %v902
        %v1707 = vunpack.c.l.b16 %v903
        %v1708 = vunpack.c.l.b16 %v904
        %v1709 = vunpack.c.l.b16 %v905
        %v1710 = vunpack.c.l.b16 %v906
        %v1711 = vunpack.c.l.b16 %v907
        %v1712 = vunpack.c.l.b16 %v908
        %v1713 = vunpack.c.l.b16 %v909
        %v1714 = vunpack.c.l.b16 %v910
        %v1715 = vunpack.c.l.b16 %v911
        %v1716 = vunpack.c.l.b16 %v912
        %v1717 = vunpack.c.l.b16 %v913
        %v1718 = vunpack.c.l.b16 %v914
        %v1719 = vunpack.c.l.b16 %v915
        %v1720 = vunpack.c.l.b16 %v916
        %v1721 = vunpack.c.l.b16 %v917
        %v1722 = vunpack.c.l.b16 %v918
        %v1723 = vunpack.c.l.b16 %v919
        %v1724 = vunpack.c.l.b16 %v920
        %v1725 = vunpack.c.l.b16 %v921
        %v1726 = vunpack.c.l.b16 %v922
        %v1727 = vunpack.c.l.b16 %v923
        %v1728 = vunpack.c.l.b16 %v924
        %v1729 = vunpack.c.l.b16 %v925
        %v1730 = vunpack.c.l.b16 %v926
        %v1731 = vunpack.c.l.b16 %v927
        %v1732 = vunpack.c.l.b16 %v928
        %v1733 = vpack.c.b16 %v1622, %v1621
        %v1734 = vpack.c.b16 %v1624, %v1623
        %v1735 = vpack.c.b16 %v1626, %v1625
        %v1736 = vpack.c.b16 %v1628, %v1627
        %v1737 = vpack.c.b16 %v1630, %v1629
        %v1738 = vpack.c.b16 %v1632, %v1631
        %v1739 = vpack.c.b16 %v1634, %v1633
        %v1740 = vpack.c.b16 %v1636, %v1635
        %v1741 = vpack.c.b16 %v1638, %v1637
        %v1742 = vpack.c.b16 %v1640, %v1639
        %v1743 = vpack.c.b16 %v1642, %v1641
        %v1744 = vpack.c.b16 %v1644, %v1643
        %v1745 = vpack.c.b16 %v1646, %v1645
        %v1746 = vpack.c.b16 %v1648, %v1647
        %v1747 = vpack.c.b16 %v1650, %v1649
        %v1748 = vpack.c.b16 %v1652, %v1651
        %v1749 = vpack.c.b16 %v1654, %v1653
        %v1750 = vpack.c.b16 %v1656, %v1655
        %v1751 = vpack.c.b16 %v1658, %v1657
        %v1752 = vpack.c.b16 %v1660, %v1659
        %v1753 = vpack.c.b16 %v1662, %v1661
        %v1754 = vpack.c.b16 %v1664, %v1663
        %v1755 = vpack.c.b16 %v1666, %v1665
        %v1756 = vpack.c.b16 %v1668, %v1667
        %v1757 = vpack.c.b16 %v1670, %v1669
        %v1758 = vpack.c.b16 %v1672, %v1671
        %v1759 = vpack.c.b16 %v1674, %v1673
        %v1760 = vpack.c.b16 %v1676, %v1675
        %v1761 = vpack.c.b16 %v1678, %v1677
        %v1762 = vpack.c.b16 %v1680, %v1679
        %v1763 = vpack.c.b16 %v1682, %v1681
        %v1764 = vpack.c.b16 %v1684, %v1683
        %v1765 = vpack.c.b16 %v1686, %v1685
        %v1766 = vpack.c.b16 %v1688, %v1687
        %v1767 = vpack.c.b16 %v1690, %v1689
        %v1768 = vpack.c.b16 %v1692, %v1691
        %v1769 = vpack.c.b16 %v1694, %v1693
        %v1770 = vpack.c.b16 %v1696, %v1695
        %v1771 = vpack.c.b16 %v1698, %v1697
        %v1772 = vpack.c.b16 %v1700, %v1699
        %v1773 = vpack.c.b16 %v1702, %v1701
        %v1774 = vpack.c.b16 %v1704, %v1703
        %v1775 = vpack.c.b16 %v1706, %v1705
        %v1776 = vpack.c.b16 %v1708, %v1707
        %v1777 = vpack.c.b16 %v1710, %v1709
        %v1778 = vpack.c.b16 %v1712, %v1711
        %v1779 = vpack.c.b16 %v1714, %v1713
        %v1780 = vpack.c.b16 %v1716, %v1715
        %v1781 = vpack.c.b16 %v1718, %v1717
        %v1782 = vpack.c.b16 %v1720, %v1719
        %v1783 = vpack.c.b16 %v1722, %v1721
        %v1784 = vpack.c.b16 %v1724, %v1723
        %v1785 = vpack.c.b16 %v1726, %v1725
        %v1786 = vpack.c.b16 %v1728, %v1727
        %v1787 = vpack.c.b16 %v1730, %v1729
        %v1788 = vpack.c.b16 %v1732, %v1731
        %1845 = vmatpush.bf16.msra.mxu0 %v1740
        %1846 = vmatpush.bf16.msra.mxu0 %v1739
        %1847 = vmatpush.bf16.msra.mxu0 %v1738
        %1848 = vmatpush.bf16.msra.mxu0 %v1737
        %1849 = vmatpush.bf16.msra.mxu0 %v1736
        %1850 = vmatpush.bf16.msra.mxu0 %v1735
        %1851 = vmatpush.bf16.msra.mxu0 %v1734
        %1852 = vmatpush.bf16.msra.mxu0 %v1733
        %1853 = vmatmul.bf16.gmra.mxu0 %v1285
        %v1854 = vpop.f32.mrf.mxu0
        %v1855 = vadd.f32 %v931, %v1854
        %v1856 = vpop.f32.mrf.mxu0
        %v1857 = vadd.f32 %v931, %v1856
        %1858 = vmatmul.bf16.gmra.mxu0 %v1292
        %v1859 = vpop.f32.mrf.mxu0
        %v1860 = vadd.f32 %v931, %v1859
        %v1861 = vpop.f32.mrf.mxu0
        %v1862 = vadd.f32 %v931, %v1861
        %1863 = vmatmul.bf16.gmra.mxu0 %v1299
        %v1864 = vpop.f32.mrf.mxu0
        %v1865 = vadd.f32 %v931, %v1864
        %v1866 = vpop.f32.mrf.mxu0
        %v1867 = vadd.f32 %v931, %v1866
        %1868 = vmatmul.bf16.gmra.mxu0 %v1306
        %v1869 = vpop.f32.mrf.mxu0
        %v1870 = vadd.f32 %v931, %v1869
        %v1871 = vpop.f32.mrf.mxu0
        %v1872 = vadd.f32 %v931, %v1871
        %1873 = vmatmul.bf16.gmra.mxu0 %v1313
        %v1874 = vpop.f32.mrf.mxu0
        %v1875 = vadd.f32 %v931, %v1874
        %v1876 = vpop.f32.mrf.mxu0
        %v1877 = vadd.f32 %v931, %v1876
        %1878 = vmatmul.bf16.gmra.mxu0 %v1320
        %v1879 = vpop.f32.mrf.mxu0
        %v1880 = vadd.f32 %v931, %v1879
        %v1881 = vpop.f32.mrf.mxu0
        %v1882 = vadd.f32 %v931, %v1881
        %1883 = vmatmul.bf16.gmra.mxu0 %v1327
        %v1884 = vpop.f32.mrf.mxu0
        %v1885 = vadd.f32 %v931, %v1884
        %v1886 = vpop.f32.mrf.mxu0
        %v1887 = vadd.f32 %v931, %v1886
        %1888 = vmatmul.bf16.gmra.mxu0 %v1334
        %v1889 = vpop.f32.mrf.mxu0
        %v1890 = vadd.f32 %v931, %v1889
        %v1891 = vpop.f32.mrf.mxu0
        %v1892 = vadd.f32 %v931, %v1891
        %1893 = vmatmul.bf16.gmra.mxu0 %v1341
        %v1894 = vpop.f32.mrf.mxu0
        %v1895 = vadd.f32 %v931, %v1894
        %v1896 = vpop.f32.mrf.mxu0
        %v1897 = vadd.f32 %v931, %v1896
        %1898 = vmatmul.bf16.gmra.mxu0 %v1348
        %v1899 = vpop.f32.mrf.mxu0
        %v1900 = vadd.f32 %v931, %v1899
        %v1901 = vpop.f32.mrf.mxu0
        %v1902 = vadd.f32 %v931, %v1901
        %1903 = vmatmul.bf16.gmra.mxu0 %v1355
        %v1904 = vpop.f32.mrf.mxu0
        %v1905 = vadd.f32 %v931, %v1904
        %v1906 = vpop.f32.mrf.mxu0
        %v1907 = vadd.f32 %v931, %v1906
        %1908 = vmatmul.bf16.gmra.mxu0 %v1362
        %v1909 = vpop.f32.mrf.mxu0
        %v1910 = vadd.f32 %v931, %v1909
        %v1911 = vpop.f32.mrf.mxu0
        %v1912 = vadd.f32 %v931, %v1911
        %1913 = vmatmul.bf16.gmra.mxu0 %v1369
        %v1914 = vpop.f32.mrf.mxu0
        %v1915 = vadd.f32 %v931, %v1914
        %v1916 = vpop.f32.mrf.mxu0
        %v1917 = vadd.f32 %v931, %v1916
        %1918 = vmatmul.bf16.gmra.mxu0 %v1376
        %v1919 = vpop.f32.mrf.mxu0
        %v1920 = vadd.f32 %v931, %v1919
        %v1921 = vpop.f32.mrf.mxu0
        %v1922 = vadd.f32 %v931, %v1921
        %1923 = vmatmul.bf16.gmra.mxu0 %v1383
        %v1924 = vpop.f32.mrf.mxu0
        %v1925 = vadd.f32 %v931, %v1924
        %v1926 = vpop.f32.mrf.mxu0
        %v1927 = vadd.f32 %v931, %v1926
        %1928 = vmatmul.bf16.gmra.mxu0 %v1390
        %v1929 = vpop.f32.mrf.mxu0
        %v1930 = vadd.f32 %v931, %v1929
        %v1931 = vpop.f32.mrf.mxu0
        %v1932 = vadd.f32 %v931, %v1931
        %1933 = vdwg.mxu0
        %1934 = vmatpush.bf16.msra.mxu0 %v1748
        %1935 = vmatpush.bf16.msra.mxu0 %v1747
        %1936 = vmatpush.bf16.msra.mxu0 %v1746
        %1937 = vmatpush.bf16.msra.mxu0 %v1745
        %1938 = vmatpush.bf16.msra.mxu0 %v1744
        %1939 = vmatpush.bf16.msra.mxu0 %v1743
        %1940 = vmatpush.bf16.msra.mxu0 %v1742
        %1941 = vmatpush.bf16.msra.mxu0 %v1741
        %1942 = vmatmul.bf16.gmra.mxu0 %v1286
        %v1943 = vpop.f32.mrf.mxu0
        %v1944 = vadd.f32 %v1855, %v1943
        %v1945 = vpop.f32.mrf.mxu0
        %v1946 = vadd.f32 %v1857, %v1945
        %1947 = vmatmul.bf16.gmra.mxu0 %v1293
        %v1948 = vpop.f32.mrf.mxu0
        %v1949 = vadd.f32 %v1860, %v1948
        %v1950 = vpop.f32.mrf.mxu0
        %v1951 = vadd.f32 %v1862, %v1950
        %1952 = vmatmul.bf16.gmra.mxu0 %v1300
        %v1953 = vpop.f32.mrf.mxu0
        %v1954 = vadd.f32 %v1865, %v1953
        %v1955 = vpop.f32.mrf.mxu0
        %v1956 = vadd.f32 %v1867, %v1955
        %1957 = vmatmul.bf16.gmra.mxu0 %v1307
        %v1958 = vpop.f32.mrf.mxu0
        %v1959 = vadd.f32 %v1870, %v1958
        %v1960 = vpop.f32.mrf.mxu0
        %v1961 = vadd.f32 %v1872, %v1960
        %1962 = vmatmul.bf16.gmra.mxu0 %v1314
        %v1963 = vpop.f32.mrf.mxu0
        %v1964 = vadd.f32 %v1875, %v1963
        %v1965 = vpop.f32.mrf.mxu0
        %v1966 = vadd.f32 %v1877, %v1965
        %1967 = vmatmul.bf16.gmra.mxu0 %v1321
        %v1968 = vpop.f32.mrf.mxu0
        %v1969 = vadd.f32 %v1880, %v1968
        %v1970 = vpop.f32.mrf.mxu0
        %v1971 = vadd.f32 %v1882, %v1970
        %1972 = vmatmul.bf16.gmra.mxu0 %v1328
        %v1973 = vpop.f32.mrf.mxu0
        %v1974 = vadd.f32 %v1885, %v1973
        %v1975 = vpop.f32.mrf.mxu0
        %v1976 = vadd.f32 %v1887, %v1975
        %1977 = vmatmul.bf16.gmra.mxu0 %v1335
        %v1978 = vpop.f32.mrf.mxu0
        %v1979 = vadd.f32 %v1890, %v1978
        %v1980 = vpop.f32.mrf.mxu0
        %v1981 = vadd.f32 %v1892, %v1980
        %1982 = vmatmul.bf16.gmra.mxu0 %v1342
        %v1983 = vpop.f32.mrf.mxu0
        %v1984 = vadd.f32 %v1895, %v1983
        %v1985 = vpop.f32.mrf.mxu0
        %v1986 = vadd.f32 %v1897, %v1985
        %1987 = vmatmul.bf16.gmra.mxu0 %v1349
        %v1988 = vpop.f32.mrf.mxu0
        %v1989 = vadd.f32 %v1900, %v1988
        %v1990 = vpop.f32.mrf.mxu0
        %v1991 = vadd.f32 %v1902, %v1990
        %1992 = vmatmul.bf16.gmra.mxu0 %v1356
        %v1993 = vpop.f32.mrf.mxu0
        %v1994 = vadd.f32 %v1905, %v1993
        %v1995 = vpop.f32.mrf.mxu0
        %v1996 = vadd.f32 %v1907, %v1995
        %1997 = vmatmul.bf16.gmra.mxu0 %v1363
        %v1998 = vpop.f32.mrf.mxu0
        %v1999 = vadd.f32 %v1910, %v1998
        %v2000 = vpop.f32.mrf.mxu0
        %v2001 = vadd.f32 %v1912, %v2000
        %2002 = vmatmul.bf16.gmra.mxu0 %v1370
        %v2003 = vpop.f32.mrf.mxu0
        %v2004 = vadd.f32 %v1915, %v2003
        %v2005 = vpop.f32.mrf.mxu0
        %v2006 = vadd.f32 %v1917, %v2005
        %2007 = vmatmul.bf16.gmra.mxu0 %v1377
        %v2008 = vpop.f32.mrf.mxu0
        %v2009 = vadd.f32 %v1920, %v2008
        %v2010 = vpop.f32.mrf.mxu0
        %v2011 = vadd.f32 %v1922, %v2010
        %2012 = vmatmul.bf16.gmra.mxu0 %v1384
        %v2013 = vpop.f32.mrf.mxu0
        %v2014 = vadd.f32 %v1925, %v2013
        %v2015 = vpop.f32.mrf.mxu0
        %v2016 = vadd.f32 %v1927, %v2015
        %2017 = vmatmul.bf16.gmra.mxu0 %v1391
        %v2018 = vpop.f32.mrf.mxu0
        %v2019 = vadd.f32 %v1930, %v2018
        %v2020 = vpop.f32.mrf.mxu0
        %v2021 = vadd.f32 %v1932, %v2020
        %2022 = vdwg.mxu0
        %2023 = vmatpush.bf16.msra.mxu0 %v1756
        %2024 = vmatpush.bf16.msra.mxu0 %v1755
        %2025 = vmatpush.bf16.msra.mxu0 %v1754
        %2026 = vmatpush.bf16.msra.mxu0 %v1753
        %2027 = vmatpush.bf16.msra.mxu0 %v1752
        %2028 = vmatpush.bf16.msra.mxu0 %v1751
        %2029 = vmatpush.bf16.msra.mxu0 %v1750
        %2030 = vmatpush.bf16.msra.mxu0 %v1749
        %2031 = vmatmul.bf16.gmra.mxu0 %v1287
        %v2032 = vpop.f32.mrf.mxu0
        %v2033 = vadd.f32 %v1944, %v2032
        %v2034 = vpop.f32.mrf.mxu0
        %v2035 = vadd.f32 %v1946, %v2034
        %2036 = vmatmul.bf16.gmra.mxu0 %v1294
        %v2037 = vpop.f32.mrf.mxu0
        %v2038 = vadd.f32 %v1949, %v2037
        %v2039 = vpop.f32.mrf.mxu0
        %v2040 = vadd.f32 %v1951, %v2039
        %2041 = vmatmul.bf16.gmra.mxu0 %v1301
        %v2042 = vpop.f32.mrf.mxu0
        %v2043 = vadd.f32 %v1954, %v2042
        %v2044 = vpop.f32.mrf.mxu0
        %v2045 = vadd.f32 %v1956, %v2044
        %2046 = vmatmul.bf16.gmra.mxu0 %v1308
        %v2047 = vpop.f32.mrf.mxu0
        %v2048 = vadd.f32 %v1959, %v2047
        %v2049 = vpop.f32.mrf.mxu0
        %v2050 = vadd.f32 %v1961, %v2049
        %2051 = vmatmul.bf16.gmra.mxu0 %v1315
        %v2052 = vpop.f32.mrf.mxu0
        %v2053 = vadd.f32 %v1964, %v2052
        %v2054 = vpop.f32.mrf.mxu0
        %v2055 = vadd.f32 %v1966, %v2054
        %2056 = vmatmul.bf16.gmra.mxu0 %v1322
        %v2057 = vpop.f32.mrf.mxu0
        %v2058 = vadd.f32 %v1969, %v2057
        %v2059 = vpop.f32.mrf.mxu0
        %v2060 = vadd.f32 %v1971, %v2059
        %2061 = vmatmul.bf16.gmra.mxu0 %v1329
        %v2062 = vpop.f32.mrf.mxu0
        %v2063 = vadd.f32 %v1974, %v2062
        %v2064 = vpop.f32.mrf.mxu0
        %v2065 = vadd.f32 %v1976, %v2064
        %2066 = vmatmul.bf16.gmra.mxu0 %v1336
        %v2067 = vpop.f32.mrf.mxu0
        %v2068 = vadd.f32 %v1979, %v2067
        %v2069 = vpop.f32.mrf.mxu0
        %v2070 = vadd.f32 %v1981, %v2069
        %2071 = vmatmul.bf16.gmra.mxu0 %v1343
        %v2072 = vpop.f32.mrf.mxu0
        %v2073 = vadd.f32 %v1984, %v2072
        %v2074 = vpop.f32.mrf.mxu0
        %v2075 = vadd.f32 %v1986, %v2074
        %2076 = vmatmul.bf16.gmra.mxu0 %v1350
        %v2077 = vpop.f32.mrf.mxu0
        %v2078 = vadd.f32 %v1989, %v2077
        %v2079 = vpop.f32.mrf.mxu0
        %v2080 = vadd.f32 %v1991, %v2079
        %2081 = vmatmul.bf16.gmra.mxu0 %v1357
        %v2082 = vpop.f32.mrf.mxu0
        %v2083 = vadd.f32 %v1994, %v2082
        %v2084 = vpop.f32.mrf.mxu0
        %v2085 = vadd.f32 %v1996, %v2084
        %2086 = vmatmul.bf16.gmra.mxu0 %v1364
        %v2087 = vpop.f32.mrf.mxu0
        %v2088 = vadd.f32 %v1999, %v2087
        %v2089 = vpop.f32.mrf.mxu0
        %v2090 = vadd.f32 %v2001, %v2089
        %2091 = vmatmul.bf16.gmra.mxu0 %v1371
        %v2092 = vpop.f32.mrf.mxu0
        %v2093 = vadd.f32 %v2004, %v2092
        %v2094 = vpop.f32.mrf.mxu0
        %v2095 = vadd.f32 %v2006, %v2094
        %2096 = vmatmul.bf16.gmra.mxu0 %v1378
        %v2097 = vpop.f32.mrf.mxu0
        %v2098 = vadd.f32 %v2009, %v2097
        %v2099 = vpop.f32.mrf.mxu0
        %v2100 = vadd.f32 %v2011, %v2099
        %2101 = vmatmul.bf16.gmra.mxu0 %v1385
        %v2102 = vpop.f32.mrf.mxu0
        %v2103 = vadd.f32 %v2014, %v2102
        %v2104 = vpop.f32.mrf.mxu0
        %v2105 = vadd.f32 %v2016, %v2104
        %2106 = vmatmul.bf16.gmra.mxu0 %v1392
        %v2107 = vpop.f32.mrf.mxu0
        %v2108 = vadd.f32 %v2019, %v2107
        %v2109 = vpop.f32.mrf.mxu0
        %v2110 = vadd.f32 %v2021, %v2109
        %2111 = vdwg.mxu0
        %2112 = vmatpush.bf16.msra.mxu0 %v1764
        %2113 = vmatpush.bf16.msra.mxu0 %v1763
        %2114 = vmatpush.bf16.msra.mxu0 %v1762
        %2115 = vmatpush.bf16.msra.mxu0 %v1761
        %2116 = vmatpush.bf16.msra.mxu0 %v1760
        %2117 = vmatpush.bf16.msra.mxu0 %v1759
        %2118 = vmatpush.bf16.msra.mxu0 %v1758
        %2119 = vmatpush.bf16.msra.mxu0 %v1757
        %2120 = vmatmul.bf16.gmra.mxu0 %v1288
        %v2121 = vpop.f32.mrf.mxu0
        %v2122 = vadd.f32 %v2033, %v2121
        %v2123 = vpop.f32.mrf.mxu0
        %v2124 = vadd.f32 %v2035, %v2123
        %2125 = vmatmul.bf16.gmra.mxu0 %v1295
        %v2126 = vpop.f32.mrf.mxu0
        %v2127 = vadd.f32 %v2038, %v2126
        %v2128 = vpop.f32.mrf.mxu0
        %v2129 = vadd.f32 %v2040, %v2128
        %2130 = vmatmul.bf16.gmra.mxu0 %v1302
        %v2131 = vpop.f32.mrf.mxu0
        %v2132 = vadd.f32 %v2043, %v2131
        %v2133 = vpop.f32.mrf.mxu0
        %v2134 = vadd.f32 %v2045, %v2133
        %2135 = vmatmul.bf16.gmra.mxu0 %v1309
        %v2136 = vpop.f32.mrf.mxu0
        %v2137 = vadd.f32 %v2048, %v2136
        %v2138 = vpop.f32.mrf.mxu0
        %v2139 = vadd.f32 %v2050, %v2138
        %2140 = vmatmul.bf16.gmra.mxu0 %v1316
        %v2141 = vpop.f32.mrf.mxu0
        %v2142 = vadd.f32 %v2053, %v2141
        %v2143 = vpop.f32.mrf.mxu0
        %v2144 = vadd.f32 %v2055, %v2143
        %2145 = vmatmul.bf16.gmra.mxu0 %v1323
        %v2146 = vpop.f32.mrf.mxu0
        %v2147 = vadd.f32 %v2058, %v2146
        %v2148 = vpop.f32.mrf.mxu0
        %v2149 = vadd.f32 %v2060, %v2148
        %2150 = vmatmul.bf16.gmra.mxu0 %v1330
        %v2151 = vpop.f32.mrf.mxu0
        %v2152 = vadd.f32 %v2063, %v2151
        %v2153 = vpop.f32.mrf.mxu0
        %v2154 = vadd.f32 %v2065, %v2153
        %2155 = vmatmul.bf16.gmra.mxu0 %v1337
        %v2156 = vpop.f32.mrf.mxu0
        %v2157 = vadd.f32 %v2068, %v2156
        %v2158 = vpop.f32.mrf.mxu0
        %v2159 = vadd.f32 %v2070, %v2158
        %2160 = vmatmul.bf16.gmra.mxu0 %v1344
        %v2161 = vpop.f32.mrf.mxu0
        %v2162 = vadd.f32 %v2073, %v2161
        %v2163 = vpop.f32.mrf.mxu0
        %v2164 = vadd.f32 %v2075, %v2163
        %2165 = vmatmul.bf16.gmra.mxu0 %v1351
        %v2166 = vpop.f32.mrf.mxu0
        %v2167 = vadd.f32 %v2078, %v2166
        %v2168 = vpop.f32.mrf.mxu0
        %v2169 = vadd.f32 %v2080, %v2168
        %2170 = vmatmul.bf16.gmra.mxu0 %v1358
        %v2171 = vpop.f32.mrf.mxu0
        %v2172 = vadd.f32 %v2083, %v2171
        %v2173 = vpop.f32.mrf.mxu0
        %v2174 = vadd.f32 %v2085, %v2173
        %2175 = vmatmul.bf16.gmra.mxu0 %v1365
        %v2176 = vpop.f32.mrf.mxu0
        %v2177 = vadd.f32 %v2088, %v2176
        %v2178 = vpop.f32.mrf.mxu0
        %v2179 = vadd.f32 %v2090, %v2178
        %2180 = vmatmul.bf16.gmra.mxu0 %v1372
        %v2181 = vpop.f32.mrf.mxu0
        %v2182 = vadd.f32 %v2093, %v2181
        %v2183 = vpop.f32.mrf.mxu0
        %v2184 = vadd.f32 %v2095, %v2183
        %2185 = vmatmul.bf16.gmra.mxu0 %v1379
        %v2186 = vpop.f32.mrf.mxu0
        %v2187 = vadd.f32 %v2098, %v2186
        %v2188 = vpop.f32.mrf.mxu0
        %v2189 = vadd.f32 %v2100, %v2188
        %2190 = vmatmul.bf16.gmra.mxu0 %v1386
        %v2191 = vpop.f32.mrf.mxu0
        %v2192 = vadd.f32 %v2103, %v2191
        %v2193 = vpop.f32.mrf.mxu0
        %v2194 = vadd.f32 %v2105, %v2193
        %2195 = vmatmul.bf16.gmra.mxu0 %v1393
        %v2196 = vpop.f32.mrf.mxu0
        %v2197 = vadd.f32 %v2108, %v2196
        %v2198 = vpop.f32.mrf.mxu0
        %v2199 = vadd.f32 %v2110, %v2198
        %2200 = vdwg.mxu0
        %2201 = vmatpush.bf16.msra.mxu0 %v1772
        %2202 = vmatpush.bf16.msra.mxu0 %v1771
        %2203 = vmatpush.bf16.msra.mxu0 %v1770
        %2204 = vmatpush.bf16.msra.mxu0 %v1769
        %2205 = vmatpush.bf16.msra.mxu0 %v1768
        %2206 = vmatpush.bf16.msra.mxu0 %v1767
        %2207 = vmatpush.bf16.msra.mxu0 %v1766
        %2208 = vmatpush.bf16.msra.mxu0 %v1765
        %2209 = vmatmul.bf16.gmra.mxu0 %v1289
        %v2210 = vpop.f32.mrf.mxu0
        %v2211 = vadd.f32 %v2122, %v2210
        %v2212 = vpop.f32.mrf.mxu0
        %v2213 = vadd.f32 %v2124, %v2212
        %2214 = vmatmul.bf16.gmra.mxu0 %v1296
        %v2215 = vpop.f32.mrf.mxu0
        %v2216 = vadd.f32 %v2127, %v2215
        %v2217 = vpop.f32.mrf.mxu0
        %v2218 = vadd.f32 %v2129, %v2217
        %2219 = vmatmul.bf16.gmra.mxu0 %v1303
        %v2220 = vpop.f32.mrf.mxu0
        %v2221 = vadd.f32 %v2132, %v2220
        %v2222 = vpop.f32.mrf.mxu0
        %v2223 = vadd.f32 %v2134, %v2222
        %2224 = vmatmul.bf16.gmra.mxu0 %v1310
        %v2225 = vpop.f32.mrf.mxu0
        %v2226 = vadd.f32 %v2137, %v2225
        %v2227 = vpop.f32.mrf.mxu0
        %v2228 = vadd.f32 %v2139, %v2227
        %2229 = vmatmul.bf16.gmra.mxu0 %v1317
        %v2230 = vpop.f32.mrf.mxu0
        %v2231 = vadd.f32 %v2142, %v2230
        %v2232 = vpop.f32.mrf.mxu0
        %v2233 = vadd.f32 %v2144, %v2232
        %2234 = vmatmul.bf16.gmra.mxu0 %v1324
        %v2235 = vpop.f32.mrf.mxu0
        %v2236 = vadd.f32 %v2147, %v2235
        %v2237 = vpop.f32.mrf.mxu0
        %v2238 = vadd.f32 %v2149, %v2237
        %2239 = vmatmul.bf16.gmra.mxu0 %v1331
        %v2240 = vpop.f32.mrf.mxu0
        %v2241 = vadd.f32 %v2152, %v2240
        %v2242 = vpop.f32.mrf.mxu0
        %v2243 = vadd.f32 %v2154, %v2242
        %2244 = vmatmul.bf16.gmra.mxu0 %v1338
        %v2245 = vpop.f32.mrf.mxu0
        %v2246 = vadd.f32 %v2157, %v2245
        %v2247 = vpop.f32.mrf.mxu0
        %v2248 = vadd.f32 %v2159, %v2247
        %2249 = vmatmul.bf16.gmra.mxu0 %v1345
        %v2250 = vpop.f32.mrf.mxu0
        %v2251 = vadd.f32 %v2162, %v2250
        %v2252 = vpop.f32.mrf.mxu0
        %v2253 = vadd.f32 %v2164, %v2252
        %2254 = vmatmul.bf16.gmra.mxu0 %v1352
        %v2255 = vpop.f32.mrf.mxu0
        %v2256 = vadd.f32 %v2167, %v2255
        %v2257 = vpop.f32.mrf.mxu0
        %v2258 = vadd.f32 %v2169, %v2257
        %2259 = vmatmul.bf16.gmra.mxu0 %v1359
        %v2260 = vpop.f32.mrf.mxu0
        %v2261 = vadd.f32 %v2172, %v2260
        %v2262 = vpop.f32.mrf.mxu0
        %v2263 = vadd.f32 %v2174, %v2262
        %2264 = vmatmul.bf16.gmra.mxu0 %v1366
        %v2265 = vpop.f32.mrf.mxu0
        %v2266 = vadd.f32 %v2177, %v2265
        %v2267 = vpop.f32.mrf.mxu0
        %v2268 = vadd.f32 %v2179, %v2267
        %2269 = vmatmul.bf16.gmra.mxu0 %v1373
        %v2270 = vpop.f32.mrf.mxu0
        %v2271 = vadd.f32 %v2182, %v2270
        %v2272 = vpop.f32.mrf.mxu0
        %v2273 = vadd.f32 %v2184, %v2272
        %2274 = vmatmul.bf16.gmra.mxu0 %v1380
        %v2275 = vpop.f32.mrf.mxu0
        %v2276 = vadd.f32 %v2187, %v2275
        %v2277 = vpop.f32.mrf.mxu0
        %v2278 = vadd.f32 %v2189, %v2277
        %2279 = vmatmul.bf16.gmra.mxu0 %v1387
        %v2280 = vpop.f32.mrf.mxu0
        %v2281 = vadd.f32 %v2192, %v2280
        %v2282 = vpop.f32.mrf.mxu0
        %v2283 = vadd.f32 %v2194, %v2282
        %2284 = vmatmul.bf16.gmra.mxu0 %v1394
        %v2285 = vpop.f32.mrf.mxu0
        %v2286 = vadd.f32 %v2197, %v2285
        %v2287 = vpop.f32.mrf.mxu0
        %v2288 = vadd.f32 %v2199, %v2287
        %2289 = vdwg.mxu0
        %2290 = vmatpush.bf16.msra.mxu0 %v1780
        %2291 = vmatpush.bf16.msra.mxu0 %v1779
        %2292 = vmatpush.bf16.msra.mxu0 %v1778
        %2293 = vmatpush.bf16.msra.mxu0 %v1777
        %2294 = vmatpush.bf16.msra.mxu0 %v1776
        %2295 = vmatpush.bf16.msra.mxu0 %v1775
        %2296 = vmatpush.bf16.msra.mxu0 %v1774
        %2297 = vmatpush.bf16.msra.mxu0 %v1773
        %2298 = vmatmul.bf16.gmra.mxu0 %v1290
        %v2299 = vpop.f32.mrf.mxu0
        %v2300 = vadd.f32 %v2211, %v2299
        %v2301 = vpop.f32.mrf.mxu0
        %v2302 = vadd.f32 %v2213, %v2301
        %2303 = vmatmul.bf16.gmra.mxu0 %v1297
        %v2304 = vpop.f32.mrf.mxu0
        %v2305 = vadd.f32 %v2216, %v2304
        %v2306 = vpop.f32.mrf.mxu0
        %v2307 = vadd.f32 %v2218, %v2306
        %2308 = vmatmul.bf16.gmra.mxu0 %v1304
        %v2309 = vpop.f32.mrf.mxu0
        %v2310 = vadd.f32 %v2221, %v2309
        %v2311 = vpop.f32.mrf.mxu0
        %v2312 = vadd.f32 %v2223, %v2311
        %2313 = vmatmul.bf16.gmra.mxu0 %v1311
        %v2314 = vpop.f32.mrf.mxu0
        %v2315 = vadd.f32 %v2226, %v2314
        %v2316 = vpop.f32.mrf.mxu0
        %v2317 = vadd.f32 %v2228, %v2316
        %2318 = vmatmul.bf16.gmra.mxu0 %v1318
        %v2319 = vpop.f32.mrf.mxu0
        %v2320 = vadd.f32 %v2231, %v2319
        %v2321 = vpop.f32.mrf.mxu0
        %v2322 = vadd.f32 %v2233, %v2321
        %2323 = vmatmul.bf16.gmra.mxu0 %v1325
        %v2324 = vpop.f32.mrf.mxu0
        %v2325 = vadd.f32 %v2236, %v2324
        %v2326 = vpop.f32.mrf.mxu0
        %v2327 = vadd.f32 %v2238, %v2326
        %2328 = vmatmul.bf16.gmra.mxu0 %v1332
        %v2329 = vpop.f32.mrf.mxu0
        %v2330 = vadd.f32 %v2241, %v2329
        %v2331 = vpop.f32.mrf.mxu0
        %v2332 = vadd.f32 %v2243, %v2331
        %2333 = vmatmul.bf16.gmra.mxu0 %v1339
        %v2334 = vpop.f32.mrf.mxu0
        %v2335 = vadd.f32 %v2246, %v2334
        %v2336 = vpop.f32.mrf.mxu0
        %v2337 = vadd.f32 %v2248, %v2336
        %2338 = vmatmul.bf16.gmra.mxu0 %v1346
        %v2339 = vpop.f32.mrf.mxu0
        %v2340 = vadd.f32 %v2251, %v2339
        %v2341 = vpop.f32.mrf.mxu0
        %v2342 = vadd.f32 %v2253, %v2341
        %2343 = vmatmul.bf16.gmra.mxu0 %v1353
        %v2344 = vpop.f32.mrf.mxu0
        %v2345 = vadd.f32 %v2256, %v2344
        %v2346 = vpop.f32.mrf.mxu0
        %v2347 = vadd.f32 %v2258, %v2346
        %2348 = vmatmul.bf16.gmra.mxu0 %v1360
        %v2349 = vpop.f32.mrf.mxu0
        %v2350 = vadd.f32 %v2261, %v2349
        %v2351 = vpop.f32.mrf.mxu0
        %v2352 = vadd.f32 %v2263, %v2351
        %2353 = vmatmul.bf16.gmra.mxu0 %v1367
        %v2354 = vpop.f32.mrf.mxu0
        %v2355 = vadd.f32 %v2266, %v2354
        %v2356 = vpop.f32.mrf.mxu0
        %v2357 = vadd.f32 %v2268, %v2356
        %2358 = vmatmul.bf16.gmra.mxu0 %v1374
        %v2359 = vpop.f32.mrf.mxu0
        %v2360 = vadd.f32 %v2271, %v2359
        %v2361 = vpop.f32.mrf.mxu0
        %v2362 = vadd.f32 %v2273, %v2361
        %2363 = vmatmul.bf16.gmra.mxu0 %v1381
        %v2364 = vpop.f32.mrf.mxu0
        %v2365 = vadd.f32 %v2276, %v2364
        %v2366 = vpop.f32.mrf.mxu0
        %v2367 = vadd.f32 %v2278, %v2366
        %2368 = vmatmul.bf16.gmra.mxu0 %v1388
        %v2369 = vpop.f32.mrf.mxu0
        %v2370 = vadd.f32 %v2281, %v2369
        %v2371 = vpop.f32.mrf.mxu0
        %v2372 = vadd.f32 %v2283, %v2371
        %2373 = vmatmul.bf16.gmra.mxu0 %v1395
        %v2374 = vpop.f32.mrf.mxu0
        %v2375 = vadd.f32 %v2286, %v2374
        %v2376 = vpop.f32.mrf.mxu0
        %v2377 = vadd.f32 %v2288, %v2376
        %2378 = vdwg.mxu0
        %2379 = vmatpush.bf16.msra.mxu0 %v1788
        %2380 = vmatpush.bf16.msra.mxu0 %v1787
        %2381 = vmatpush.bf16.msra.mxu0 %v1786
        %2382 = vmatpush.bf16.msra.mxu0 %v1785
        %2383 = vmatpush.bf16.msra.mxu0 %v1784
        %2384 = vmatpush.bf16.msra.mxu0 %v1783
        %2385 = vmatpush.bf16.msra.mxu0 %v1782
        %2386 = vmatpush.bf16.msra.mxu0 %v1781
        %2387 = vmatmul.bf16.gmra.mxu0 %v1291
        %v2388 = vpop.f32.mrf.mxu0
        %v2389 = vadd.f32 %v2300, %v2388
        %v2390 = vpop.f32.mrf.mxu0
        %v2391 = vadd.f32 %v2302, %v2390
        %2392 = vmatmul.bf16.gmra.mxu0 %v1298
        %v2393 = vpop.f32.mrf.mxu0
        %v2394 = vadd.f32 %v2305, %v2393
        %v2395 = vpop.f32.mrf.mxu0
        %v2396 = vadd.f32 %v2307, %v2395
        %2397 = vmatmul.bf16.gmra.mxu0 %v1305
        %v2398 = vpop.f32.mrf.mxu0
        %v2399 = vadd.f32 %v2310, %v2398
        %v2400 = vpop.f32.mrf.mxu0
        %v2401 = vadd.f32 %v2312, %v2400
        %2402 = vmatmul.bf16.gmra.mxu0 %v1312
        %v2403 = vpop.f32.mrf.mxu0
        %v2404 = vadd.f32 %v2315, %v2403
        %v2405 = vpop.f32.mrf.mxu0
        %v2406 = vadd.f32 %v2317, %v2405
        %2407 = vmatmul.bf16.gmra.mxu0 %v1319
        %v2408 = vpop.f32.mrf.mxu0
        %v2409 = vadd.f32 %v2320, %v2408
        %v2410 = vpop.f32.mrf.mxu0
        %v2411 = vadd.f32 %v2322, %v2410
        %2412 = vmatmul.bf16.gmra.mxu0 %v1326
        %v2413 = vpop.f32.mrf.mxu0
        %v2414 = vadd.f32 %v2325, %v2413
        %v2415 = vpop.f32.mrf.mxu0
        %v2416 = vadd.f32 %v2327, %v2415
        %2417 = vmatmul.bf16.gmra.mxu0 %v1333
        %v2418 = vpop.f32.mrf.mxu0
        %v2419 = vadd.f32 %v2330, %v2418
        %v2420 = vpop.f32.mrf.mxu0
        %v2421 = vadd.f32 %v2332, %v2420
        %2422 = vmatmul.bf16.gmra.mxu0 %v1340
        %v2423 = vpop.f32.mrf.mxu0
        %v2424 = vadd.f32 %v2335, %v2423
        %v2425 = vpop.f32.mrf.mxu0
        %v2426 = vadd.f32 %v2337, %v2425
        %2427 = vmatmul.bf16.gmra.mxu0 %v1347
        %v2428 = vpop.f32.mrf.mxu0
        %v2429 = vadd.f32 %v2340, %v2428
        %v2430 = vpop.f32.mrf.mxu0
        %v2431 = vadd.f32 %v2342, %v2430
        %2432 = vmatmul.bf16.gmra.mxu0 %v1354
        %v2433 = vpop.f32.mrf.mxu0
        %v2434 = vadd.f32 %v2345, %v2433
        %v2435 = vpop.f32.mrf.mxu0
        %v2436 = vadd.f32 %v2347, %v2435
        %2437 = vmatmul.bf16.gmra.mxu0 %v1361
        %v2438 = vpop.f32.mrf.mxu0
        %v2439 = vadd.f32 %v2350, %v2438
        %v2440 = vpop.f32.mrf.mxu0
        %v2441 = vadd.f32 %v2352, %v2440
        %2442 = vmatmul.bf16.gmra.mxu0 %v1368
        %v2443 = vpop.f32.mrf.mxu0
        %v2444 = vadd.f32 %v2355, %v2443
        %v2445 = vpop.f32.mrf.mxu0
        %v2446 = vadd.f32 %v2357, %v2445
        %2447 = vmatmul.bf16.gmra.mxu0 %v1375
        %v2448 = vpop.f32.mrf.mxu0
        %v2449 = vadd.f32 %v2360, %v2448
        %v2450 = vpop.f32.mrf.mxu0
        %v2451 = vadd.f32 %v2362, %v2450
        %2452 = vmatmul.bf16.gmra.mxu0 %v1382
        %v2453 = vpop.f32.mrf.mxu0
        %v2454 = vadd.f32 %v2365, %v2453
        %v2455 = vpop.f32.mrf.mxu0
        %v2456 = vadd.f32 %v2367, %v2455
        %2457 = vmatmul.bf16.gmra.mxu0 %v1389
        %v2458 = vpop.f32.mrf.mxu0
        %v2459 = vadd.f32 %v2370, %v2458
        %v2460 = vpop.f32.mrf.mxu0
        %v2461 = vadd.f32 %v2372, %v2460
        %2462 = vmatmul.bf16.gmra.mxu0 %v1396
        %v2463 = vpop.f32.mrf.mxu0
        %v2464 = vadd.f32 %v2375, %v2463
        %v2465 = vpop.f32.mrf.mxu0
        %v2466 = vadd.f32 %v2377, %v2465
        %2467 = vdwg.mxu0
        %v2468 = vmax.f32 %v2389, 0.0
        %v2469 = vmax.f32 %v2391, 0.0
        %v2470 = vmax.f32 %v2394, 0.0
        %v2471 = vmax.f32 %v2396, 0.0
        %v2472 = vmax.f32 %v2399, 0.0
        %v2473 = vmax.f32 %v2401, 0.0
        %v2474 = vmax.f32 %v2404, 0.0
        %v2475 = vmax.f32 %v2406, 0.0
        %v2476 = vmax.f32 %v2409, 0.0
        %v2477 = vmax.f32 %v2411, 0.0
        %v2478 = vmax.f32 %v2414, 0.0
        %v2479 = vmax.f32 %v2416, 0.0
        %v2480 = vmax.f32 %v2419, 0.0
        %v2481 = vmax.f32 %v2421, 0.0
        %v2482 = vmax.f32 %v2424, 0.0
        %v2483 = vmax.f32 %v2426, 0.0
        %v2484 = vmax.f32 %v2429, 0.0
        %v2485 = vmax.f32 %v2431, 0.0
        %v2486 = vmax.f32 %v2434, 0.0
        %v2487 = vmax.f32 %v2436, 0.0
        %v2488 = vmax.f32 %v2439, 0.0
        %v2489 = vmax.f32 %v2441, 0.0
        %v2490 = vmax.f32 %v2444, 0.0
        %v2491 = vmax.f32 %v2446, 0.0
        %v2492 = vmax.f32 %v2449, 0.0
        %v2493 = vmax.f32 %v2451, 0.0
        %v2494 = vmax.f32 %v2454, 0.0
        %v2495 = vmax.f32 %v2456, 0.0
        %v2496 = vmax.f32 %v2459, 0.0
        %v2497 = vmax.f32 %v2461, 0.0
        %v2498 = vmax.f32 %v2464, 0.0
        %v2499 = vmax.f32 %v2466, 0.0
        %v2500 = vpack.c.bf16 %v2469, %v2468
        %v2501 = vpack.c.bf16 %v2471, %v2470
        %v2502 = vpack.c.bf16 %v2473, %v2472
        %v2503 = vpack.c.bf16 %v2475, %v2474
        %v2504 = vpack.c.bf16 %v2477, %v2476
        %v2505 = vpack.c.bf16 %v2479, %v2478
        %v2506 = vpack.c.bf16 %v2481, %v2480
        %v2507 = vpack.c.bf16 %v2483, %v2482
        %v2508 = vpack.c.bf16 %v2485, %v2484
        %v2509 = vpack.c.bf16 %v2487, %v2486
        %v2510 = vpack.c.bf16 %v2489, %v2488
        %v2511 = vpack.c.bf16 %v2491, %v2490
        %v2512 = vpack.c.bf16 %v2493, %v2492
        %v2513 = vpack.c.bf16 %v2495, %v2494
        %v2514 = vpack.c.bf16 %v2497, %v2496
        %v2515 = vpack.c.bf16 %v2499, %v2498
        %v2516 = vld [vmem:[#allocation8] sm:$0xf]
        %v2517 = vld [vmem:[#allocation8 + $0x4] sm:$0xf]
        %v2518 = vld [vmem:[#allocation8 + $0x8] sm:$0xf]
        %v2519 = vld [vmem:[#allocation8 + $0xc] sm:$0xf]
        %v2520 = vld [vmem:[#allocation8 + $0x10] sm:$0xf]
        %v2521 = vld [vmem:[#allocation8 + $0x14] sm:$0xf]
        %v2522 = vld [vmem:[#allocation8 + $0x18] sm:$0xf]
        %v2523 = vld [vmem:[#allocation8 + $0x1c] sm:$0xf]
        %v2524 = vld [vmem:[#allocation8 + $0x20] sm:$0xf]
        %v2525 = vld [vmem:[#allocation8 + $0x24] sm:$0xf]
        %v2526 = vld [vmem:[#allocation8 + $0x28] sm:$0xf]
        %v2527 = vld [vmem:[#allocation8 + $0x2c] sm:$0xf]
        %v2528 = vld [vmem:[#allocation8 + $0x30] sm:$0xf]
        %v2529 = vld [vmem:[#allocation8 + $0x34] sm:$0xf]
        %v2530 = vld [vmem:[#allocation8 + $0x38] sm:$0xf]
        %v2531 = vld [vmem:[#allocation8 + $0x3c] sm:$0xf]
        %v2532 = vld [vmem:[#allocation10] sm:$0x1]
        %v2534 = vperm.slane %v2532, 0
        %v2552 = vunpack.c.l.b16 %v2516
        %v2553 = vunpack.c.l.b16 %v2517
        %v2554 = vunpack.c.l.b16 %v2518
        %v2555 = vunpack.c.l.b16 %v2519
        %v2556 = vunpack.c.l.b16 %v2520
        %v2557 = vunpack.c.l.b16 %v2521
        %v2558 = vunpack.c.l.b16 %v2522
        %v2559 = vunpack.c.l.b16 %v2523
        %v2560 = vunpack.c.l.b16 %v2524
        %v2561 = vunpack.c.l.b16 %v2525
        %v2562 = vunpack.c.l.b16 %v2526
        %v2563 = vunpack.c.l.b16 %v2527
        %v2564 = vunpack.c.l.b16 %v2528
        %v2565 = vunpack.c.l.b16 %v2529
        %v2566 = vunpack.c.l.b16 %v2530
        %v2567 = vunpack.c.l.b16 %v2531
        %v2568 = vpack.c.b16 %v2553, %v2552
        %v2569 = vpack.c.b16 %v2555, %v2554
        %v2570 = vpack.c.b16 %v2557, %v2556
        %v2571 = vpack.c.b16 %v2559, %v2558
        %v2572 = vpack.c.b16 %v2561, %v2560
        %v2573 = vpack.c.b16 %v2563, %v2562
        %v2574 = vpack.c.b16 %v2565, %v2564
        %v2575 = vpack.c.b16 %v2567, %v2566
        %2584 = vmatpush.bf16.msra.mxu0 %v2575
        %2585 = vmatpush.bf16.msra.mxu0 %v2574
        %2586 = vmatpush.bf16.msra.mxu0 %v2573
        %2587 = vmatpush.bf16.msra.mxu0 %v2572
        %2588 = vmatpush.bf16.msra.mxu0 %v2571
        %2589 = vmatpush.bf16.msra.mxu0 %v2570
        %2590 = vmatpush.bf16.msra.mxu0 %v2569
        %2591 = vmatpush.bf16.msra.mxu0 %v2568
        %2592 = vmatmul.bf16.gmra.mxu0 %v2500
        %v2593 = vpop.f32.mrf.mxu0
        %v2594 = vadd.f32 %v2534, %v2593
        %v2595 = vpop.f32.mrf.mxu0
        %v2596 = vadd.f32 %v2534, %v2595
        %2597 = vmatmul.bf16.gmra.mxu0 %v2501
        %v2598 = vpop.f32.mrf.mxu0
        %v2599 = vadd.f32 %v2534, %v2598
        %v2600 = vpop.f32.mrf.mxu0
        %v2601 = vadd.f32 %v2534, %v2600
        %2602 = vmatmul.bf16.gmra.mxu0 %v2502
        %v2603 = vpop.f32.mrf.mxu0
        %v2604 = vadd.f32 %v2534, %v2603
        %v2605 = vpop.f32.mrf.mxu0
        %v2606 = vadd.f32 %v2534, %v2605
        %2607 = vmatmul.bf16.gmra.mxu0 %v2503
        %v2608 = vpop.f32.mrf.mxu0
        %v2609 = vadd.f32 %v2534, %v2608
        %v2610 = vpop.f32.mrf.mxu0
        %v2611 = vadd.f32 %v2534, %v2610
        %2612 = vmatmul.bf16.gmra.mxu0 %v2504
        %v2613 = vpop.f32.mrf.mxu0
        %v2614 = vadd.f32 %v2534, %v2613
        %v2615 = vpop.f32.mrf.mxu0
        %v2616 = vadd.f32 %v2534, %v2615
        %2617 = vmatmul.bf16.gmra.mxu0 %v2505
        %v2618 = vpop.f32.mrf.mxu0
        %v2619 = vadd.f32 %v2534, %v2618
        %v2620 = vpop.f32.mrf.mxu0
        %v2621 = vadd.f32 %v2534, %v2620
        %2622 = vmatmul.bf16.gmra.mxu0 %v2506
        %v2623 = vpop.f32.mrf.mxu0
        %v2624 = vadd.f32 %v2534, %v2623
        %v2625 = vpop.f32.mrf.mxu0
        %v2626 = vadd.f32 %v2534, %v2625
        %2627 = vmatmul.bf16.gmra.mxu0 %v2507
        %v2628 = vpop.f32.mrf.mxu0
        %v2629 = vadd.f32 %v2534, %v2628
        %v2630 = vpop.f32.mrf.mxu0
        %v2631 = vadd.f32 %v2534, %v2630
        %2632 = vmatmul.bf16.gmra.mxu0 %v2508
        %v2633 = vpop.f32.mrf.mxu0
        %v2634 = vadd.f32 %v2534, %v2633
        %v2635 = vpop.f32.mrf.mxu0
        %v2636 = vadd.f32 %v2534, %v2635
        %2637 = vmatmul.bf16.gmra.mxu0 %v2509
        %v2638 = vpop.f32.mrf.mxu0
        %v2639 = vadd.f32 %v2534, %v2638
        %v2640 = vpop.f32.mrf.mxu0
        %v2641 = vadd.f32 %v2534, %v2640
        %2642 = vmatmul.bf16.gmra.mxu0 %v2510
        %v2643 = vpop.f32.mrf.mxu0
        %v2644 = vadd.f32 %v2534, %v2643
        %v2645 = vpop.f32.mrf.mxu0
        %v2646 = vadd.f32 %v2534, %v2645
        %2647 = vmatmul.bf16.gmra.mxu0 %v2511
        %v2648 = vpop.f32.mrf.mxu0
        %v2649 = vadd.f32 %v2534, %v2648
        %v2650 = vpop.f32.mrf.mxu0
        %v2651 = vadd.f32 %v2534, %v2650
        %2652 = vmatmul.bf16.gmra.mxu0 %v2512
        %v2653 = vpop.f32.mrf.mxu0
        %v2654 = vadd.f32 %v2534, %v2653
        %v2655 = vpop.f32.mrf.mxu0
        %v2656 = vadd.f32 %v2534, %v2655
        %2657 = vmatmul.bf16.gmra.mxu0 %v2513
        %v2658 = vpop.f32.mrf.mxu0
        %v2659 = vadd.f32 %v2534, %v2658
        %v2660 = vpop.f32.mrf.mxu0
        %v2661 = vadd.f32 %v2534, %v2660
        %2662 = vmatmul.bf16.gmra.mxu0 %v2514
        %v2663 = vpop.f32.mrf.mxu0
        %v2664 = vadd.f32 %v2534, %v2663
        %v2665 = vpop.f32.mrf.mxu0
        %v2666 = vadd.f32 %v2534, %v2665
        %2667 = vmatmul.bf16.gmra.mxu0 %v2515
        %v2668 = vpop.f32.mrf.mxu0
        %v2669 = vadd.f32 %v2534, %v2668
        %v2670 = vpop.f32.mrf.mxu0
        %v2671 = vadd.f32 %v2534, %v2670
        %2672 = vdwg.mxu0
        %v2673 = vmax.f32 %v2594, 0.0
        %v2674 = vmax.f32 %v2596, 0.0
        %v2675 = vmax.f32 %v2599, 0.0
        %v2676 = vmax.f32 %v2601, 0.0
        %v2677 = vmax.f32 %v2604, 0.0
        %v2678 = vmax.f32 %v2606, 0.0
        %v2679 = vmax.f32 %v2609, 0.0
        %v2680 = vmax.f32 %v2611, 0.0
        %v2681 = vmax.f32 %v2614, 0.0
        %v2682 = vmax.f32 %v2616, 0.0
        %v2683 = vmax.f32 %v2619, 0.0
        %v2684 = vmax.f32 %v2621, 0.0
        %v2685 = vmax.f32 %v2624, 0.0
        %v2686 = vmax.f32 %v2626, 0.0
        %v2687 = vmax.f32 %v2629, 0.0
        %v2688 = vmax.f32 %v2631, 0.0
        %v2689 = vmax.f32 %v2634, 0.0
        %v2690 = vmax.f32 %v2636, 0.0
        %v2691 = vmax.f32 %v2639, 0.0
        %v2692 = vmax.f32 %v2641, 0.0
        %v2693 = vmax.f32 %v2644, 0.0
        %v2694 = vmax.f32 %v2646, 0.0
        %v2695 = vmax.f32 %v2649, 0.0
        %v2696 = vmax.f32 %v2651, 0.0
        %v2697 = vmax.f32 %v2654, 0.0
        %v2698 = vmax.f32 %v2656, 0.0
        %v2699 = vmax.f32 %v2659, 0.0
        %v2700 = vmax.f32 %v2661, 0.0
        %v2701 = vmax.f32 %v2664, 0.0
        %v2702 = vmax.f32 %v2666, 0.0
        %v2703 = vmax.f32 %v2669, 0.0
        %v2704 = vmax.f32 %v2671, 0.0
        %v2705 = vpack.c.bf16 %v2674, %v2673
        %v2706 = vpack.c.bf16 %v2676, %v2675
        %v2707 = vpack.c.bf16 %v2678, %v2677
        %v2708 = vpack.c.bf16 %v2680, %v2679
        %v2709 = vpack.c.bf16 %v2682, %v2681
        %v2710 = vpack.c.bf16 %v2684, %v2683
        %v2711 = vpack.c.bf16 %v2686, %v2685
        %v2712 = vpack.c.bf16 %v2688, %v2687
        %v2713 = vpack.c.bf16 %v2690, %v2689
        %v2714 = vpack.c.bf16 %v2692, %v2691
        %v2715 = vpack.c.bf16 %v2694, %v2693
        %v2716 = vpack.c.bf16 %v2696, %v2695
        %v2717 = vpack.c.bf16 %v2698, %v2697
        %v2718 = vpack.c.bf16 %v2700, %v2699
        %v2719 = vpack.c.bf16 %v2702, %v2701
        %v2720 = vpack.c.bf16 %v2704, %v2703
        %v2721 = vld [vmem:[#allocation11] sm:$0xf]
        %v2722 = vld [vmem:[#allocation11 + $0x4] sm:$0xf]
        %v2723 = vld [vmem:[#allocation11 + $0x8] sm:$0xf]
        %v2724 = vld [vmem:[#allocation11 + $0xc] sm:$0xf]
        %v2725 = vld [vmem:[#allocation11 + $0x10] sm:$0xf]
        %v2726 = vld [vmem:[#allocation11 + $0x14] sm:$0xf]
        %v2727 = vld [vmem:[#allocation11 + $0x18] sm:$0xf]
        %v2728 = vld [vmem:[#allocation11 + $0x1c] sm:$0xf]
        %v2729 = vld [vmem:[#allocation11 + $0x20] sm:$0xf]
        %v2730 = vld [vmem:[#allocation11 + $0x24] sm:$0xf]
        %v2731 = vld [vmem:[#allocation11 + $0x28] sm:$0xf]
        %v2732 = vld [vmem:[#allocation11 + $0x2c] sm:$0xf]
        %v2733 = vld [vmem:[#allocation11 + $0x30] sm:$0xf]
        %v2734 = vld [vmem:[#allocation11 + $0x34] sm:$0xf]
        %v2735 = vld [vmem:[#allocation11 + $0x38] sm:$0xf]
        %v2736 = vld [vmem:[#allocation11 + $0x3c] sm:$0xf]
        %v2737 = vld [vmem:[#allocation13] sm:$0x1]
        %v2739 = vperm.slane %v2737, 0
        %v2757 = vunpack.c.l.b16 %v2721
        %v2758 = vunpack.c.l.b16 %v2722
        %v2759 = vunpack.c.l.b16 %v2723
        %v2760 = vunpack.c.l.b16 %v2724
        %v2761 = vunpack.c.l.b16 %v2725
        %v2762 = vunpack.c.l.b16 %v2726
        %v2763 = vunpack.c.l.b16 %v2727
        %v2764 = vunpack.c.l.b16 %v2728
        %v2765 = vunpack.c.l.b16 %v2729
        %v2766 = vunpack.c.l.b16 %v2730
        %v2767 = vunpack.c.l.b16 %v2731
        %v2768 = vunpack.c.l.b16 %v2732
        %v2769 = vunpack.c.l.b16 %v2733
        %v2770 = vunpack.c.l.b16 %v2734
        %v2771 = vunpack.c.l.b16 %v2735
        %v2772 = vunpack.c.l.b16 %v2736
        %v2773 = vpack.c.b16 %v2758, %v2757
        %v2774 = vpack.c.b16 %v2760, %v2759
        %v2775 = vpack.c.b16 %v2762, %v2761
        %v2776 = vpack.c.b16 %v2764, %v2763
        %v2777 = vpack.c.b16 %v2766, %v2765
        %v2778 = vpack.c.b16 %v2768, %v2767
        %v2779 = vpack.c.b16 %v2770, %v2769
        %v2780 = vpack.c.b16 %v2772, %v2771
        %2789 = vmatpush.bf16.msra.mxu0 %v2780
        %2790 = vmatpush.bf16.msra.mxu0 %v2779
        %2791 = vmatpush.bf16.msra.mxu0 %v2778
        %2792 = vmatpush.bf16.msra.mxu0 %v2777
        %2793 = vmatpush.bf16.msra.mxu0 %v2776
        %2794 = vmatpush.bf16.msra.mxu0 %v2775
        %2795 = vmatpush.bf16.msra.mxu0 %v2774
        %2796 = vmatpush.bf16.msra.mxu0 %v2773
        %2797 = vmatmul.bf16.gmra.mxu0 %v2705
        %v2798 = vpop.f32.mrf.mxu0
        %v2799 = vadd.f32 %v2739, %v2798
        %v2800 = vpop.f32.mrf.mxu0
        %v2801 = vadd.f32 %v2739, %v2800
        %2802 = vmatmul.bf16.gmra.mxu0 %v2706
        %v2803 = vpop.f32.mrf.mxu0
        %v2804 = vadd.f32 %v2739, %v2803
        %v2805 = vpop.f32.mrf.mxu0
        %v2806 = vadd.f32 %v2739, %v2805
        %2807 = vmatmul.bf16.gmra.mxu0 %v2707
        %v2808 = vpop.f32.mrf.mxu0
        %v2809 = vadd.f32 %v2739, %v2808
        %v2810 = vpop.f32.mrf.mxu0
        %v2811 = vadd.f32 %v2739, %v2810
        %2812 = vmatmul.bf16.gmra.mxu0 %v2708
        %v2813 = vpop.f32.mrf.mxu0
        %v2814 = vadd.f32 %v2739, %v2813
        %v2815 = vpop.f32.mrf.mxu0
        %v2816 = vadd.f32 %v2739, %v2815
        %2817 = vmatmul.bf16.gmra.mxu0 %v2709
        %v2818 = vpop.f32.mrf.mxu0
        %v2819 = vadd.f32 %v2739, %v2818
        %v2820 = vpop.f32.mrf.mxu0
        %v2821 = vadd.f32 %v2739, %v2820
        %2822 = vmatmul.bf16.gmra.mxu0 %v2710
        %v2823 = vpop.f32.mrf.mxu0
        %v2824 = vadd.f32 %v2739, %v2823
        %v2825 = vpop.f32.mrf.mxu0
        %v2826 = vadd.f32 %v2739, %v2825
        %2827 = vmatmul.bf16.gmra.mxu0 %v2711
        %v2828 = vpop.f32.mrf.mxu0
        %v2829 = vadd.f32 %v2739, %v2828
        %v2830 = vpop.f32.mrf.mxu0
        %v2831 = vadd.f32 %v2739, %v2830
        %2832 = vmatmul.bf16.gmra.mxu0 %v2712
        %v2833 = vpop.f32.mrf.mxu0
        %v2834 = vadd.f32 %v2739, %v2833
        %v2835 = vpop.f32.mrf.mxu0
        %v2836 = vadd.f32 %v2739, %v2835
        %2837 = vmatmul.bf16.gmra.mxu0 %v2713
        %v2838 = vpop.f32.mrf.mxu0
        %v2839 = vadd.f32 %v2739, %v2838
        %v2840 = vpop.f32.mrf.mxu0
        %v2841 = vadd.f32 %v2739, %v2840
        %2842 = vmatmul.bf16.gmra.mxu0 %v2714
        %v2843 = vpop.f32.mrf.mxu0
        %v2844 = vadd.f32 %v2739, %v2843
        %v2845 = vpop.f32.mrf.mxu0
        %v2846 = vadd.f32 %v2739, %v2845
        %2847 = vmatmul.bf16.gmra.mxu0 %v2715
        %v2848 = vpop.f32.mrf.mxu0
        %v2849 = vadd.f32 %v2739, %v2848
        %v2850 = vpop.f32.mrf.mxu0
        %v2851 = vadd.f32 %v2739, %v2850
        %2852 = vmatmul.bf16.gmra.mxu0 %v2716
        %v2853 = vpop.f32.mrf.mxu0
        %v2854 = vadd.f32 %v2739, %v2853
        %v2855 = vpop.f32.mrf.mxu0
        %v2856 = vadd.f32 %v2739, %v2855
        %2857 = vmatmul.bf16.gmra.mxu0 %v2717
        %v2858 = vpop.f32.mrf.mxu0
        %v2859 = vadd.f32 %v2739, %v2858
        %v2860 = vpop.f32.mrf.mxu0
        %v2861 = vadd.f32 %v2739, %v2860
        %2862 = vmatmul.bf16.gmra.mxu0 %v2718
        %v2863 = vpop.f32.mrf.mxu0
        %v2864 = vadd.f32 %v2739, %v2863
        %v2865 = vpop.f32.mrf.mxu0
        %v2866 = vadd.f32 %v2739, %v2865
        %2867 = vmatmul.bf16.gmra.mxu0 %v2719
        %v2868 = vpop.f32.mrf.mxu0
        %v2869 = vadd.f32 %v2739, %v2868
        %v2870 = vpop.f32.mrf.mxu0
        %v2871 = vadd.f32 %v2739, %v2870
        %2872 = vmatmul.bf16.gmra.mxu0 %v2720
        %v2873 = vpop.f32.mrf.mxu0
        %v2874 = vadd.f32 %v2739, %v2873
        %v2875 = vpop.f32.mrf.mxu0
        %v2876 = vadd.f32 %v2739, %v2875
        %2877 = vdwg.mxu0
        %2878 = vst [vmem:[%s678] sm:$0xff] %v2799
        %2879 = vst [vmem:[%s678 + $0x8] sm:$0xff] %v2801
        %2880 = vst [vmem:[%s678 + $0x10] sm:$0xff] %v2804
        %2881 = vst [vmem:[%s678 + $0x18] sm:$0xff] %v2806
        %2882 = vst [vmem:[%s678 + $0x20] sm:$0xff] %v2809
        %2883 = vst [vmem:[%s678 + $0x28] sm:$0xff] %v2811
        %2884 = vst [vmem:[%s678 + $0x30] sm:$0xff] %v2814
        %2885 = vst [vmem:[%s678 + $0x38] sm:$0xff] %v2816
        %2886 = vst [vmem:[%s678 + $0x40] sm:$0xff] %v2819
        %2887 = vst [vmem:[%s678 + $0x48] sm:$0xff] %v2821
        %2888 = vst [vmem:[%s678 + $0x50] sm:$0xff] %v2824
        %2889 = vst [vmem:[%s678 + $0x58] sm:$0xff] %v2826
        %2890 = vst [vmem:[%s678 + $0x60] sm:$0xff] %v2829
        %2891 = vst [vmem:[%s678 + $0x68] sm:$0xff] %v2831
        %2892 = vst [vmem:[%s678 + $0x70] sm:$0xff] %v2834
        %2893 = vst [vmem:[%s678 + $0x78] sm:$0xff] %v2836
        %2894 = vst [vmem:[%s678 + $0x80] sm:$0xff] %v2839
        %2895 = vst [vmem:[%s678 + $0x88] sm:$0xff] %v2841
        %2896 = vst [vmem:[%s678 + $0x90] sm:$0xff] %v2844
        %2897 = vst [vmem:[%s678 + $0x98] sm:$0xff] %v2846
        %2898 = vst [vmem:[%s678 + $0xa0] sm:$0xff] %v2849
        %2899 = vst [vmem:[%s678 + $0xa8] sm:$0xff] %v2851
        %2900 = vst [vmem:[%s678 + $0xb0] sm:$0xff] %v2854
        %2901 = vst [vmem:[%s678 + $0xb8] sm:$0xff] %v2856
        %2902 = vst [vmem:[%s678 + $0xc0] sm:$0xff] %v2859
        %2903 = vst [vmem:[%s678 + $0xc8] sm:$0xff] %v2861
        %2904 = vst [vmem:[%s678 + $0xd0] sm:$0xff] %v2864
        %2905 = vst [vmem:[%s678 + $0xd8] sm:$0xff] %v2866
        %2906 = vst [vmem:[%s678 + $0xe0] sm:$0xff] %v2869
        %2907 = vst [vmem:[%s678 + $0xe8] sm:$0xff] %v2871
        %2908 = vst [vmem:[%s678 + $0xf0] sm:$0xff] %v2874
        %2909 = vst [vmem:[%s678 + $0xf8] sm:$0xff] %v2876
        %v2910 = vpack.c.bf16 %v2801, %v2799
        %v2911 = vpack.c.bf16 %v2806, %v2804
        %v2912 = vpack.c.bf16 %v2811, %v2809
        %v2913 = vpack.c.bf16 %v2816, %v2814
        %v2914 = vpack.c.bf16 %v2821, %v2819
        %v2915 = vpack.c.bf16 %v2826, %v2824
        %v2916 = vpack.c.bf16 %v2831, %v2829
        %v2917 = vpack.c.bf16 %v2836, %v2834
        %v2918 = vpack.c.bf16 %v2841, %v2839
        %v2919 = vpack.c.bf16 %v2846, %v2844
        %v2920 = vpack.c.bf16 %v2851, %v2849
        %v2921 = vpack.c.bf16 %v2856, %v2854
        %v2922 = vpack.c.bf16 %v2861, %v2859
        %v2923 = vpack.c.bf16 %v2866, %v2864
        %v2924 = vpack.c.bf16 %v2871, %v2869
        %v2925 = vpack.c.bf16 %v2876, %v2874
        %v2926 = vld [vmem:[#allocation14] sm:$0xf]
        %v2927 = vld [vmem:[#allocation14 + $0x4] sm:$0xf]
        %v2928 = vld [vmem:[#allocation14 + $0x8] sm:$0xf]
        %v2929 = vld [vmem:[#allocation14 + $0xc] sm:$0xf]
        %v2930 = vld [vmem:[#allocation14 + $0x10] sm:$0xf]
        %v2931 = vld [vmem:[#allocation14 + $0x14] sm:$0xf]
        %v2932 = vld [vmem:[#allocation14 + $0x18] sm:$0xf]
        %v2933 = vld [vmem:[#allocation14 + $0x1c] sm:$0xf]
        %v2934 = vld [vmem:[#allocation14 + $0x20] sm:$0xf]
        %v2935 = vld [vmem:[#allocation14 + $0x24] sm:$0xf]
        %v2936 = vld [vmem:[#allocation14 + $0x28] sm:$0xf]
        %v2937 = vld [vmem:[#allocation14 + $0x2c] sm:$0xf]
        %v2938 = vld [vmem:[#allocation14 + $0x30] sm:$0xf]
        %v2939 = vld [vmem:[#allocation14 + $0x34] sm:$0xf]
        %v2940 = vld [vmem:[#allocation14 + $0x38] sm:$0xf]
        %v2941 = vld [vmem:[#allocation14 + $0x3c] sm:$0xf]
        %v2942 = vld [vmem:[#allocation16] sm:$0x1]
        %v2944 = vperm.slane %v2942, 0
        %v2962 = vunpack.c.l.b16 %v2926
        %v2963 = vunpack.c.l.b16 %v2927
        %v2964 = vunpack.c.l.b16 %v2928
        %v2965 = vunpack.c.l.b16 %v2929
        %v2966 = vunpack.c.l.b16 %v2930
        %v2967 = vunpack.c.l.b16 %v2931
        %v2968 = vunpack.c.l.b16 %v2932
        %v2969 = vunpack.c.l.b16 %v2933
        %v2970 = vunpack.c.l.b16 %v2934
        %v2971 = vunpack.c.l.b16 %v2935
        %v2972 = vunpack.c.l.b16 %v2936
        %v2973 = vunpack.c.l.b16 %v2937
        %v2974 = vunpack.c.l.b16 %v2938
        %v2975 = vunpack.c.l.b16 %v2939
        %v2976 = vunpack.c.l.b16 %v2940
        %v2977 = vunpack.c.l.b16 %v2941
        %v2978 = vpack.c.b16 %v2963, %v2962
        %v2979 = vpack.c.b16 %v2965, %v2964
        %v2980 = vpack.c.b16 %v2967, %v2966
        %v2981 = vpack.c.b16 %v2969, %v2968
        %v2982 = vpack.c.b16 %v2971, %v2970
        %v2983 = vpack.c.b16 %v2973, %v2972
        %v2984 = vpack.c.b16 %v2975, %v2974
        %v2985 = vpack.c.b16 %v2977, %v2976
        %2994 = vmatpush.bf16.msra.mxu0 %v2985
        %2995 = vmatpush.bf16.msra.mxu0 %v2984
        %2996 = vmatpush.bf16.msra.mxu0 %v2983
        %2997 = vmatpush.bf16.msra.mxu0 %v2982
        %2998 = vmatpush.bf16.msra.mxu0 %v2981
        %2999 = vmatpush.bf16.msra.mxu0 %v2980
        %3000 = vmatpush.bf16.msra.mxu0 %v2979
        %3001 = vmatpush.bf16.msra.mxu0 %v2978
        %3002 = vmatmul.bf16.gmra.mxu0 %v2910
        %v3003 = vpop.f32.mrf.mxu0
        %v3004 = vadd.f32 %v2944, %v3003
        %v3005 = vpop.f32.mrf.mxu0
        %v3006 = vadd.f32 %v2944, %v3005
        %3007 = vmatmul.bf16.gmra.mxu0 %v2911
        %v3008 = vpop.f32.mrf.mxu0
        %v3009 = vadd.f32 %v2944, %v3008
        %v3010 = vpop.f32.mrf.mxu0
        %v3011 = vadd.f32 %v2944, %v3010
        %3012 = vmatmul.bf16.gmra.mxu0 %v2912
        %v3013 = vpop.f32.mrf.mxu0
        %v3014 = vadd.f32 %v2944, %v3013
        %v3015 = vpop.f32.mrf.mxu0
        %v3016 = vadd.f32 %v2944, %v3015
        %3017 = vmatmul.bf16.gmra.mxu0 %v2913
        %v3018 = vpop.f32.mrf.mxu0
        %v3019 = vadd.f32 %v2944, %v3018
        %v3020 = vpop.f32.mrf.mxu0
        %v3021 = vadd.f32 %v2944, %v3020
        %3022 = vmatmul.bf16.gmra.mxu0 %v2914
        %v3023 = vpop.f32.mrf.mxu0
        %v3024 = vadd.f32 %v2944, %v3023
        %v3025 = vpop.f32.mrf.mxu0
        %v3026 = vadd.f32 %v2944, %v3025
        %3027 = vmatmul.bf16.gmra.mxu0 %v2915
        %v3028 = vpop.f32.mrf.mxu0
        %v3029 = vadd.f32 %v2944, %v3028
        %v3030 = vpop.f32.mrf.mxu0
        %v3031 = vadd.f32 %v2944, %v3030
        %3032 = vmatmul.bf16.gmra.mxu0 %v2916
        %v3033 = vpop.f32.mrf.mxu0
        %v3034 = vadd.f32 %v2944, %v3033
        %v3035 = vpop.f32.mrf.mxu0
        %v3036 = vadd.f32 %v2944, %v3035
        %3037 = vmatmul.bf16.gmra.mxu0 %v2917
        %v3038 = vpop.f32.mrf.mxu0
        %v3039 = vadd.f32 %v2944, %v3038
        %v3040 = vpop.f32.mrf.mxu0
        %v3041 = vadd.f32 %v2944, %v3040
        %3042 = vmatmul.bf16.gmra.mxu0 %v2918
        %v3043 = vpop.f32.mrf.mxu0
        %v3044 = vadd.f32 %v2944, %v3043
        %v3045 = vpop.f32.mrf.mxu0
        %v3046 = vadd.f32 %v2944, %v3045
        %3047 = vmatmul.bf16.gmra.mxu0 %v2919
        %v3048 = vpop.f32.mrf.mxu0
        %v3049 = vadd.f32 %v2944, %v3048
        %v3050 = vpop.f32.mrf.mxu0
        %v3051 = vadd.f32 %v2944, %v3050
        %3052 = vmatmul.bf16.gmra.mxu0 %v2920
        %v3053 = vpop.f32.mrf.mxu0
        %v3054 = vadd.f32 %v2944, %v3053
        %v3055 = vpop.f32.mrf.mxu0
        %v3056 = vadd.f32 %v2944, %v3055
        %3057 = vmatmul.bf16.gmra.mxu0 %v2921
        %v3058 = vpop.f32.mrf.mxu0
        %v3059 = vadd.f32 %v2944, %v3058
        %v3060 = vpop.f32.mrf.mxu0
        %v3061 = vadd.f32 %v2944, %v3060
        %3062 = vmatmul.bf16.gmra.mxu0 %v2922
        %v3063 = vpop.f32.mrf.mxu0
        %v3064 = vadd.f32 %v2944, %v3063
        %v3065 = vpop.f32.mrf.mxu0
        %v3066 = vadd.f32 %v2944, %v3065
        %3067 = vmatmul.bf16.gmra.mxu0 %v2923
        %v3068 = vpop.f32.mrf.mxu0
        %v3069 = vadd.f32 %v2944, %v3068
        %v3070 = vpop.f32.mrf.mxu0
        %v3071 = vadd.f32 %v2944, %v3070
        %3072 = vmatmul.bf16.gmra.mxu0 %v2924
        %v3073 = vpop.f32.mrf.mxu0
        %v3074 = vadd.f32 %v2944, %v3073
        %v3075 = vpop.f32.mrf.mxu0
        %v3076 = vadd.f32 %v2944, %v3075
        %3077 = vmatmul.bf16.gmra.mxu0 %v2925
        %v3078 = vpop.f32.mrf.mxu0
        %v3079 = vadd.f32 %v2944, %v3078
        %v3080 = vpop.f32.mrf.mxu0
        %v3081 = vadd.f32 %v2944, %v3080
        %3082 = vdwg.mxu0
        %v3083 = vmax.f32 %v3004, 0.0
        %v3084 = vmax.f32 %v3006, 0.0
        %v3085 = vmax.f32 %v3009, 0.0
        %v3086 = vmax.f32 %v3011, 0.0
        %v3087 = vmax.f32 %v3014, 0.0
        %v3088 = vmax.f32 %v3016, 0.0
        %v3089 = vmax.f32 %v3019, 0.0
        %v3090 = vmax.f32 %v3021, 0.0
        %v3091 = vmax.f32 %v3024, 0.0
        %v3092 = vmax.f32 %v3026, 0.0
        %v3093 = vmax.f32 %v3029, 0.0
        %v3094 = vmax.f32 %v3031, 0.0
        %v3095 = vmax.f32 %v3034, 0.0
        %v3096 = vmax.f32 %v3036, 0.0
        %v3097 = vmax.f32 %v3039, 0.0
        %v3098 = vmax.f32 %v3041, 0.0
        %v3099 = vmax.f32 %v3044, 0.0
        %v3100 = vmax.f32 %v3046, 0.0
        %v3101 = vmax.f32 %v3049, 0.0
        %v3102 = vmax.f32 %v3051, 0.0
        %v3103 = vmax.f32 %v3054, 0.0
        %v3104 = vmax.f32 %v3056, 0.0
        %v3105 = vmax.f32 %v3059, 0.0
        %v3106 = vmax.f32 %v3061, 0.0
        %v3107 = vmax.f32 %v3064, 0.0
        %v3108 = vmax.f32 %v3066, 0.0
        %v3109 = vmax.f32 %v3069, 0.0
        %v3110 = vmax.f32 %v3071, 0.0
        %v3111 = vmax.f32 %v3074, 0.0
        %v3112 = vmax.f32 %v3076, 0.0
        %v3113 = vmax.f32 %v3079, 0.0
        %v3114 = vmax.f32 %v3081, 0.0
        %v3115 = vpack.c.bf16 %v3084, %v3083
        %v3116 = vpack.c.bf16 %v3086, %v3085
        %v3117 = vpack.c.bf16 %v3088, %v3087
        %v3118 = vpack.c.bf16 %v3090, %v3089
        %v3119 = vpack.c.bf16 %v3092, %v3091
        %v3120 = vpack.c.bf16 %v3094, %v3093
        %v3121 = vpack.c.bf16 %v3096, %v3095
        %v3122 = vpack.c.bf16 %v3098, %v3097
        %v3123 = vpack.c.bf16 %v3100, %v3099
        %v3124 = vpack.c.bf16 %v3102, %v3101
        %v3125 = vpack.c.bf16 %v3104, %v3103
        %v3126 = vpack.c.bf16 %v3106, %v3105
        %v3127 = vpack.c.bf16 %v3108, %v3107
        %v3128 = vpack.c.bf16 %v3110, %v3109
        %v3129 = vpack.c.bf16 %v3112, %v3111
        %v3130 = vpack.c.bf16 %v3114, %v3113
        %v3131 = vld [vmem:[#allocation17] sm:$0xf]
        %v3132 = vld [vmem:[#allocation17 + $0x4] sm:$0xf]
        %v3133 = vld [vmem:[#allocation17 + $0x8] sm:$0xf]
        %v3134 = vld [vmem:[#allocation17 + $0xc] sm:$0xf]
        %v3135 = vld [vmem:[#allocation17 + $0x10] sm:$0xf]
        %v3136 = vld [vmem:[#allocation17 + $0x14] sm:$0xf]
        %v3137 = vld [vmem:[#allocation17 + $0x18] sm:$0xf]
        %v3138 = vld [vmem:[#allocation17 + $0x1c] sm:$0xf]
        %v3139 = vld [vmem:[#allocation17 + $0x20] sm:$0xf]
        %v3140 = vld [vmem:[#allocation17 + $0x24] sm:$0xf]
        %v3141 = vld [vmem:[#allocation17 + $0x28] sm:$0xf]
        %v3142 = vld [vmem:[#allocation17 + $0x2c] sm:$0xf]
        %v3143 = vld [vmem:[#allocation17 + $0x30] sm:$0xf]
        %v3144 = vld [vmem:[#allocation17 + $0x34] sm:$0xf]
        %v3145 = vld [vmem:[#allocation17 + $0x38] sm:$0xf]
        %v3146 = vld [vmem:[#allocation17 + $0x3c] sm:$0xf]
        %v3147 = vld [vmem:[#allocation19] sm:$0x1]
        %v3149 = vperm.slane %v3147, 0
        %v3167 = vunpack.c.l.b16 %v3131
        %v3168 = vunpack.c.l.b16 %v3132
        %v3169 = vunpack.c.l.b16 %v3133
        %v3170 = vunpack.c.l.b16 %v3134
        %v3171 = vunpack.c.l.b16 %v3135
        %v3172 = vunpack.c.l.b16 %v3136
        %v3173 = vunpack.c.l.b16 %v3137
        %v3174 = vunpack.c.l.b16 %v3138
        %v3175 = vunpack.c.l.b16 %v3139
        %v3176 = vunpack.c.l.b16 %v3140
        %v3177 = vunpack.c.l.b16 %v3141
        %v3178 = vunpack.c.l.b16 %v3142
        %v3179 = vunpack.c.l.b16 %v3143
        %v3180 = vunpack.c.l.b16 %v3144
        %v3181 = vunpack.c.l.b16 %v3145
        %v3182 = vunpack.c.l.b16 %v3146
        %v3183 = vpack.c.b16 %v3168, %v3167
        %v3184 = vpack.c.b16 %v3170, %v3169
        %v3185 = vpack.c.b16 %v3172, %v3171
        %v3186 = vpack.c.b16 %v3174, %v3173
        %v3187 = vpack.c.b16 %v3176, %v3175
        %v3188 = vpack.c.b16 %v3178, %v3177
        %v3189 = vpack.c.b16 %v3180, %v3179
        %v3190 = vpack.c.b16 %v3182, %v3181
        %3199 = vmatpush.bf16.msra.mxu0 %v3190
        %3200 = vmatpush.bf16.msra.mxu0 %v3189
        %3201 = vmatpush.bf16.msra.mxu0 %v3188
        %3202 = vmatpush.bf16.msra.mxu0 %v3187
        %3203 = vmatpush.bf16.msra.mxu0 %v3186
        %3204 = vmatpush.bf16.msra.mxu0 %v3185
        %3205 = vmatpush.bf16.msra.mxu0 %v3184
        %3206 = vmatpush.bf16.msra.mxu0 %v3183
        %3207 = vmatmul.bf16.gmra.mxu0 %v3115
        %v3208 = vpop.f32.mrf.mxu0
        %v3209 = vadd.f32 %v3149, %v3208
        %v3210 = vpop.f32.mrf.mxu0
        %v3211 = vadd.f32 %v3149, %v3210
        %3212 = vmatmul.bf16.gmra.mxu0 %v3116
        %v3213 = vpop.f32.mrf.mxu0
        %v3214 = vadd.f32 %v3149, %v3213
        %v3215 = vpop.f32.mrf.mxu0
        %v3216 = vadd.f32 %v3149, %v3215
        %3217 = vmatmul.bf16.gmra.mxu0 %v3117
        %v3218 = vpop.f32.mrf.mxu0
        %v3219 = vadd.f32 %v3149, %v3218
        %v3220 = vpop.f32.mrf.mxu0
        %v3221 = vadd.f32 %v3149, %v3220
        %3222 = vmatmul.bf16.gmra.mxu0 %v3118
        %v3223 = vpop.f32.mrf.mxu0
        %v3224 = vadd.f32 %v3149, %v3223
        %v3225 = vpop.f32.mrf.mxu0
        %v3226 = vadd.f32 %v3149, %v3225
        %3227 = vmatmul.bf16.gmra.mxu0 %v3119
        %v3228 = vpop.f32.mrf.mxu0
        %v3229 = vadd.f32 %v3149, %v3228
        %v3230 = vpop.f32.mrf.mxu0
        %v3231 = vadd.f32 %v3149, %v3230
        %3232 = vmatmul.bf16.gmra.mxu0 %v3120
        %v3233 = vpop.f32.mrf.mxu0
        %v3234 = vadd.f32 %v3149, %v3233
        %v3235 = vpop.f32.mrf.mxu0
        %v3236 = vadd.f32 %v3149, %v3235
        %3237 = vmatmul.bf16.gmra.mxu0 %v3121
        %v3238 = vpop.f32.mrf.mxu0
        %v3239 = vadd.f32 %v3149, %v3238
        %v3240 = vpop.f32.mrf.mxu0
        %v3241 = vadd.f32 %v3149, %v3240
        %3242 = vmatmul.bf16.gmra.mxu0 %v3122
        %v3243 = vpop.f32.mrf.mxu0
        %v3244 = vadd.f32 %v3149, %v3243
        %v3245 = vpop.f32.mrf.mxu0
        %v3246 = vadd.f32 %v3149, %v3245
        %3247 = vmatmul.bf16.gmra.mxu0 %v3123
        %v3248 = vpop.f32.mrf.mxu0
        %v3249 = vadd.f32 %v3149, %v3248
        %v3250 = vpop.f32.mrf.mxu0
        %v3251 = vadd.f32 %v3149, %v3250
        %3252 = vmatmul.bf16.gmra.mxu0 %v3124
        %v3253 = vpop.f32.mrf.mxu0
        %v3254 = vadd.f32 %v3149, %v3253
        %v3255 = vpop.f32.mrf.mxu0
        %v3256 = vadd.f32 %v3149, %v3255
        %3257 = vmatmul.bf16.gmra.mxu0 %v3125
        %v3258 = vpop.f32.mrf.mxu0
        %v3259 = vadd.f32 %v3149, %v3258
        %v3260 = vpop.f32.mrf.mxu0
        %v3261 = vadd.f32 %v3149, %v3260
        %3262 = vmatmul.bf16.gmra.mxu0 %v3126
        %v3263 = vpop.f32.mrf.mxu0
        %v3264 = vadd.f32 %v3149, %v3263
        %v3265 = vpop.f32.mrf.mxu0
        %v3266 = vadd.f32 %v3149, %v3265
        %3267 = vmatmul.bf16.gmra.mxu0 %v3127
        %v3268 = vpop.f32.mrf.mxu0
        %v3269 = vadd.f32 %v3149, %v3268
        %v3270 = vpop.f32.mrf.mxu0
        %v3271 = vadd.f32 %v3149, %v3270
        %3272 = vmatmul.bf16.gmra.mxu0 %v3128
        %v3273 = vpop.f32.mrf.mxu0
        %v3274 = vadd.f32 %v3149, %v3273
        %v3275 = vpop.f32.mrf.mxu0
        %v3276 = vadd.f32 %v3149, %v3275
        %3277 = vmatmul.bf16.gmra.mxu0 %v3129
        %v3278 = vpop.f32.mrf.mxu0
        %v3279 = vadd.f32 %v3149, %v3278
        %v3280 = vpop.f32.mrf.mxu0
        %v3281 = vadd.f32 %v3149, %v3280
        %3282 = vmatmul.bf16.gmra.mxu0 %v3130
        %v3283 = vpop.f32.mrf.mxu0
        %v3284 = vadd.f32 %v3149, %v3283
        %v3285 = vpop.f32.mrf.mxu0
        %v3286 = vadd.f32 %v3149, %v3285
        %3287 = vdwg.mxu0
        %v3288 = vmax.f32 %v3209, 0.0
        %v3289 = vmax.f32 %v3211, 0.0
        %v3290 = vmax.f32 %v3214, 0.0
        %v3291 = vmax.f32 %v3216, 0.0
        %v3292 = vmax.f32 %v3219, 0.0
        %v3293 = vmax.f32 %v3221, 0.0
        %v3294 = vmax.f32 %v3224, 0.0
        %v3295 = vmax.f32 %v3226, 0.0
        %v3296 = vmax.f32 %v3229, 0.0
        %v3297 = vmax.f32 %v3231, 0.0
        %v3298 = vmax.f32 %v3234, 0.0
        %v3299 = vmax.f32 %v3236, 0.0
        %v3300 = vmax.f32 %v3239, 0.0
        %v3301 = vmax.f32 %v3241, 0.0
        %v3302 = vmax.f32 %v3244, 0.0
        %v3303 = vmax.f32 %v3246, 0.0
        %v3304 = vmax.f32 %v3249, 0.0
        %v3305 = vmax.f32 %v3251, 0.0
        %v3306 = vmax.f32 %v3254, 0.0
        %v3307 = vmax.f32 %v3256, 0.0
        %v3308 = vmax.f32 %v3259, 0.0
        %v3309 = vmax.f32 %v3261, 0.0
        %v3310 = vmax.f32 %v3264, 0.0
        %v3311 = vmax.f32 %v3266, 0.0
        %v3312 = vmax.f32 %v3269, 0.0
        %v3313 = vmax.f32 %v3271, 0.0
        %v3314 = vmax.f32 %v3274, 0.0
        %v3315 = vmax.f32 %v3276, 0.0
        %v3316 = vmax.f32 %v3279, 0.0
        %v3317 = vmax.f32 %v3281, 0.0
        %v3318 = vmax.f32 %v3284, 0.0
        %v3319 = vmax.f32 %v3286, 0.0
        %v3320 = vpack.c.bf16 %v3289, %v3288
        %v3321 = vpack.c.bf16 %v3291, %v3290
        %v3322 = vpack.c.bf16 %v3293, %v3292
        %v3323 = vpack.c.bf16 %v3295, %v3294
        %v3324 = vpack.c.bf16 %v3297, %v3296
        %v3325 = vpack.c.bf16 %v3299, %v3298
        %v3326 = vpack.c.bf16 %v3301, %v3300
        %v3327 = vpack.c.bf16 %v3303, %v3302
        %v3328 = vpack.c.bf16 %v3305, %v3304
        %v3329 = vpack.c.bf16 %v3307, %v3306
        %v3330 = vpack.c.bf16 %v3309, %v3308
        %v3331 = vpack.c.bf16 %v3311, %v3310
        %v3332 = vpack.c.bf16 %v3313, %v3312
        %v3333 = vpack.c.bf16 %v3315, %v3314
        %v3334 = vpack.c.bf16 %v3317, %v3316
        %v3335 = vpack.c.bf16 %v3319, %v3318
        %v3336 = vld [vmem:[#allocation20] sm:$0xff]
        %v3337 = vld [vmem:[#allocation20 + $0x8] sm:$0xff]
        %v3338 = vld [vmem:[#allocation20 + $0x10] sm:$0xff]
        %v3339 = vld [vmem:[#allocation20 + $0x18] sm:$0xf]
        %v3340 = vld [vmem:[#allocation20 + $0x1c] sm:$0xff]
        %v3341 = vld [vmem:[#allocation20 + $0x24] sm:$0xff]
        %v3342 = vld [vmem:[#allocation20 + $0x2c] sm:$0xff]
        %v3343 = vld [vmem:[#allocation20 + $0x34] sm:$0xf]
        %v3344 = vld [vmem:[#allocation20 + $0x38] sm:$0xff]
        %v3345 = vld [vmem:[#allocation20 + $0x40] sm:$0xff]
        %v3346 = vld [vmem:[#allocation20 + $0x48] sm:$0xff]
        %v3347 = vld [vmem:[#allocation20 + $0x50] sm:$0xf]
        %v3348 = vld [vmem:[#allocation20 + $0x54] sm:$0xff]
        %v3349 = vld [vmem:[#allocation20 + $0x5c] sm:$0xff]
        %v3350 = vld [vmem:[#allocation20 + $0x64] sm:$0xff]
        %v3351 = vld [vmem:[#allocation20 + $0x6c] sm:$0xf]
        %v3352 = vld [vmem:[#allocation20 + $0x70] sm:$0xff]
        %v3353 = vld [vmem:[#allocation20 + $0x78] sm:$0xff]
        %v3354 = vld [vmem:[#allocation20 + $0x80] sm:$0xff]
        %v3355 = vld [vmem:[#allocation20 + $0x88] sm:$0xf]
        %v3356 = vld [vmem:[#allocation20 + $0x8c] sm:$0xff]
        %v3357 = vld [vmem:[#allocation20 + $0x94] sm:$0xff]
        %v3358 = vld [vmem:[#allocation20 + $0x9c] sm:$0xff]
        %v3359 = vld [vmem:[#allocation20 + $0xa4] sm:$0xf]
        %v3360 = vld [vmem:[#allocation20 + $0xa8] sm:$0xff]
        %v3361 = vld [vmem:[#allocation20 + $0xb0] sm:$0xff]
        %v3362 = vld [vmem:[#allocation20 + $0xb8] sm:$0xff]
        %v3363 = vld [vmem:[#allocation20 + $0xc0] sm:$0xf]
        %v3364 = vld [vmem:[#allocation20 + $0xc4] sm:$0xff]
        %v3365 = vld [vmem:[#allocation20 + $0xcc] sm:$0xff]
        %v3366 = vld [vmem:[#allocation20 + $0xd4] sm:$0xff]
        %v3367 = vld [vmem:[#allocation20 + $0xdc] sm:$0xf]
        %v3368 = vld [vmem:[#allocation20 + $0xe0] sm:$0xff]
        %v3369 = vld [vmem:[#allocation20 + $0xe8] sm:$0xff]
        %v3370 = vld [vmem:[#allocation20 + $0xf0] sm:$0xff]
        %v3371 = vld [vmem:[#allocation20 + $0xf8] sm:$0xf]
        %v3372 = vld [vmem:[#allocation20 + $0xfc] sm:$0xff]
        %v3373 = vld [vmem:[#allocation20 + $0x104] sm:$0xff]
        %v3374 = vld [vmem:[#allocation20 + $0x10c] sm:$0xff]
        %v3375 = vld [vmem:[#allocation20 + $0x114] sm:$0xf]
        %v3376 = vld [vmem:[#allocation20 + $0x118] sm:$0xff]
        %v3377 = vld [vmem:[#allocation20 + $0x120] sm:$0xff]
        %v3378 = vld [vmem:[#allocation20 + $0x128] sm:$0xff]
        %v3379 = vld [vmem:[#allocation20 + $0x130] sm:$0xf]
        %v3380 = vld [vmem:[#allocation20 + $0x134] sm:$0xff]
        %v3381 = vld [vmem:[#allocation20 + $0x13c] sm:$0xff]
        %v3382 = vld [vmem:[#allocation20 + $0x144] sm:$0xff]
        %v3383 = vld [vmem:[#allocation20 + $0x14c] sm:$0xf]
        %v3384 = vld [vmem:[#allocation20 + $0x150] sm:$0xff]
        %v3385 = vld [vmem:[#allocation20 + $0x158] sm:$0xff]
        %v3386 = vld [vmem:[#allocation20 + $0x160] sm:$0xff]
        %v3387 = vld [vmem:[#allocation20 + $0x168] sm:$0xf]
        %v3388 = vld [vmem:[#allocation20 + $0x16c] sm:$0xff]
        %v3389 = vld [vmem:[#allocation20 + $0x174] sm:$0xff]
        %v3390 = vld [vmem:[#allocation20 + $0x17c] sm:$0xff]
        %v3391 = vld [vmem:[#allocation20 + $0x184] sm:$0xf]
        %v3392 = vld [vmem:[#allocation20 + $0x188] sm:$0xff]
        %v3393 = vld [vmem:[#allocation20 + $0x190] sm:$0xff]
        %v3394 = vld [vmem:[#allocation20 + $0x198] sm:$0xff]
        %v3395 = vld [vmem:[#allocation20 + $0x1a0] sm:$0xf]
        %v3396 = vld [vmem:[#allocation20 + $0x1a4] sm:$0xff]
        %v3397 = vld [vmem:[#allocation20 + $0x1ac] sm:$0xff]
        %v3398 = vld [vmem:[#allocation20 + $0x1b4] sm:$0xff]
        %v3399 = vld [vmem:[#allocation20 + $0x1bc] sm:$0xf]
        %v3400 = vld [vmem:[#allocation22] sm:$0xff]
        %v3402 = vperm.slane %v3400, 0
        %v3403 = vperm.slane %v3400, 1
        %v3404 = vperm.slane %v3400, 2
        %v3405 = vperm.slane %v3400, 3
        %v3406 = vperm.slane %v3400, 4
        %v3407 = vperm.slane %v3400, 5
        %v3408 = vperm.slane %v3400, 6
        %v3480 = vunpack.c.l.b16 %v3336
        %v3481 = vunpack.c.h.b16 %v3336
        %v3482 = vunpack.c.l.b16 %v3337
        %v3483 = vunpack.c.h.b16 %v3337
        %v3484 = vunpack.c.l.b16 %v3338
        %v3485 = vunpack.c.h.b16 %v3338
        %v3486 = vunpack.c.l.b16 %v3339
        %v3487 = vunpack.c.l.b16 %v3340
        %v3488 = vunpack.c.h.b16 %v3340
        %v3489 = vunpack.c.l.b16 %v3341
        %v3490 = vunpack.c.h.b16 %v3341
        %v3491 = vunpack.c.l.b16 %v3342
        %v3492 = vunpack.c.h.b16 %v3342
        %v3493 = vunpack.c.l.b16 %v3343
        %v3494 = vunpack.c.l.b16 %v3344
        %v3495 = vunpack.c.h.b16 %v3344
        %v3496 = vunpack.c.l.b16 %v3345
        %v3497 = vunpack.c.h.b16 %v3345
        %v3498 = vunpack.c.l.b16 %v3346
        %v3499 = vunpack.c.h.b16 %v3346
        %v3500 = vunpack.c.l.b16 %v3347
        %v3501 = vunpack.c.l.b16 %v3348
        %v3502 = vunpack.c.h.b16 %v3348
        %v3503 = vunpack.c.l.b16 %v3349
        %v3504 = vunpack.c.h.b16 %v3349
        %v3505 = vunpack.c.l.b16 %v3350
        %v3506 = vunpack.c.h.b16 %v3350
        %v3507 = vunpack.c.l.b16 %v3351
        %v3508 = vunpack.c.l.b16 %v3352
        %v3509 = vunpack.c.h.b16 %v3352
        %v3510 = vunpack.c.l.b16 %v3353
        %v3511 = vunpack.c.h.b16 %v3353
        %v3512 = vunpack.c.l.b16 %v3354
        %v3513 = vunpack.c.h.b16 %v3354
        %v3514 = vunpack.c.l.b16 %v3355
        %v3515 = vunpack.c.l.b16 %v3356
        %v3516 = vunpack.c.h.b16 %v3356
        %v3517 = vunpack.c.l.b16 %v3357
        %v3518 = vunpack.c.h.b16 %v3357
        %v3519 = vunpack.c.l.b16 %v3358
        %v3520 = vunpack.c.h.b16 %v3358
        %v3521 = vunpack.c.l.b16 %v3359
        %v3522 = vunpack.c.l.b16 %v3360
        %v3523 = vunpack.c.h.b16 %v3360
        %v3524 = vunpack.c.l.b16 %v3361
        %v3525 = vunpack.c.h.b16 %v3361
        %v3526 = vunpack.c.l.b16 %v3362
        %v3527 = vunpack.c.h.b16 %v3362
        %v3528 = vunpack.c.l.b16 %v3363
        %v3529 = vunpack.c.l.b16 %v3364
        %v3530 = vunpack.c.h.b16 %v3364
        %v3531 = vunpack.c.l.b16 %v3365
        %v3532 = vunpack.c.h.b16 %v3365
        %v3533 = vunpack.c.l.b16 %v3366
        %v3534 = vunpack.c.h.b16 %v3366
        %v3535 = vunpack.c.l.b16 %v3367
        %v3536 = vunpack.c.l.b16 %v3368
        %v3537 = vunpack.c.h.b16 %v3368
        %v3538 = vunpack.c.l.b16 %v3369
        %v3539 = vunpack.c.h.b16 %v3369
        %v3540 = vunpack.c.l.b16 %v3370
        %v3541 = vunpack.c.h.b16 %v3370
        %v3542 = vunpack.c.l.b16 %v3371
        %v3543 = vunpack.c.l.b16 %v3372
        %v3544 = vunpack.c.h.b16 %v3372
        %v3545 = vunpack.c.l.b16 %v3373
        %v3546 = vunpack.c.h.b16 %v3373
        %v3547 = vunpack.c.l.b16 %v3374
        %v3548 = vunpack.c.h.b16 %v3374
        %v3549 = vunpack.c.l.b16 %v3375
        %v3550 = vunpack.c.l.b16 %v3376
        %v3551 = vunpack.c.h.b16 %v3376
        %v3552 = vunpack.c.l.b16 %v3377
        %v3553 = vunpack.c.h.b16 %v3377
        %v3554 = vunpack.c.l.b16 %v3378
        %v3555 = vunpack.c.h.b16 %v3378
        %v3556 = vunpack.c.l.b16 %v3379
        %v3557 = vunpack.c.l.b16 %v3380
        %v3558 = vunpack.c.h.b16 %v3380
        %v3559 = vunpack.c.l.b16 %v3381
        %v3560 = vunpack.c.h.b16 %v3381
        %v3561 = vunpack.c.l.b16 %v3382
        %v3562 = vunpack.c.h.b16 %v3382
        %v3563 = vunpack.c.l.b16 %v3383
        %v3564 = vunpack.c.l.b16 %v3384
        %v3565 = vunpack.c.h.b16 %v3384
        %v3566 = vunpack.c.l.b16 %v3385
        %v3567 = vunpack.c.h.b16 %v3385
        %v3568 = vunpack.c.l.b16 %v3386
        %v3569 = vunpack.c.h.b16 %v3386
        %v3570 = vunpack.c.l.b16 %v3387
        %v3571 = vunpack.c.l.b16 %v3388
        %v3572 = vunpack.c.h.b16 %v3388
        %v3573 = vunpack.c.l.b16 %v3389
        %v3574 = vunpack.c.h.b16 %v3389
        %v3575 = vunpack.c.l.b16 %v3390
        %v3576 = vunpack.c.h.b16 %v3390
        %v3577 = vunpack.c.l.b16 %v3391
        %v3578 = vunpack.c.l.b16 %v3392
        %v3579 = vunpack.c.h.b16 %v3392
        %v3580 = vunpack.c.l.b16 %v3393
        %v3581 = vunpack.c.h.b16 %v3393
        %v3582 = vunpack.c.l.b16 %v3394
        %v3583 = vunpack.c.h.b16 %v3394
        %v3584 = vunpack.c.l.b16 %v3395
        %v3585 = vunpack.c.l.b16 %v3396
        %v3586 = vunpack.c.h.b16 %v3396
        %v3587 = vunpack.c.l.b16 %v3397
        %v3588 = vunpack.c.h.b16 %v3397
        %v3589 = vunpack.c.l.b16 %v3398
        %v3590 = vunpack.c.h.b16 %v3398
        %v3591 = vunpack.c.l.b16 %v3399
        %v3592 = vpack.c.b16 %v3487, %v3480
        %v3593 = vpack.c.b16 %v3488, %v3481
        %v3594 = vpack.c.b16 %v3489, %v3482
        %v3595 = vpack.c.b16 %v3490, %v3483
        %v3596 = vpack.c.b16 %v3491, %v3484
        %v3597 = vpack.c.b16 %v3492, %v3485
        %v3598 = vpack.c.b16 %v3493, %v3486
        %v3599 = vpack.c.b16 %v3501, %v3494
        %v3600 = vpack.c.b16 %v3502, %v3495
        %v3601 = vpack.c.b16 %v3503, %v3496
        %v3602 = vpack.c.b16 %v3504, %v3497
        %v3603 = vpack.c.b16 %v3505, %v3498
        %v3604 = vpack.c.b16 %v3506, %v3499
        %v3605 = vpack.c.b16 %v3507, %v3500
        %v3606 = vpack.c.b16 %v3515, %v3508
        %v3607 = vpack.c.b16 %v3516, %v3509
        %v3608 = vpack.c.b16 %v3517, %v3510
        %v3609 = vpack.c.b16 %v3518, %v3511
        %v3610 = vpack.c.b16 %v3519, %v3512
        %v3611 = vpack.c.b16 %v3520, %v3513
        %v3612 = vpack.c.b16 %v3521, %v3514
        %v3613 = vpack.c.b16 %v3529, %v3522
        %v3614 = vpack.c.b16 %v3530, %v3523
        %v3615 = vpack.c.b16 %v3531, %v3524
        %v3616 = vpack.c.b16 %v3532, %v3525
        %v3617 = vpack.c.b16 %v3533, %v3526
        %v3618 = vpack.c.b16 %v3534, %v3527
        %v3619 = vpack.c.b16 %v3535, %v3528
        %v3620 = vpack.c.b16 %v3543, %v3536
        %v3621 = vpack.c.b16 %v3544, %v3537
        %v3622 = vpack.c.b16 %v3545, %v3538
        %v3623 = vpack.c.b16 %v3546, %v3539
        %v3624 = vpack.c.b16 %v3547, %v3540
        %v3625 = vpack.c.b16 %v3548, %v3541
        %v3626 = vpack.c.b16 %v3549, %v3542
        %v3627 = vpack.c.b16 %v3557, %v3550
        %v3628 = vpack.c.b16 %v3558, %v3551
        %v3629 = vpack.c.b16 %v3559, %v3552
        %v3630 = vpack.c.b16 %v3560, %v3553
        %v3631 = vpack.c.b16 %v3561, %v3554
        %v3632 = vpack.c.b16 %v3562, %v3555
        %v3633 = vpack.c.b16 %v3563, %v3556
        %v3634 = vpack.c.b16 %v3571, %v3564
        %v3635 = vpack.c.b16 %v3572, %v3565
        %v3636 = vpack.c.b16 %v3573, %v3566
        %v3637 = vpack.c.b16 %v3574, %v3567
        %v3638 = vpack.c.b16 %v3575, %v3568
        %v3639 = vpack.c.b16 %v3576, %v3569
        %v3640 = vpack.c.b16 %v3577, %v3570
        %v3641 = vpack.c.b16 %v3585, %v3578
        %v3642 = vpack.c.b16 %v3586, %v3579
        %v3643 = vpack.c.b16 %v3587, %v3580
        %v3644 = vpack.c.b16 %v3588, %v3581
        %v3645 = vpack.c.b16 %v3589, %v3582
        %v3646 = vpack.c.b16 %v3590, %v3583
        %v3647 = vpack.c.b16 %v3591, %v3584
        %3704 = vmatpush.bf16.msra.mxu0 %v3641
        %3705 = vmatpush.bf16.msra.mxu0 %v3634
        %3706 = vmatpush.bf16.msra.mxu0 %v3627
        %3707 = vmatpush.bf16.msra.mxu0 %v3620
        %3708 = vmatpush.bf16.msra.mxu0 %v3613
        %3709 = vmatpush.bf16.msra.mxu0 %v3606
        %3710 = vmatpush.bf16.msra.mxu0 %v3599
        %3711 = vmatpush.bf16.msra.mxu0 %v3592
        %3712 = vmatmul.bf16.gmra.mxu0 %v3320
        %v3713 = vpop.f32.mrf.mxu0
        %v3714 = vadd.f32 %v3402, %v3713
        %v3715 = vpop.f32.mrf.mxu0
        %v3716 = vadd.f32 %v3402, %v3715
        %3717 = vmatmul.bf16.gmra.mxu0 %v3321
        %v3718 = vpop.f32.mrf.mxu0
        %v3719 = vadd.f32 %v3402, %v3718
        %v3720 = vpop.f32.mrf.mxu0
        %v3721 = vadd.f32 %v3402, %v3720
        %3722 = vmatmul.bf16.gmra.mxu0 %v3322
        %v3723 = vpop.f32.mrf.mxu0
        %v3724 = vadd.f32 %v3402, %v3723
        %v3725 = vpop.f32.mrf.mxu0
        %v3726 = vadd.f32 %v3402, %v3725
        %3727 = vmatmul.bf16.gmra.mxu0 %v3323
        %v3728 = vpop.f32.mrf.mxu0
        %v3729 = vadd.f32 %v3402, %v3728
        %v3730 = vpop.f32.mrf.mxu0
        %v3731 = vadd.f32 %v3402, %v3730
        %3732 = vmatmul.bf16.gmra.mxu0 %v3324
        %v3733 = vpop.f32.mrf.mxu0
        %v3734 = vadd.f32 %v3402, %v3733
        %v3735 = vpop.f32.mrf.mxu0
        %v3736 = vadd.f32 %v3402, %v3735
        %3737 = vmatmul.bf16.gmra.mxu0 %v3325
        %v3738 = vpop.f32.mrf.mxu0
        %v3739 = vadd.f32 %v3402, %v3738
        %v3740 = vpop.f32.mrf.mxu0
        %v3741 = vadd.f32 %v3402, %v3740
        %3742 = vmatmul.bf16.gmra.mxu0 %v3326
        %v3743 = vpop.f32.mrf.mxu0
        %v3744 = vadd.f32 %v3402, %v3743
        %v3745 = vpop.f32.mrf.mxu0
        %v3746 = vadd.f32 %v3402, %v3745
        %3747 = vmatmul.bf16.gmra.mxu0 %v3327
        %v3748 = vpop.f32.mrf.mxu0
        %v3749 = vadd.f32 %v3402, %v3748
        %v3750 = vpop.f32.mrf.mxu0
        %v3751 = vadd.f32 %v3402, %v3750
        %3752 = vmatmul.bf16.gmra.mxu0 %v3328
        %v3753 = vpop.f32.mrf.mxu0
        %v3754 = vadd.f32 %v3402, %v3753
        %v3755 = vpop.f32.mrf.mxu0
        %v3756 = vadd.f32 %v3402, %v3755
        %3757 = vmatmul.bf16.gmra.mxu0 %v3329
        %v3758 = vpop.f32.mrf.mxu0
        %v3759 = vadd.f32 %v3402, %v3758
        %v3760 = vpop.f32.mrf.mxu0
        %v3761 = vadd.f32 %v3402, %v3760
        %3762 = vmatmul.bf16.gmra.mxu0 %v3330
        %v3763 = vpop.f32.mrf.mxu0
        %v3764 = vadd.f32 %v3402, %v3763
        %v3765 = vpop.f32.mrf.mxu0
        %v3766 = vadd.f32 %v3402, %v3765
        %3767 = vmatmul.bf16.gmra.mxu0 %v3331
        %v3768 = vpop.f32.mrf.mxu0
        %v3769 = vadd.f32 %v3402, %v3768
        %v3770 = vpop.f32.mrf.mxu0
        %v3771 = vadd.f32 %v3402, %v3770
        %3772 = vmatmul.bf16.gmra.mxu0 %v3332
        %v3773 = vpop.f32.mrf.mxu0
        %v3774 = vadd.f32 %v3402, %v3773
        %v3775 = vpop.f32.mrf.mxu0
        %v3776 = vadd.f32 %v3402, %v3775
        %3777 = vmatmul.bf16.gmra.mxu0 %v3333
        %v3778 = vpop.f32.mrf.mxu0
        %v3779 = vadd.f32 %v3402, %v3778
        %v3780 = vpop.f32.mrf.mxu0
        %v3781 = vadd.f32 %v3402, %v3780
        %3782 = vmatmul.bf16.gmra.mxu0 %v3334
        %v3783 = vpop.f32.mrf.mxu0
        %v3784 = vadd.f32 %v3402, %v3783
        %v3785 = vpop.f32.mrf.mxu0
        %v3786 = vadd.f32 %v3402, %v3785
        %3787 = vmatmul.bf16.gmra.mxu0 %v3335
        %v3788 = vpop.f32.mrf.mxu0
        %v3789 = vadd.f32 %v3402, %v3788
        %v3790 = vpop.f32.mrf.mxu0
        %v3791 = vadd.f32 %v3402, %v3790
        %3792 = vdwg.mxu0
        %3793 = vmatpush.bf16.msra.mxu0 %v3642
        %3794 = vmatpush.bf16.msra.mxu0 %v3635
        %3795 = vmatpush.bf16.msra.mxu0 %v3628
        %3796 = vmatpush.bf16.msra.mxu0 %v3621
        %3797 = vmatpush.bf16.msra.mxu0 %v3614
        %3798 = vmatpush.bf16.msra.mxu0 %v3607
        %3799 = vmatpush.bf16.msra.mxu0 %v3600
        %3800 = vmatpush.bf16.msra.mxu0 %v3593
        %3801 = vmatmul.bf16.gmra.mxu0 %v3320
        %v3802 = vpop.f32.mrf.mxu0
        %v3803 = vadd.f32 %v3403, %v3802
        %v3804 = vpop.f32.mrf.mxu0
        %v3805 = vadd.f32 %v3403, %v3804
        %3806 = vmatmul.bf16.gmra.mxu0 %v3321
        %v3807 = vpop.f32.mrf.mxu0
        %v3808 = vadd.f32 %v3403, %v3807
        %v3809 = vpop.f32.mrf.mxu0
        %v3810 = vadd.f32 %v3403, %v3809
        %3811 = vmatmul.bf16.gmra.mxu0 %v3322
        %v3812 = vpop.f32.mrf.mxu0
        %v3813 = vadd.f32 %v3403, %v3812
        %v3814 = vpop.f32.mrf.mxu0
        %v3815 = vadd.f32 %v3403, %v3814
        %3816 = vmatmul.bf16.gmra.mxu0 %v3323
        %v3817 = vpop.f32.mrf.mxu0
        %v3818 = vadd.f32 %v3403, %v3817
        %v3819 = vpop.f32.mrf.mxu0
        %v3820 = vadd.f32 %v3403, %v3819
        %3821 = vmatmul.bf16.gmra.mxu0 %v3324
        %v3822 = vpop.f32.mrf.mxu0
        %v3823 = vadd.f32 %v3403, %v3822
        %v3824 = vpop.f32.mrf.mxu0
        %v3825 = vadd.f32 %v3403, %v3824
        %3826 = vmatmul.bf16.gmra.mxu0 %v3325
        %v3827 = vpop.f32.mrf.mxu0
        %v3828 = vadd.f32 %v3403, %v3827
        %v3829 = vpop.f32.mrf.mxu0
        %v3830 = vadd.f32 %v3403, %v3829
        %3831 = vmatmul.bf16.gmra.mxu0 %v3326
        %v3832 = vpop.f32.mrf.mxu0
        %v3833 = vadd.f32 %v3403, %v3832
        %v3834 = vpop.f32.mrf.mxu0
        %v3835 = vadd.f32 %v3403, %v3834
        %3836 = vmatmul.bf16.gmra.mxu0 %v3327
        %v3837 = vpop.f32.mrf.mxu0
        %v3838 = vadd.f32 %v3403, %v3837
        %v3839 = vpop.f32.mrf.mxu0
        %v3840 = vadd.f32 %v3403, %v3839
        %3841 = vmatmul.bf16.gmra.mxu0 %v3328
        %v3842 = vpop.f32.mrf.mxu0
        %v3843 = vadd.f32 %v3403, %v3842
        %v3844 = vpop.f32.mrf.mxu0
        %v3845 = vadd.f32 %v3403, %v3844
        %3846 = vmatmul.bf16.gmra.mxu0 %v3329
        %v3847 = vpop.f32.mrf.mxu0
        %v3848 = vadd.f32 %v3403, %v3847
        %v3849 = vpop.f32.mrf.mxu0
        %v3850 = vadd.f32 %v3403, %v3849
        %3851 = vmatmul.bf16.gmra.mxu0 %v3330
        %v3852 = vpop.f32.mrf.mxu0
        %v3853 = vadd.f32 %v3403, %v3852
        %v3854 = vpop.f32.mrf.mxu0
        %v3855 = vadd.f32 %v3403, %v3854
        %3856 = vmatmul.bf16.gmra.mxu0 %v3331
        %v3857 = vpop.f32.mrf.mxu0
        %v3858 = vadd.f32 %v3403, %v3857
        %v3859 = vpop.f32.mrf.mxu0
        %v3860 = vadd.f32 %v3403, %v3859
        %3861 = vmatmul.bf16.gmra.mxu0 %v3332
        %v3862 = vpop.f32.mrf.mxu0
        %v3863 = vadd.f32 %v3403, %v3862
        %v3864 = vpop.f32.mrf.mxu0
        %v3865 = vadd.f32 %v3403, %v3864
        %3866 = vmatmul.bf16.gmra.mxu0 %v3333
        %v3867 = vpop.f32.mrf.mxu0
        %v3868 = vadd.f32 %v3403, %v3867
        %v3869 = vpop.f32.mrf.mxu0
        %v3870 = vadd.f32 %v3403, %v3869
        %3871 = vmatmul.bf16.gmra.mxu0 %v3334
        %v3872 = vpop.f32.mrf.mxu0
        %v3873 = vadd.f32 %v3403, %v3872
        %v3874 = vpop.f32.mrf.mxu0
        %v3875 = vadd.f32 %v3403, %v3874
        %3876 = vmatmul.bf16.gmra.mxu0 %v3335
        %v3877 = vpop.f32.mrf.mxu0
        %v3878 = vadd.f32 %v3403, %v3877
        %v3879 = vpop.f32.mrf.mxu0
        %v3880 = vadd.f32 %v3403, %v3879
        %3881 = vdwg.mxu0
        %3882 = vmatpush.bf16.msra.mxu0 %v3643
        %3883 = vmatpush.bf16.msra.mxu0 %v3636
        %3884 = vmatpush.bf16.msra.mxu0 %v3629
        %3885 = vmatpush.bf16.msra.mxu0 %v3622
        %3886 = vmatpush.bf16.msra.mxu0 %v3615
        %3887 = vmatpush.bf16.msra.mxu0 %v3608
        %3888 = vmatpush.bf16.msra.mxu0 %v3601
        %3889 = vmatpush.bf16.msra.mxu0 %v3594
        %3890 = vmatmul.bf16.gmra.mxu0 %v3320
        %v3891 = vpop.f32.mrf.mxu0
        %v3892 = vadd.f32 %v3404, %v3891
        %v3893 = vpop.f32.mrf.mxu0
        %v3894 = vadd.f32 %v3404, %v3893
        %3895 = vmatmul.bf16.gmra.mxu0 %v3321
        %v3896 = vpop.f32.mrf.mxu0
        %v3897 = vadd.f32 %v3404, %v3896
        %v3898 = vpop.f32.mrf.mxu0
        %v3899 = vadd.f32 %v3404, %v3898
        %3900 = vmatmul.bf16.gmra.mxu0 %v3322
        %v3901 = vpop.f32.mrf.mxu0
        %v3902 = vadd.f32 %v3404, %v3901
        %v3903 = vpop.f32.mrf.mxu0
        %v3904 = vadd.f32 %v3404, %v3903
        %3905 = vmatmul.bf16.gmra.mxu0 %v3323
        %v3906 = vpop.f32.mrf.mxu0
        %v3907 = vadd.f32 %v3404, %v3906
        %v3908 = vpop.f32.mrf.mxu0
        %v3909 = vadd.f32 %v3404, %v3908
        %3910 = vmatmul.bf16.gmra.mxu0 %v3324
        %v3911 = vpop.f32.mrf.mxu0
        %v3912 = vadd.f32 %v3404, %v3911
        %v3913 = vpop.f32.mrf.mxu0
        %v3914 = vadd.f32 %v3404, %v3913
        %3915 = vmatmul.bf16.gmra.mxu0 %v3325
        %v3916 = vpop.f32.mrf.mxu0
        %v3917 = vadd.f32 %v3404, %v3916
        %v3918 = vpop.f32.mrf.mxu0
        %v3919 = vadd.f32 %v3404, %v3918
        %3920 = vmatmul.bf16.gmra.mxu0 %v3326
        %v3921 = vpop.f32.mrf.mxu0
        %v3922 = vadd.f32 %v3404, %v3921
        %v3923 = vpop.f32.mrf.mxu0
        %v3924 = vadd.f32 %v3404, %v3923
        %3925 = vmatmul.bf16.gmra.mxu0 %v3327
        %v3926 = vpop.f32.mrf.mxu0
        %v3927 = vadd.f32 %v3404, %v3926
        %v3928 = vpop.f32.mrf.mxu0
        %v3929 = vadd.f32 %v3404, %v3928
        %3930 = vmatmul.bf16.gmra.mxu0 %v3328
        %v3931 = vpop.f32.mrf.mxu0
        %v3932 = vadd.f32 %v3404, %v3931
        %v3933 = vpop.f32.mrf.mxu0
        %v3934 = vadd.f32 %v3404, %v3933
        %3935 = vmatmul.bf16.gmra.mxu0 %v3329
        %v3936 = vpop.f32.mrf.mxu0
        %v3937 = vadd.f32 %v3404, %v3936
        %v3938 = vpop.f32.mrf.mxu0
        %v3939 = vadd.f32 %v3404, %v3938
        %3940 = vmatmul.bf16.gmra.mxu0 %v3330
        %v3941 = vpop.f32.mrf.mxu0
        %v3942 = vadd.f32 %v3404, %v3941
        %v3943 = vpop.f32.mrf.mxu0
        %v3944 = vadd.f32 %v3404, %v3943
        %3945 = vmatmul.bf16.gmra.mxu0 %v3331
        %v3946 = vpop.f32.mrf.mxu0
        %v3947 = vadd.f32 %v3404, %v3946
        %v3948 = vpop.f32.mrf.mxu0
        %v3949 = vadd.f32 %v3404, %v3948
        %3950 = vmatmul.bf16.gmra.mxu0 %v3332
        %v3951 = vpop.f32.mrf.mxu0
        %v3952 = vadd.f32 %v3404, %v3951
        %v3953 = vpop.f32.mrf.mxu0
        %v3954 = vadd.f32 %v3404, %v3953
        %3955 = vmatmul.bf16.gmra.mxu0 %v3333
        %v3956 = vpop.f32.mrf.mxu0
        %v3957 = vadd.f32 %v3404, %v3956
        %v3958 = vpop.f32.mrf.mxu0
        %v3959 = vadd.f32 %v3404, %v3958
        %3960 = vmatmul.bf16.gmra.mxu0 %v3334
        %v3961 = vpop.f32.mrf.mxu0
        %v3962 = vadd.f32 %v3404, %v3961
        %v3963 = vpop.f32.mrf.mxu0
        %v3964 = vadd.f32 %v3404, %v3963
        %3965 = vmatmul.bf16.gmra.mxu0 %v3335
        %v3966 = vpop.f32.mrf.mxu0
        %v3967 = vadd.f32 %v3404, %v3966
        %v3968 = vpop.f32.mrf.mxu0
        %v3969 = vadd.f32 %v3404, %v3968
        %3970 = vdwg.mxu0
        %3971 = vmatpush.bf16.msra.mxu0 %v3644
        %3972 = vmatpush.bf16.msra.mxu0 %v3637
        %3973 = vmatpush.bf16.msra.mxu0 %v3630
        %3974 = vmatpush.bf16.msra.mxu0 %v3623
        %3975 = vmatpush.bf16.msra.mxu0 %v3616
        %3976 = vmatpush.bf16.msra.mxu0 %v3609
        %3977 = vmatpush.bf16.msra.mxu0 %v3602
        %3978 = vmatpush.bf16.msra.mxu0 %v3595
        %3979 = vmatmul.bf16.gmra.mxu0 %v3320
        %v3980 = vpop.f32.mrf.mxu0
        %v3981 = vadd.f32 %v3405, %v3980
        %v3982 = vpop.f32.mrf.mxu0
        %v3983 = vadd.f32 %v3405, %v3982
        %3984 = vmatmul.bf16.gmra.mxu0 %v3321
        %v3985 = vpop.f32.mrf.mxu0
        %v3986 = vadd.f32 %v3405, %v3985
        %v3987 = vpop.f32.mrf.mxu0
        %v3988 = vadd.f32 %v3405, %v3987
        %3989 = vmatmul.bf16.gmra.mxu0 %v3322
        %v3990 = vpop.f32.mrf.mxu0
        %v3991 = vadd.f32 %v3405, %v3990
        %v3992 = vpop.f32.mrf.mxu0
        %v3993 = vadd.f32 %v3405, %v3992
        %3994 = vmatmul.bf16.gmra.mxu0 %v3323
        %v3995 = vpop.f32.mrf.mxu0
        %v3996 = vadd.f32 %v3405, %v3995
        %v3997 = vpop.f32.mrf.mxu0
        %v3998 = vadd.f32 %v3405, %v3997
        %3999 = vmatmul.bf16.gmra.mxu0 %v3324
        %v4000 = vpop.f32.mrf.mxu0
        %v4001 = vadd.f32 %v3405, %v4000
        %v4002 = vpop.f32.mrf.mxu0
        %v4003 = vadd.f32 %v3405, %v4002
        %4004 = vmatmul.bf16.gmra.mxu0 %v3325
        %v4005 = vpop.f32.mrf.mxu0
        %v4006 = vadd.f32 %v3405, %v4005
        %v4007 = vpop.f32.mrf.mxu0
        %v4008 = vadd.f32 %v3405, %v4007
        %4009 = vmatmul.bf16.gmra.mxu0 %v3326
        %v4010 = vpop.f32.mrf.mxu0
        %v4011 = vadd.f32 %v3405, %v4010
        %v4012 = vpop.f32.mrf.mxu0
        %v4013 = vadd.f32 %v3405, %v4012
        %4014 = vmatmul.bf16.gmra.mxu0 %v3327
        %v4015 = vpop.f32.mrf.mxu0
        %v4016 = vadd.f32 %v3405, %v4015
        %v4017 = vpop.f32.mrf.mxu0
        %v4018 = vadd.f32 %v3405, %v4017
        %4019 = vmatmul.bf16.gmra.mxu0 %v3328
        %v4020 = vpop.f32.mrf.mxu0
        %v4021 = vadd.f32 %v3405, %v4020
        %v4022 = vpop.f32.mrf.mxu0
        %v4023 = vadd.f32 %v3405, %v4022
        %4024 = vmatmul.bf16.gmra.mxu0 %v3329
        %v4025 = vpop.f32.mrf.mxu0
        %v4026 = vadd.f32 %v3405, %v4025
        %v4027 = vpop.f32.mrf.mxu0
        %v4028 = vadd.f32 %v3405, %v4027
        %4029 = vmatmul.bf16.gmra.mxu0 %v3330
        %v4030 = vpop.f32.mrf.mxu0
        %v4031 = vadd.f32 %v3405, %v4030
        %v4032 = vpop.f32.mrf.mxu0
        %v4033 = vadd.f32 %v3405, %v4032
        %4034 = vmatmul.bf16.gmra.mxu0 %v3331
        %v4035 = vpop.f32.mrf.mxu0
        %v4036 = vadd.f32 %v3405, %v4035
        %v4037 = vpop.f32.mrf.mxu0
        %v4038 = vadd.f32 %v3405, %v4037
        %4039 = vmatmul.bf16.gmra.mxu0 %v3332
        %v4040 = vpop.f32.mrf.mxu0
        %v4041 = vadd.f32 %v3405, %v4040
        %v4042 = vpop.f32.mrf.mxu0
        %v4043 = vadd.f32 %v3405, %v4042
        %4044 = vmatmul.bf16.gmra.mxu0 %v3333
        %v4045 = vpop.f32.mrf.mxu0
        %v4046 = vadd.f32 %v3405, %v4045
        %v4047 = vpop.f32.mrf.mxu0
        %v4048 = vadd.f32 %v3405, %v4047
        %4049 = vmatmul.bf16.gmra.mxu0 %v3334
        %v4050 = vpop.f32.mrf.mxu0
        %v4051 = vadd.f32 %v3405, %v4050
        %v4052 = vpop.f32.mrf.mxu0
        %v4053 = vadd.f32 %v3405, %v4052
        %4054 = vmatmul.bf16.gmra.mxu0 %v3335
        %v4055 = vpop.f32.mrf.mxu0
        %v4056 = vadd.f32 %v3405, %v4055
        %v4057 = vpop.f32.mrf.mxu0
        %v4058 = vadd.f32 %v3405, %v4057
        %4059 = vdwg.mxu0
        %4060 = vmatpush.bf16.msra.mxu0 %v3645
        %4061 = vmatpush.bf16.msra.mxu0 %v3638
        %4062 = vmatpush.bf16.msra.mxu0 %v3631
        %4063 = vmatpush.bf16.msra.mxu0 %v3624
        %4064 = vmatpush.bf16.msra.mxu0 %v3617
        %4065 = vmatpush.bf16.msra.mxu0 %v3610
        %4066 = vmatpush.bf16.msra.mxu0 %v3603
        %4067 = vmatpush.bf16.msra.mxu0 %v3596
        %4068 = vmatmul.bf16.gmra.mxu0 %v3320
        %v4069 = vpop.f32.mrf.mxu0
        %v4070 = vadd.f32 %v3406, %v4069
        %v4071 = vpop.f32.mrf.mxu0
        %v4072 = vadd.f32 %v3406, %v4071
        %4073 = vmatmul.bf16.gmra.mxu0 %v3321
        %v4074 = vpop.f32.mrf.mxu0
        %v4075 = vadd.f32 %v3406, %v4074
        %v4076 = vpop.f32.mrf.mxu0
        %v4077 = vadd.f32 %v3406, %v4076
        %4078 = vmatmul.bf16.gmra.mxu0 %v3322
        %v4079 = vpop.f32.mrf.mxu0
        %v4080 = vadd.f32 %v3406, %v4079
        %v4081 = vpop.f32.mrf.mxu0
        %v4082 = vadd.f32 %v3406, %v4081
        %4083 = vmatmul.bf16.gmra.mxu0 %v3323
        %v4084 = vpop.f32.mrf.mxu0
        %v4085 = vadd.f32 %v3406, %v4084
        %v4086 = vpop.f32.mrf.mxu0
        %v4087 = vadd.f32 %v3406, %v4086
        %4088 = vmatmul.bf16.gmra.mxu0 %v3324
        %v4089 = vpop.f32.mrf.mxu0
        %v4090 = vadd.f32 %v3406, %v4089
        %v4091 = vpop.f32.mrf.mxu0
        %v4092 = vadd.f32 %v3406, %v4091
        %4093 = vmatmul.bf16.gmra.mxu0 %v3325
        %v4094 = vpop.f32.mrf.mxu0
        %v4095 = vadd.f32 %v3406, %v4094
        %v4096 = vpop.f32.mrf.mxu0
        %v4097 = vadd.f32 %v3406, %v4096
        %4098 = vmatmul.bf16.gmra.mxu0 %v3326
        %v4099 = vpop.f32.mrf.mxu0
        %v4100 = vadd.f32 %v3406, %v4099
        %v4101 = vpop.f32.mrf.mxu0
        %v4102 = vadd.f32 %v3406, %v4101
        %4103 = vmatmul.bf16.gmra.mxu0 %v3327
        %v4104 = vpop.f32.mrf.mxu0
        %v4105 = vadd.f32 %v3406, %v4104
        %v4106 = vpop.f32.mrf.mxu0
        %v4107 = vadd.f32 %v3406, %v4106
        %4108 = vmatmul.bf16.gmra.mxu0 %v3328
        %v4109 = vpop.f32.mrf.mxu0
        %v4110 = vadd.f32 %v3406, %v4109
        %v4111 = vpop.f32.mrf.mxu0
        %v4112 = vadd.f32 %v3406, %v4111
        %4113 = vmatmul.bf16.gmra.mxu0 %v3329
        %v4114 = vpop.f32.mrf.mxu0
        %v4115 = vadd.f32 %v3406, %v4114
        %v4116 = vpop.f32.mrf.mxu0
        %v4117 = vadd.f32 %v3406, %v4116
        %4118 = vmatmul.bf16.gmra.mxu0 %v3330
        %v4119 = vpop.f32.mrf.mxu0
        %v4120 = vadd.f32 %v3406, %v4119
        %v4121 = vpop.f32.mrf.mxu0
        %v4122 = vadd.f32 %v3406, %v4121
        %4123 = vmatmul.bf16.gmra.mxu0 %v3331
        %v4124 = vpop.f32.mrf.mxu0
        %v4125 = vadd.f32 %v3406, %v4124
        %v4126 = vpop.f32.mrf.mxu0
        %v4127 = vadd.f32 %v3406, %v4126
        %4128 = vmatmul.bf16.gmra.mxu0 %v3332
        %v4129 = vpop.f32.mrf.mxu0
        %v4130 = vadd.f32 %v3406, %v4129
        %v4131 = vpop.f32.mrf.mxu0
        %v4132 = vadd.f32 %v3406, %v4131
        %4133 = vmatmul.bf16.gmra.mxu0 %v3333
        %v4134 = vpop.f32.mrf.mxu0
        %v4135 = vadd.f32 %v3406, %v4134
        %v4136 = vpop.f32.mrf.mxu0
        %v4137 = vadd.f32 %v3406, %v4136
        %4138 = vmatmul.bf16.gmra.mxu0 %v3334
        %v4139 = vpop.f32.mrf.mxu0
        %v4140 = vadd.f32 %v3406, %v4139
        %v4141 = vpop.f32.mrf.mxu0
        %v4142 = vadd.f32 %v3406, %v4141
        %4143 = vmatmul.bf16.gmra.mxu0 %v3335
        %v4144 = vpop.f32.mrf.mxu0
        %v4145 = vadd.f32 %v3406, %v4144
        %v4146 = vpop.f32.mrf.mxu0
        %v4147 = vadd.f32 %v3406, %v4146
        %4148 = vdwg.mxu0
        %4149 = vmatpush.bf16.msra.mxu0 %v3646
        %4150 = vmatpush.bf16.msra.mxu0 %v3639
        %4151 = vmatpush.bf16.msra.mxu0 %v3632
        %4152 = vmatpush.bf16.msra.mxu0 %v3625
        %4153 = vmatpush.bf16.msra.mxu0 %v3618
        %4154 = vmatpush.bf16.msra.mxu0 %v3611
        %4155 = vmatpush.bf16.msra.mxu0 %v3604
        %4156 = vmatpush.bf16.msra.mxu0 %v3597
        %4157 = vmatmul.bf16.gmra.mxu0 %v3320
        %v4158 = vpop.f32.mrf.mxu0
        %v4159 = vadd.f32 %v3407, %v4158
        %v4160 = vpop.f32.mrf.mxu0
        %v4161 = vadd.f32 %v3407, %v4160
        %4162 = vmatmul.bf16.gmra.mxu0 %v3321
        %v4163 = vpop.f32.mrf.mxu0
        %v4164 = vadd.f32 %v3407, %v4163
        %v4165 = vpop.f32.mrf.mxu0
        %v4166 = vadd.f32 %v3407, %v4165
        %4167 = vmatmul.bf16.gmra.mxu0 %v3322
        %v4168 = vpop.f32.mrf.mxu0
        %v4169 = vadd.f32 %v3407, %v4168
        %v4170 = vpop.f32.mrf.mxu0
        %v4171 = vadd.f32 %v3407, %v4170
        %4172 = vmatmul.bf16.gmra.mxu0 %v3323
        %v4173 = vpop.f32.mrf.mxu0
        %v4174 = vadd.f32 %v3407, %v4173
        %v4175 = vpop.f32.mrf.mxu0
        %v4176 = vadd.f32 %v3407, %v4175
        %4177 = vmatmul.bf16.gmra.mxu0 %v3324
        %v4178 = vpop.f32.mrf.mxu0
        %v4179 = vadd.f32 %v3407, %v4178
        %v4180 = vpop.f32.mrf.mxu0
        %v4181 = vadd.f32 %v3407, %v4180
        %4182 = vmatmul.bf16.gmra.mxu0 %v3325
        %v4183 = vpop.f32.mrf.mxu0
        %v4184 = vadd.f32 %v3407, %v4183
        %v4185 = vpop.f32.mrf.mxu0
        %v4186 = vadd.f32 %v3407, %v4185
        %4187 = vmatmul.bf16.gmra.mxu0 %v3326
        %v4188 = vpop.f32.mrf.mxu0
        %v4189 = vadd.f32 %v3407, %v4188
        %v4190 = vpop.f32.mrf.mxu0
        %v4191 = vadd.f32 %v3407, %v4190
        %4192 = vmatmul.bf16.gmra.mxu0 %v3327
        %v4193 = vpop.f32.mrf.mxu0
        %v4194 = vadd.f32 %v3407, %v4193
        %v4195 = vpop.f32.mrf.mxu0
        %v4196 = vadd.f32 %v3407, %v4195
        %4197 = vmatmul.bf16.gmra.mxu0 %v3328
        %v4198 = vpop.f32.mrf.mxu0
        %v4199 = vadd.f32 %v3407, %v4198
        %v4200 = vpop.f32.mrf.mxu0
        %v4201 = vadd.f32 %v3407, %v4200
        %4202 = vmatmul.bf16.gmra.mxu0 %v3329
        %v4203 = vpop.f32.mrf.mxu0
        %v4204 = vadd.f32 %v3407, %v4203
        %v4205 = vpop.f32.mrf.mxu0
        %v4206 = vadd.f32 %v3407, %v4205
        %4207 = vmatmul.bf16.gmra.mxu0 %v3330
        %v4208 = vpop.f32.mrf.mxu0
        %v4209 = vadd.f32 %v3407, %v4208
        %v4210 = vpop.f32.mrf.mxu0
        %v4211 = vadd.f32 %v3407, %v4210
        %4212 = vmatmul.bf16.gmra.mxu0 %v3331
        %v4213 = vpop.f32.mrf.mxu0
        %v4214 = vadd.f32 %v3407, %v4213
        %v4215 = vpop.f32.mrf.mxu0
        %v4216 = vadd.f32 %v3407, %v4215
        %4217 = vmatmul.bf16.gmra.mxu0 %v3332
        %v4218 = vpop.f32.mrf.mxu0
        %v4219 = vadd.f32 %v3407, %v4218
        %v4220 = vpop.f32.mrf.mxu0
        %v4221 = vadd.f32 %v3407, %v4220
        %4222 = vmatmul.bf16.gmra.mxu0 %v3333
        %v4223 = vpop.f32.mrf.mxu0
        %v4224 = vadd.f32 %v3407, %v4223
        %v4225 = vpop.f32.mrf.mxu0
        %v4226 = vadd.f32 %v3407, %v4225
        %4227 = vmatmul.bf16.gmra.mxu0 %v3334
        %v4228 = vpop.f32.mrf.mxu0
        %v4229 = vadd.f32 %v3407, %v4228
        %v4230 = vpop.f32.mrf.mxu0
        %v4231 = vadd.f32 %v3407, %v4230
        %4232 = vmatmul.bf16.gmra.mxu0 %v3335
        %v4233 = vpop.f32.mrf.mxu0
        %v4234 = vadd.f32 %v3407, %v4233
        %v4235 = vpop.f32.mrf.mxu0
        %v4236 = vadd.f32 %v3407, %v4235
        %4237 = vdwg.mxu0
        %4238 = vmatpush.bf16.msra.mxu0 %v3647
        %4239 = vmatpush.bf16.msra.mxu0 %v3640
        %4240 = vmatpush.bf16.msra.mxu0 %v3633
        %4241 = vmatpush.bf16.msra.mxu0 %v3626
        %4242 = vmatpush.bf16.msra.mxu0 %v3619
        %4243 = vmatpush.bf16.msra.mxu0 %v3612
        %4244 = vmatpush.bf16.msra.mxu0 %v3605
        %4245 = vmatpush.bf16.msra.mxu0 %v3598
        %4246 = vmatmul.bf16.gmra.mxu0 %v3320
        %v4247 = vpop.f32.mrf.mxu0
        %v4248 = vadd.f32 %v3408, %v4247
        %v4249 = vpop.f32.mrf.mxu0
        %v4250 = vadd.f32 %v3408, %v4249
        %4251 = vmatmul.bf16.gmra.mxu0 %v3321
        %v4252 = vpop.f32.mrf.mxu0
        %v4253 = vadd.f32 %v3408, %v4252
        %v4254 = vpop.f32.mrf.mxu0
        %v4255 = vadd.f32 %v3408, %v4254
        %4256 = vmatmul.bf16.gmra.mxu0 %v3322
        %v4257 = vpop.f32.mrf.mxu0
        %v4258 = vadd.f32 %v3408, %v4257
        %v4259 = vpop.f32.mrf.mxu0
        %v4260 = vadd.f32 %v3408, %v4259
        %4261 = vmatmul.bf16.gmra.mxu0 %v3323
        %v4262 = vpop.f32.mrf.mxu0
        %v4263 = vadd.f32 %v3408, %v4262
        %v4264 = vpop.f32.mrf.mxu0
        %v4265 = vadd.f32 %v3408, %v4264
        %4266 = vmatmul.bf16.gmra.mxu0 %v3324
        %v4267 = vpop.f32.mrf.mxu0
        %v4268 = vadd.f32 %v3408, %v4267
        %v4269 = vpop.f32.mrf.mxu0
        %v4270 = vadd.f32 %v3408, %v4269
        %4271 = vmatmul.bf16.gmra.mxu0 %v3325
        %v4272 = vpop.f32.mrf.mxu0
        %v4273 = vadd.f32 %v3408, %v4272
        %v4274 = vpop.f32.mrf.mxu0
        %v4275 = vadd.f32 %v3408, %v4274
        %4276 = vmatmul.bf16.gmra.mxu0 %v3326
        %v4277 = vpop.f32.mrf.mxu0
        %v4278 = vadd.f32 %v3408, %v4277
        %v4279 = vpop.f32.mrf.mxu0
        %v4280 = vadd.f32 %v3408, %v4279
        %4281 = vmatmul.bf16.gmra.mxu0 %v3327
        %v4282 = vpop.f32.mrf.mxu0
        %v4283 = vadd.f32 %v3408, %v4282
        %v4284 = vpop.f32.mrf.mxu0
        %v4285 = vadd.f32 %v3408, %v4284
        %4286 = vmatmul.bf16.gmra.mxu0 %v3328
        %v4287 = vpop.f32.mrf.mxu0
        %v4288 = vadd.f32 %v3408, %v4287
        %v4289 = vpop.f32.mrf.mxu0
        %v4290 = vadd.f32 %v3408, %v4289
        %4291 = vmatmul.bf16.gmra.mxu0 %v3329
        %v4292 = vpop.f32.mrf.mxu0
        %v4293 = vadd.f32 %v3408, %v4292
        %v4294 = vpop.f32.mrf.mxu0
        %v4295 = vadd.f32 %v3408, %v4294
        %4296 = vmatmul.bf16.gmra.mxu0 %v3330
        %v4297 = vpop.f32.mrf.mxu0
        %v4298 = vadd.f32 %v3408, %v4297
        %v4299 = vpop.f32.mrf.mxu0
        %v4300 = vadd.f32 %v3408, %v4299
        %4301 = vmatmul.bf16.gmra.mxu0 %v3331
        %v4302 = vpop.f32.mrf.mxu0
        %v4303 = vadd.f32 %v3408, %v4302
        %v4304 = vpop.f32.mrf.mxu0
        %v4305 = vadd.f32 %v3408, %v4304
        %4306 = vmatmul.bf16.gmra.mxu0 %v3332
        %v4307 = vpop.f32.mrf.mxu0
        %v4308 = vadd.f32 %v3408, %v4307
        %v4309 = vpop.f32.mrf.mxu0
        %v4310 = vadd.f32 %v3408, %v4309
        %4311 = vmatmul.bf16.gmra.mxu0 %v3333
        %v4312 = vpop.f32.mrf.mxu0
        %v4313 = vadd.f32 %v3408, %v4312
        %v4314 = vpop.f32.mrf.mxu0
        %v4315 = vadd.f32 %v3408, %v4314
        %4316 = vmatmul.bf16.gmra.mxu0 %v3334
        %v4317 = vpop.f32.mrf.mxu0
        %v4318 = vadd.f32 %v3408, %v4317
        %v4319 = vpop.f32.mrf.mxu0
        %v4320 = vadd.f32 %v3408, %v4319
        %4321 = vmatmul.bf16.gmra.mxu0 %v3335
        %v4322 = vpop.f32.mrf.mxu0
        %v4323 = vadd.f32 %v3408, %v4322
        %v4324 = vpop.f32.mrf.mxu0
        %v4325 = vadd.f32 %v3408, %v4324
        %4326 = vdwg.mxu0
        %v4327 = vtanh.pop %v3714
        %v4328 = vtanh.pop %v3803
        %v4329 = vtanh.pop %v3892
        %v4330 = vtanh.pop %v3981
        %v4331 = vtanh.pop %v4070
        %v4332 = vtanh.pop %v4159
        %v4333 = vtanh.pop %v4248
        %v4334 = vtanh.pop %v3716
        %v4335 = vtanh.pop %v3805
        %v4336 = vtanh.pop %v3894
        %v4337 = vtanh.pop %v3983
        %v4338 = vtanh.pop %v4072
        %v4339 = vtanh.pop %v4161
        %v4340 = vtanh.pop %v4250
        %v4341 = vtanh.pop %v3719
        %v4342 = vtanh.pop %v3808
        %v4343 = vtanh.pop %v3897
        %v4344 = vtanh.pop %v3986
        %v4345 = vtanh.pop %v4075
        %v4346 = vtanh.pop %v4164
        %v4347 = vtanh.pop %v4253
        %v4348 = vtanh.pop %v3721
        %v4349 = vtanh.pop %v3810
        %v4350 = vtanh.pop %v3899
        %v4351 = vtanh.pop %v3988
        %v4352 = vtanh.pop %v4077
        %v4353 = vtanh.pop %v4166
        %v4354 = vtanh.pop %v4255
        %v4355 = vtanh.pop %v3724
        %v4356 = vtanh.pop %v3813
        %v4357 = vtanh.pop %v3902
        %v4358 = vtanh.pop %v3991
        %v4359 = vtanh.pop %v4080
        %v4360 = vtanh.pop %v4169
        %v4361 = vtanh.pop %v4258
        %v4362 = vtanh.pop %v3726
        %v4363 = vtanh.pop %v3815
        %v4364 = vtanh.pop %v3904
        %v4365 = vtanh.pop %v3993
        %v4366 = vtanh.pop %v4082
        %v4367 = vtanh.pop %v4171
        %v4368 = vtanh.pop %v4260
        %v4369 = vtanh.pop %v3729
        %v4370 = vtanh.pop %v3818
        %v4371 = vtanh.pop %v3907
        %v4372 = vtanh.pop %v3996
        %v4373 = vtanh.pop %v4085
        %v4374 = vtanh.pop %v4174
        %v4375 = vtanh.pop %v4263
        %v4376 = vtanh.pop %v3731
        %v4377 = vtanh.pop %v3820
        %v4378 = vtanh.pop %v3909
        %v4379 = vtanh.pop %v3998
        %v4380 = vtanh.pop %v4087
        %v4381 = vtanh.pop %v4176
        %v4382 = vtanh.pop %v4265
        %v4383 = vtanh.pop %v3734
        %v4384 = vtanh.pop %v3823
        %v4385 = vtanh.pop %v3912
        %v4386 = vtanh.pop %v4001
        %v4387 = vtanh.pop %v4090
        %v4388 = vtanh.pop %v4179
        %v4389 = vtanh.pop %v4268
        %v4390 = vtanh.pop %v3736
        %v4391 = vtanh.pop %v3825
        %v4392 = vtanh.pop %v3914
        %v4393 = vtanh.pop %v4003
        %v4394 = vtanh.pop %v4092
        %v4395 = vtanh.pop %v4181
        %v4396 = vtanh.pop %v4270
        %v4397 = vtanh.pop %v3739
        %v4398 = vtanh.pop %v3828
        %v4399 = vtanh.pop %v3917
        %v4400 = vtanh.pop %v4006
        %v4401 = vtanh.pop %v4095
        %v4402 = vtanh.pop %v4184
        %v4403 = vtanh.pop %v4273
        %v4404 = vtanh.pop %v3741
        %v4405 = vtanh.pop %v3830
        %v4406 = vtanh.pop %v3919
        %v4407 = vtanh.pop %v4008
        %v4408 = vtanh.pop %v4097
        %v4409 = vtanh.pop %v4186
        %v4410 = vtanh.pop %v4275
        %v4411 = vtanh.pop %v3744
        %v4412 = vtanh.pop %v3833
        %v4413 = vtanh.pop %v3922
        %v4414 = vtanh.pop %v4011
        %v4415 = vtanh.pop %v4100
        %v4416 = vtanh.pop %v4189
        %v4417 = vtanh.pop %v4278
        %v4418 = vtanh.pop %v3746
        %v4419 = vtanh.pop %v3835
        %v4420 = vtanh.pop %v3924
        %v4421 = vtanh.pop %v4013
        %v4422 = vtanh.pop %v4102
        %v4423 = vtanh.pop %v4191
        %v4424 = vtanh.pop %v4280
        %v4425 = vtanh.pop %v3749
        %v4426 = vtanh.pop %v3838
        %v4427 = vtanh.pop %v3927
        %v4428 = vtanh.pop %v4016
        %v4429 = vtanh.pop %v4105
        %v4430 = vtanh.pop %v4194
        %v4431 = vtanh.pop %v4283
        %v4432 = vtanh.pop %v3751
        %v4433 = vtanh.pop %v3840
        %v4434 = vtanh.pop %v3929
        %v4435 = vtanh.pop %v4018
        %v4436 = vtanh.pop %v4107
        %v4437 = vtanh.pop %v4196
        %v4438 = vtanh.pop %v4285
        %v4439 = vtanh.pop %v3754
        %v4440 = vtanh.pop %v3843
        %v4441 = vtanh.pop %v3932
        %v4442 = vtanh.pop %v4021
        %v4443 = vtanh.pop %v4110
        %v4444 = vtanh.pop %v4199
        %v4445 = vtanh.pop %v4288
        %v4446 = vtanh.pop %v3756
        %v4447 = vtanh.pop %v3845
        %v4448 = vtanh.pop %v3934
        %v4449 = vtanh.pop %v4023
        %v4450 = vtanh.pop %v4112
        %v4451 = vtanh.pop %v4201
        %v4452 = vtanh.pop %v4290
        %v4453 = vtanh.pop %v3759
        %v4454 = vtanh.pop %v3848
        %v4455 = vtanh.pop %v3937
        %v4456 = vtanh.pop %v4026
        %v4457 = vtanh.pop %v4115
        %v4458 = vtanh.pop %v4204
        %v4459 = vtanh.pop %v4293
        %v4460 = vtanh.pop %v3761
        %v4461 = vtanh.pop %v3850
        %v4462 = vtanh.pop %v3939
        %v4463 = vtanh.pop %v4028
        %v4464 = vtanh.pop %v4117
        %v4465 = vtanh.pop %v4206
        %v4466 = vtanh.pop %v4295
        %v4467 = vtanh.pop %v3764
        %v4468 = vtanh.pop %v3853
        %v4469 = vtanh.pop %v3942
        %v4470 = vtanh.pop %v4031
        %v4471 = vtanh.pop %v4120
        %v4472 = vtanh.pop %v4209
        %v4473 = vtanh.pop %v4298
        %v4474 = vtanh.pop %v3766
        %v4475 = vtanh.pop %v3855
        %v4476 = vtanh.pop %v3944
        %v4477 = vtanh.pop %v4033
        %v4478 = vtanh.pop %v4122
        %v4479 = vtanh.pop %v4211
        %v4480 = vtanh.pop %v4300
        %v4481 = vtanh.pop %v3769
        %v4482 = vtanh.pop %v3858
        %v4483 = vtanh.pop %v3947
        %v4484 = vtanh.pop %v4036
        %v4485 = vtanh.pop %v4125
        %v4486 = vtanh.pop %v4214
        %v4487 = vtanh.pop %v4303
        %v4488 = vtanh.pop %v3771
        %v4489 = vtanh.pop %v3860
        %v4490 = vtanh.pop %v3949
        %v4491 = vtanh.pop %v4038
        %v4492 = vtanh.pop %v4127
        %v4493 = vtanh.pop %v4216
        %v4494 = vtanh.pop %v4305
        %v4495 = vtanh.pop %v3774
        %v4496 = vtanh.pop %v3863
        %v4497 = vtanh.pop %v3952
        %v4498 = vtanh.pop %v4041
        %v4499 = vtanh.pop %v4130
        %v4500 = vtanh.pop %v4219
        %v4501 = vtanh.pop %v4308
        %v4502 = vtanh.pop %v3776
        %v4503 = vtanh.pop %v3865
        %v4504 = vtanh.pop %v3954
        %v4505 = vtanh.pop %v4043
        %v4506 = vtanh.pop %v4132
        %v4507 = vtanh.pop %v4221
        %v4508 = vtanh.pop %v4310
        %v4509 = vtanh.pop %v3779
        %v4510 = vtanh.pop %v3868
        %v4511 = vtanh.pop %v3957
        %v4512 = vtanh.pop %v4046
        %v4513 = vtanh.pop %v4135
        %v4514 = vtanh.pop %v4224
        %v4515 = vtanh.pop %v4313
        %v4516 = vtanh.pop %v3781
        %v4517 = vtanh.pop %v3870
        %v4518 = vtanh.pop %v3959
        %v4519 = vtanh.pop %v4048
        %v4520 = vtanh.pop %v4137
        %v4521 = vtanh.pop %v4226
        %v4522 = vtanh.pop %v4315
        %v4523 = vtanh.pop %v3784
        %v4524 = vtanh.pop %v3873
        %v4525 = vtanh.pop %v3962
        %v4526 = vtanh.pop %v4051
        %v4527 = vtanh.pop %v4140
        %v4528 = vtanh.pop %v4229
        %v4529 = vtanh.pop %v4318
        %v4530 = vtanh.pop %v3786
        %v4531 = vtanh.pop %v3875
        %v4532 = vtanh.pop %v3964
        %v4533 = vtanh.pop %v4053
        %v4534 = vtanh.pop %v4142
        %v4535 = vtanh.pop %v4231
        %v4536 = vtanh.pop %v4320
        %v4537 = vtanh.pop %v3789
        %v4538 = vtanh.pop %v3878
        %v4539 = vtanh.pop %v3967
        %v4540 = vtanh.pop %v4056
        %v4541 = vtanh.pop %v4145
        %v4542 = vtanh.pop %v4234
        %v4543 = vtanh.pop %v4323
        %v4544 = vtanh.pop %v3791
        %v4545 = vtanh.pop %v3880
        %v4546 = vtanh.pop %v3969
        %v4547 = vtanh.pop %v4058
        %v4548 = vtanh.pop %v4147
        %v4549 = vtanh.pop %v4236
        %v4550 = vtanh.pop %v4325
        %4551 = vst [vmem:[%s685] sm:$0xff] %v4327
        %4552 = vst [vmem:[%s685 + $0x8] sm:$0xff] %v4328
        %4553 = vst [vmem:[%s685 + $0x10] sm:$0xff] %v4329
        %4554 = vst [vmem:[%s685 + $0x18] sm:$0xff] %v4330
        %4555 = vst [vmem:[%s685 + $0x20] sm:$0xff] %v4331
        %4556 = vst [vmem:[%s685 + $0x28] sm:$0xff] %v4332
        %4557 = vst [vmem:[%s685 + $0x30] sm:$0xff] %v4333
        %4558 = vst [vmem:[%s685 + $0x38] sm:$0xff] %v4334
        %4559 = vst [vmem:[%s685 + $0x40] sm:$0xff] %v4335
        %4560 = vst [vmem:[%s685 + $0x48] sm:$0xff] %v4336
        %4561 = vst [vmem:[%s685 + $0x50] sm:$0xff] %v4337
        %4562 = vst [vmem:[%s685 + $0x58] sm:$0xff] %v4338
        %4563 = vst [vmem:[%s685 + $0x60] sm:$0xff] %v4339
        %4564 = vst [vmem:[%s685 + $0x68] sm:$0xff] %v4340
        %4565 = vst [vmem:[%s685 + $0x70] sm:$0xff] %v4341
        %4566 = vst [vmem:[%s685 + $0x78] sm:$0xff] %v4342
        %4567 = vst [vmem:[%s685 + $0x80] sm:$0xff] %v4343
        %4568 = vst [vmem:[%s685 + $0x88] sm:$0xff] %v4344
        %4569 = vst [vmem:[%s685 + $0x90] sm:$0xff] %v4345
        %4570 = vst [vmem:[%s685 + $0x98] sm:$0xff] %v4346
        %4571 = vst [vmem:[%s685 + $0xa0] sm:$0xff] %v4347
        %4572 = vst [vmem:[%s685 + $0xa8] sm:$0xff] %v4348
        %4573 = vst [vmem:[%s685 + $0xb0] sm:$0xff] %v4349
        %4574 = vst [vmem:[%s685 + $0xb8] sm:$0xff] %v4350
        %4575 = vst [vmem:[%s685 + $0xc0] sm:$0xff] %v4351
        %4576 = vst [vmem:[%s685 + $0xc8] sm:$0xff] %v4352
        %4577 = vst [vmem:[%s685 + $0xd0] sm:$0xff] %v4353
        %4578 = vst [vmem:[%s685 + $0xd8] sm:$0xff] %v4354
        %4579 = vst [vmem:[%s685 + $0xe0] sm:$0xff] %v4355
        %4580 = vst [vmem:[%s685 + $0xe8] sm:$0xff] %v4356
        %4581 = vst [vmem:[%s685 + $0xf0] sm:$0xff] %v4357
        %4582 = vst [vmem:[%s685 + $0xf8] sm:$0xff] %v4358
        %4583 = vst [vmem:[%s685 + $0x100] sm:$0xff] %v4359
        %4584 = vst [vmem:[%s685 + $0x108] sm:$0xff] %v4360
        %4585 = vst [vmem:[%s685 + $0x110] sm:$0xff] %v4361
        %4586 = vst [vmem:[%s685 + $0x118] sm:$0xff] %v4362
        %4587 = vst [vmem:[%s685 + $0x120] sm:$0xff] %v4363
        %4588 = vst [vmem:[%s685 + $0x128] sm:$0xff] %v4364
        %4589 = vst [vmem:[%s685 + $0x130] sm:$0xff] %v4365
        %4590 = vst [vmem:[%s685 + $0x138] sm:$0xff] %v4366
        %4591 = vst [vmem:[%s685 + $0x140] sm:$0xff] %v4367
        %4592 = vst [vmem:[%s685 + $0x148] sm:$0xff] %v4368
        %4593 = vst [vmem:[%s685 + $0x150] sm:$0xff] %v4369
        %4594 = vst [vmem:[%s685 + $0x158] sm:$0xff] %v4370
        %4595 = vst [vmem:[%s685 + $0x160] sm:$0xff] %v4371
        %4596 = vst [vmem:[%s685 + $0x168] sm:$0xff] %v4372
        %4597 = vst [vmem:[%s685 + $0x170] sm:$0xff] %v4373
        %4598 = vst [vmem:[%s685 + $0x178] sm:$0xff] %v4374
        %4599 = vst [vmem:[%s685 + $0x180] sm:$0xff] %v4375
        %4600 = vst [vmem:[%s685 + $0x188] sm:$0xff] %v4376
        %4601 = vst [vmem:[%s685 + $0x190] sm:$0xff] %v4377
        %4602 = vst [vmem:[%s685 + $0x198] sm:$0xff] %v4378
        %4603 = vst [vmem:[%s685 + $0x1a0] sm:$0xff] %v4379
        %4604 = vst [vmem:[%s685 + $0x1a8] sm:$0xff] %v4380
        %4605 = vst [vmem:[%s685 + $0x1b0] sm:$0xff] %v4381
        %4606 = vst [vmem:[%s685 + $0x1b8] sm:$0xff] %v4382
        %4607 = vst [vmem:[%s685 + $0x1c0] sm:$0xff] %v4383
        %4608 = vst [vmem:[%s685 + $0x1c8] sm:$0xff] %v4384
        %4609 = vst [vmem:[%s685 + $0x1d0] sm:$0xff] %v4385
        %4610 = vst [vmem:[%s685 + $0x1d8] sm:$0xff] %v4386
        %4611 = vst [vmem:[%s685 + $0x1e0] sm:$0xff] %v4387
        %4612 = vst [vmem:[%s685 + $0x1e8] sm:$0xff] %v4388
        %4613 = vst [vmem:[%s685 + $0x1f0] sm:$0xff] %v4389
        %4614 = vst [vmem:[%s685 + $0x1f8] sm:$0xff] %v4390
        %4615 = vst [vmem:[%s685 + $0x200] sm:$0xff] %v4391
        %4616 = vst [vmem:[%s685 + $0x208] sm:$0xff] %v4392
        %4617 = vst [vmem:[%s685 + $0x210] sm:$0xff] %v4393
        %4618 = vst [vmem:[%s685 + $0x218] sm:$0xff] %v4394
        %4619 = vst [vmem:[%s685 + $0x220] sm:$0xff] %v4395
        %4620 = vst [vmem:[%s685 + $0x228] sm:$0xff] %v4396
        %4621 = vst [vmem:[%s685 + $0x230] sm:$0xff] %v4397
        %4622 = vst [vmem:[%s685 + $0x238] sm:$0xff] %v4398
        %4623 = vst [vmem:[%s685 + $0x240] sm:$0xff] %v4399
        %4624 = vst [vmem:[%s685 + $0x248] sm:$0xff] %v4400
        %4625 = vst [vmem:[%s685 + $0x250] sm:$0xff] %v4401
        %4626 = vst [vmem:[%s685 + $0x258] sm:$0xff] %v4402
        %4627 = vst [vmem:[%s685 + $0x260] sm:$0xff] %v4403
        %4628 = vst [vmem:[%s685 + $0x268] sm:$0xff] %v4404
        %4629 = vst [vmem:[%s685 + $0x270] sm:$0xff] %v4405
        %4630 = vst [vmem:[%s685 + $0x278] sm:$0xff] %v4406
        %4631 = vst [vmem:[%s685 + $0x280] sm:$0xff] %v4407
        %4632 = vst [vmem:[%s685 + $0x288] sm:$0xff] %v4408
        %4633 = vst [vmem:[%s685 + $0x290] sm:$0xff] %v4409
        %4634 = vst [vmem:[%s685 + $0x298] sm:$0xff] %v4410
        %4635 = vst [vmem:[%s685 + $0x2a0] sm:$0xff] %v4411
        %4636 = vst [vmem:[%s685 + $0x2a8] sm:$0xff] %v4412
        %4637 = vst [vmem:[%s685 + $0x2b0] sm:$0xff] %v4413
        %4638 = vst [vmem:[%s685 + $0x2b8] sm:$0xff] %v4414
        %4639 = vst [vmem:[%s685 + $0x2c0] sm:$0xff] %v4415
        %4640 = vst [vmem:[%s685 + $0x2c8] sm:$0xff] %v4416
        %4641 = vst [vmem:[%s685 + $0x2d0] sm:$0xff] %v4417
        %4642 = vst [vmem:[%s685 + $0x2d8] sm:$0xff] %v4418
        %4643 = vst [vmem:[%s685 + $0x2e0] sm:$0xff] %v4419
        %4644 = vst [vmem:[%s685 + $0x2e8] sm:$0xff] %v4420
        %4645 = vst [vmem:[%s685 + $0x2f0] sm:$0xff] %v4421
        %4646 = vst [vmem:[%s685 + $0x2f8] sm:$0xff] %v4422
        %4647 = vst [vmem:[%s685 + $0x300] sm:$0xff] %v4423
        %4648 = vst [vmem:[%s685 + $0x308] sm:$0xff] %v4424
        %4649 = vst [vmem:[%s685 + $0x310] sm:$0xff] %v4425
        %4650 = vst [vmem:[%s685 + $0x318] sm:$0xff] %v4426
        %4651 = vst [vmem:[%s685 + $0x320] sm:$0xff] %v4427
        %4652 = vst [vmem:[%s685 + $0x328] sm:$0xff] %v4428
        %4653 = vst [vmem:[%s685 + $0x330] sm:$0xff] %v4429
        %4654 = vst [vmem:[%s685 + $0x338] sm:$0xff] %v4430
        %4655 = vst [vmem:[%s685 + $0x340] sm:$0xff] %v4431
        %4656 = vst [vmem:[%s685 + $0x348] sm:$0xff] %v4432
        %4657 = vst [vmem:[%s685 + $0x350] sm:$0xff] %v4433
        %4658 = vst [vmem:[%s685 + $0x358] sm:$0xff] %v4434
        %4659 = vst [vmem:[%s685 + $0x360] sm:$0xff] %v4435
        %4660 = vst [vmem:[%s685 + $0x368] sm:$0xff] %v4436
        %4661 = vst [vmem:[%s685 + $0x370] sm:$0xff] %v4437
        %4662 = vst [vmem:[%s685 + $0x378] sm:$0xff] %v4438
        %4663 = vst [vmem:[%s685 + $0x380] sm:$0xff] %v4439
        %4664 = vst [vmem:[%s685 + $0x388] sm:$0xff] %v4440
        %4665 = vst [vmem:[%s685 + $0x390] sm:$0xff] %v4441
        %4666 = vst [vmem:[%s685 + $0x398] sm:$0xff] %v4442
        %4667 = vst [vmem:[%s685 + $0x3a0] sm:$0xff] %v4443
        %4668 = vst [vmem:[%s685 + $0x3a8] sm:$0xff] %v4444
        %4669 = vst [vmem:[%s685 + $0x3b0] sm:$0xff] %v4445
        %4670 = vst [vmem:[%s685 + $0x3b8] sm:$0xff] %v4446
        %4671 = vst [vmem:[%s685 + $0x3c0] sm:$0xff] %v4447
        %4672 = vst [vmem:[%s685 + $0x3c8] sm:$0xff] %v4448
        %4673 = vst [vmem:[%s685 + $0x3d0] sm:$0xff] %v4449
        %4674 = vst [vmem:[%s685 + $0x3d8] sm:$0xff] %v4450
        %4675 = vst [vmem:[%s685 + $0x3e0] sm:$0xff] %v4451
        %4676 = vst [vmem:[%s685 + $0x3e8] sm:$0xff] %v4452
        %4677 = vst [vmem:[%s685 + $0x3f0] sm:$0xff] %v4453
        %4678 = vst [vmem:[%s685 + $0x3f8] sm:$0xff] %v4454
        %4679 = vst [vmem:[%s685 + $0x400] sm:$0xff] %v4455
        %4680 = vst [vmem:[%s685 + $0x408] sm:$0xff] %v4456
        %4681 = vst [vmem:[%s685 + $0x410] sm:$0xff] %v4457
        %4682 = vst [vmem:[%s685 + $0x418] sm:$0xff] %v4458
        %4683 = vst [vmem:[%s685 + $0x420] sm:$0xff] %v4459
        %4684 = vst [vmem:[%s685 + $0x428] sm:$0xff] %v4460
        %4685 = vst [vmem:[%s685 + $0x430] sm:$0xff] %v4461
        %4686 = vst [vmem:[%s685 + $0x438] sm:$0xff] %v4462
        %4687 = vst [vmem:[%s685 + $0x440] sm:$0xff] %v4463
        %4688 = vst [vmem:[%s685 + $0x448] sm:$0xff] %v4464
        %4689 = vst [vmem:[%s685 + $0x450] sm:$0xff] %v4465
        %4690 = vst [vmem:[%s685 + $0x458] sm:$0xff] %v4466
        %4691 = vst [vmem:[%s685 + $0x460] sm:$0xff] %v4467
        %4692 = vst [vmem:[%s685 + $0x468] sm:$0xff] %v4468
        %4693 = vst [vmem:[%s685 + $0x470] sm:$0xff] %v4469
        %4694 = vst [vmem:[%s685 + $0x478] sm:$0xff] %v4470
        %4695 = vst [vmem:[%s685 + $0x480] sm:$0xff] %v4471
        %4696 = vst [vmem:[%s685 + $0x488] sm:$0xff] %v4472
        %4697 = vst [vmem:[%s685 + $0x490] sm:$0xff] %v4473
        %4698 = vst [vmem:[%s685 + $0x498] sm:$0xff] %v4474
        %4699 = vst [vmem:[%s685 + $0x4a0] sm:$0xff] %v4475
        %4700 = vst [vmem:[%s685 + $0x4a8] sm:$0xff] %v4476
        %4701 = vst [vmem:[%s685 + $0x4b0] sm:$0xff] %v4477
        %4702 = vst [vmem:[%s685 + $0x4b8] sm:$0xff] %v4478
        %4703 = vst [vmem:[%s685 + $0x4c0] sm:$0xff] %v4479
        %4704 = vst [vmem:[%s685 + $0x4c8] sm:$0xff] %v4480
        %4705 = vst [vmem:[%s685 + $0x4d0] sm:$0xff] %v4481
        %4706 = vst [vmem:[%s685 + $0x4d8] sm:$0xff] %v4482
        %4707 = vst [vmem:[%s685 + $0x4e0] sm:$0xff] %v4483
        %4708 = vst [vmem:[%s685 + $0x4e8] sm:$0xff] %v4484
        %4709 = vst [vmem:[%s685 + $0x4f0] sm:$0xff] %v4485
        %4710 = vst [vmem:[%s685 + $0x4f8] sm:$0xff] %v4486
        %4711 = vst [vmem:[%s685 + $0x500] sm:$0xff] %v4487
        %4712 = vst [vmem:[%s685 + $0x508] sm:$0xff] %v4488
        %4713 = vst [vmem:[%s685 + $0x510] sm:$0xff] %v4489
        %4714 = vst [vmem:[%s685 + $0x518] sm:$0xff] %v4490
        %4715 = vst [vmem:[%s685 + $0x520] sm:$0xff] %v4491
        %4716 = vst [vmem:[%s685 + $0x528] sm:$0xff] %v4492
        %4717 = vst [vmem:[%s685 + $0x530] sm:$0xff] %v4493
        %4718 = vst [vmem:[%s685 + $0x538] sm:$0xff] %v4494
        %4719 = vst [vmem:[%s685 + $0x540] sm:$0xff] %v4495
        %4720 = vst [vmem:[%s685 + $0x548] sm:$0xff] %v4496
        %4721 = vst [vmem:[%s685 + $0x550] sm:$0xff] %v4497
        %4722 = vst [vmem:[%s685 + $0x558] sm:$0xff] %v4498
        %4723 = vst [vmem:[%s685 + $0x560] sm:$0xff] %v4499
        %4724 = vst [vmem:[%s685 + $0x568] sm:$0xff] %v4500
        %4725 = vst [vmem:[%s685 + $0x570] sm:$0xff] %v4501
        %4726 = vst [vmem:[%s685 + $0x578] sm:$0xff] %v4502
        %4727 = vst [vmem:[%s685 + $0x580] sm:$0xff] %v4503
        %4728 = vst [vmem:[%s685 + $0x588] sm:$0xff] %v4504
        %4729 = vst [vmem:[%s685 + $0x590] sm:$0xff] %v4505
        %4730 = vst [vmem:[%s685 + $0x598] sm:$0xff] %v4506
        %4731 = vst [vmem:[%s685 + $0x5a0] sm:$0xff] %v4507
        %4732 = vst [vmem:[%s685 + $0x5a8] sm:$0xff] %v4508
        %4733 = vst [vmem:[%s685 + $0x5b0] sm:$0xff] %v4509
        %4734 = vst [vmem:[%s685 + $0x5b8] sm:$0xff] %v4510
        %4735 = vst [vmem:[%s685 + $0x5c0] sm:$0xff] %v4511
        %4736 = vst [vmem:[%s685 + $0x5c8] sm:$0xff] %v4512
        %4737 = vst [vmem:[%s685 + $0x5d0] sm:$0xff] %v4513
        %4738 = vst [vmem:[%s685 + $0x5d8] sm:$0xff] %v4514
        %4739 = vst [vmem:[%s685 + $0x5e0] sm:$0xff] %v4515
        %4740 = vst [vmem:[%s685 + $0x5e8] sm:$0xff] %v4516
        %4741 = vst [vmem:[%s685 + $0x5f0] sm:$0xff] %v4517
        %4742 = vst [vmem:[%s685 + $0x5f8] sm:$0xff] %v4518
        %4743 = vst [vmem:[%s685 + $0x600] sm:$0xff] %v4519
        %4744 = vst [vmem:[%s685 + $0x608] sm:$0xff] %v4520
        %4745 = vst [vmem:[%s685 + $0x610] sm:$0xff] %v4521
        %4746 = vst [vmem:[%s685 + $0x618] sm:$0xff] %v4522
        %4747 = vst [vmem:[%s685 + $0x620] sm:$0xff] %v4523
        %4748 = vst [vmem:[%s685 + $0x628] sm:$0xff] %v4524
        %4749 = vst [vmem:[%s685 + $0x630] sm:$0xff] %v4525
        %4750 = vst [vmem:[%s685 + $0x638] sm:$0xff] %v4526
        %4751 = vst [vmem:[%s685 + $0x640] sm:$0xff] %v4527
        %4752 = vst [vmem:[%s685 + $0x648] sm:$0xff] %v4528
        %4753 = vst [vmem:[%s685 + $0x650] sm:$0xff] %v4529
        %4754 = vst [vmem:[%s685 + $0x658] sm:$0xff] %v4530
        %4755 = vst [vmem:[%s685 + $0x660] sm:$0xff] %v4531
        %4756 = vst [vmem:[%s685 + $0x668] sm:$0xff] %v4532
        %4757 = vst [vmem:[%s685 + $0x670] sm:$0xff] %v4533
        %4758 = vst [vmem:[%s685 + $0x678] sm:$0xff] %v4534
        %4759 = vst [vmem:[%s685 + $0x680] sm:$0xff] %v4535
        %4760 = vst [vmem:[%s685 + $0x688] sm:$0xff] %v4536
        %4761 = vst [vmem:[%s685 + $0x690] sm:$0xff] %v4537
        %4762 = vst [vmem:[%s685 + $0x698] sm:$0xff] %v4538
        %4763 = vst [vmem:[%s685 + $0x6a0] sm:$0xff] %v4539
        %4764 = vst [vmem:[%s685 + $0x6a8] sm:$0xff] %v4540
        %4765 = vst [vmem:[%s685 + $0x6b0] sm:$0xff] %v4541
        %4766 = vst [vmem:[%s685 + $0x6b8] sm:$0xff] %v4542
        %4767 = vst [vmem:[%s685 + $0x6c0] sm:$0xff] %v4543
        %4768 = vst [vmem:[%s685 + $0x6c8] sm:$0xff] %v4544
        %4769 = vst [vmem:[%s685 + $0x6d0] sm:$0xff] %v4545
        %4770 = vst [vmem:[%s685 + $0x6d8] sm:$0xff] %v4546
        %4771 = vst [vmem:[%s685 + $0x6e0] sm:$0xff] %v4547
        %4772 = vst [vmem:[%s685 + $0x6e8] sm:$0xff] %v4548
        %4773 = vst [vmem:[%s685 + $0x6f0] sm:$0xff] %v4549
        %4774 = vst [vmem:[%s685 + $0x6f8] sm:$0xff] %v4550
        %s4775 = sand.u32 %s327, 1
        %s4776 = scalar_lea.sflag [#allocation4], %s4775
        %s4777 = sand.u32 %s327, 1
        %s4778 = smul.addr %s4777, 256
        %s4779 = scalar_lea.vmem [#allocation23], %s4778
        %s4780 = sand.u32 %s353, 1
        %s4781 = scalar_lea.sflag [#allocation25], %s4780
        %s4782 = sand.u32 %s353, 1
        %s4783 = smul.addr %s4782, 1792
        %s4784 = scalar_lea.vmem [#allocation24], %s4783
        // Predicated region
        $region125: #{tpu_custom_call.1} parent=71 // pred_check
          %p4785 = pneg %p337
        $region126: #{tpu_custom_call.1} parent=71 // pred_check_branch
          %4787 = sbr.rel (%p4785) target = $region128
        $region127: #{tpu_custom_call.1} parent=71 // pred_region
          %s4788 = smul.u32 32, %s41
          %4790 = vsyncadd %s4776, 0
          %s4791 = smul.addr %s4788, 8
          %s4792 = scalar_lea.hbm %s13, %s4791
          %s4793 = sshll.u32 %s4779, 4
          %s4794 = int_to_ptr.vmem [resolvable:$true] %s4793
          %s4795 = sshll.u32 %s4792, 4
          %s4796 = int_to_ptr.hbm [resolvable:$true] %s4795
          %4801 = dma.vmem_to_hbm [thread:$0]  %s4794, 4096, %s4796, %s4776, 128, 128, 8
        $region128: #{tpu_custom_call.1} parent=71 // pred_fallthru
          _
        // Predicated region
        $region129: #{tpu_custom_call.1} parent=71 // pred_check
          %p4802 = pneg %p363
        $region130: #{tpu_custom_call.1} parent=71 // pred_check_branch
          %4804 = sbr.rel (%p4802) target = $region132
        $region131: #{tpu_custom_call.1} parent=71 // pred_region
          %s4805 = smul.u32 32, %s41
          %4807 = vsyncadd %s4781, 0
          %s4808 = smul.addr %s4805, 7
          %s4809 = smul.addr %s4808, 8
          %s4810 = scalar_lea.hbm %s14, %s4809
          %s4811 = sshll.u32 %s4784, 4
          %s4812 = int_to_ptr.vmem [resolvable:$true] %s4811
          %s4813 = sshll.u32 %s4810, 4
          %s4814 = int_to_ptr.hbm [resolvable:$true] %s4813
          %4819 = dma.vmem_to_hbm [thread:$0]  %s4812, 28672, %s4814, %s4781, 896, 896, 56
        $region132: #{tpu_custom_call.1} parent=71 // pred_fallthru
          _
      $region72: #{tpu_custom_call.1} parent=5 // pred_fallthru
        _
      %p4820 = scmp.le.s32.totalorder 2, %s36
      // Predicated region
      $region133: #{tpu_custom_call.1} parent=5 // pred_check
        %p4821 = pneg %p4820
      $region134: #{tpu_custom_call.1} parent=5 // pred_check_branch
        %4823 = sbr.rel (%p4821) target = $region136
      $region135: #{tpu_custom_call.1} parent=5 // pred_region
        %s4824 = ssub.s32 %s36, 2
        // Predicated region
        $region137: #{tpu_custom_call.1} parent=135 // pred_check
          %p4825 = pneg %p343
        $region138: #{tpu_custom_call.1} parent=135 // pred_check_branch
          %4827 = sbr.rel (%p4825) target = $region140
        $region139: #{tpu_custom_call.1} parent=135 // pred_region
          %s4828 = sand.u32 %s328, 1
          %s4829 = scalar_lea.sflag [#allocation4], %s4828
          %s4830 = sand.u32 %s328, 1
          %s4831 = smul.addr %s4830, 256
          %s4832 = scalar_lea.vmem [#allocation23], %s4831
          %4834 = dma.done %s4829, 4096
        $region140: #{tpu_custom_call.1} parent=135 // pred_fallthru
          _
        // Predicated region
        $region141: #{tpu_custom_call.1} parent=135 // pred_check
          %p4835 = pneg %p369
        $region142: #{tpu_custom_call.1} parent=135 // pred_check_branch
          %4837 = sbr.rel (%p4835) target = $region144
        $region143: #{tpu_custom_call.1} parent=135 // pred_region
          %s4838 = sand.u32 %s354, 1
          %s4839 = scalar_lea.sflag [#allocation25], %s4838
          %s4840 = sand.u32 %s354, 1
          %s4841 = smul.addr %s4840, 1792
          %s4842 = scalar_lea.vmem [#allocation24], %s4841
          %4844 = dma.done %s4839, 28672
        $region144: #{tpu_custom_call.1} parent=135 // pred_fallthru
          _
      $region136: #{tpu_custom_call.1} parent=5 // pred_fallthru
        _
    $region6: #{tpu_custom_call.1} parent=1 // loop_footer
      %s40 = sadd.s32 1, %s36
    $region7: #{tpu_custom_call.1} parent=1 // loop_footer_branch
      %35 = sbr.rel target = $region3
    $region8: #{tpu_custom_call.1} parent=1 // loop_exit
      _
    %4845 = vsyncpa [#allocation3], 1
    %s4846 = scalar_lea.sflag [#allocation3], 1
    %4847 = vsyncpa %s4846, 1
    %4848 = vsyncpa [#allocation6], 1
    %4849 = vsyncpa [#allocation9], 1
    %4850 = vsyncpa [#allocation12], 1
    %4851 = vsyncpa [#allocation15], 1
    %4852 = vsyncpa [#allocation18], 1
    %4853 = vsyncpa [#allocation21], 1
    %4854 = vsyncpa [#allocation4], 1
    %s4855 = scalar_lea.sflag [#allocation4], 1
    %4856 = vsyncpa %s4855, 1
    %4857 = vsyncpa [#allocation25], 1
    %s4858 = scalar_lea.sflag [#allocation25], 1
    %4859 = vsyncpa %s4858, 1

</llo_original>
